<compile_context>
chip_gen: v6e
topology: v6e:2x2x1
jax: 0.10.0
libtpu: 0.0.40
codegen_flags: <defaults>
</compile_context>

<pallas_src>
import functools
import math

import jax
import jax.numpy as jnp
from jax.experimental import pallas as pl
from jax.experimental.pallas import tpu as pltpu


def _round_up(x, m):
    return ((x + m - 1) // m) * m


def _device_kind():
    try:
        return jax.devices()[0].device_kind.lower()
    except Exception:
        return ""


def _chip_tuning():
    kind = _device_kind()
    if "v7" in kind:
        # 64 MiB physical VMEM: keep scoped-limit headroom, smaller row tiles.
        return dict(vmem_limit=32 * 1024 * 1024, max_rows=512, bf16_epilogue=True)
    if "v5" in kind:
        # v5e: 128 MiB VMEM but no bf16 VPU/EUP -> keep the epilogue math f32.
        return dict(vmem_limit=64 * 1024 * 1024, max_rows=1024, bf16_epilogue=False)
    # v6e (and default): 128 MiB VMEM, bf16 VPU/EUP available.
    return dict(vmem_limit=64 * 1024 * 1024, max_rows=1024, bf16_epilogue=True)


def _choose_oh_tile(oh, ow, max_rows):
    """Output-row tile height th. (th*ow) must be a multiple of 8 (BlockSpec
    constraint); prefer th dividing oh so there is no ragged tail."""
    step = 8 // math.gcd(ow, 8)                 # smallest th with th*ow % 8 == 0
    cap = max(step, min(oh, max_rows // max(ow, 1)))
    cap = max(step, (cap // step) * step)
    for th in range(cap, 0, -step):
        if oh % th == 0:
            return th
    return cap


def _choose_bn_tile(n_blocks, block_rows, max_rows):
    """Row tile for the BN-apply pass: a multiple of kernel-1's tile that keeps
    >=2 grid steps (pipelining overlap / megacore split)."""
    best = 1
    for k in range(1, n_blocks + 1):
        if n_blocks % k != 0 or k * block_rows > max_rows:
            continue
        if n_blocks >= 2 and (n_blocks // k) < 2:
            continue
        best = k
    return best * block_rows


# -----------------------------------------------------------------------------
# Kernel 1: fused im2col + gated conv (bf16 MXU) + BatchNorm partial statistics
# -----------------------------------------------------------------------------
def _gated_conv_stats_kernel(alpha_ref, x_ref, w_ref, b_ref, o_ref, s_ref, *,
                             kh, kw, th, ow, ocp, oh_valid, oh_padded,
                             bf16_epilogue):
    # alpha_ref: (1, 1)               f32 SMEM (PReLU slope)
    # x_ref    : (1, Hp, Wp, Cin)     bf16 padded NHWC image (resident per n)
    # w_ref    : (KH*KW, Cin, 2*OCp)  bf16 [conv | mask] weights per tap
    # b_ref    : (1, 2*OCp)           f32  [conv | mask] bias
    # o_ref    : (th*OW, OCp)         bf16 gated output tile (lane dense)
    # s_ref    : (1, 2, OCp)          f32  per-tile [sum ; sum-of-squares]
    t = pl.program_id(1)
    oh0 = t * th

    # Direct convolution as KH*KW shifted-window matmuls (stride 1), f32 acc.
    acc = None
    for i in range(kh):
        for j in range(kw):
            win = x_ref[0, pl.ds(oh0 + i, th), pl.ds(j, ow), :]   # (th, OW, Cin)
            lhs = win.reshape(th * ow, win.shape[-1])             # (th*OW, Cin)
            part = jnp.dot(lhs, w_ref[i * kw + j],
                           preferred_element_type=jnp.float32)
            acc = part if acc is None else acc + part
    acc = acc + b_ref[...]

    x = acc[:, :ocp]                  # conv half (split on a 128-lane boundary)
    m = acc[:, ocp:]                  # mask half
    alpha = alpha_ref[0, 0]
    x = jnp.where(x >= 0.0, x, alpha * x)                         # PReLU(alpha)

    if bf16_epilogue:
        g16 = x.astype(jnp.bfloat16) * jax.nn.sigmoid(m.astype(jnp.bfloat16))
        gf = g16.astype(jnp.float32)
        o_ref[...] = g16.astype(o_ref.dtype)
    else:
        gf = x * jax.nn.sigmoid(m)
        o_ref[...] = gf.astype(o_ref.dtype)

    if oh_padded > oh_valid:
        # Padded output rows form a contiguous tail of full oh-rows, so a
        # single flat cutoff masks their contribution to the BN statistics.
        cutoff = (oh_valid - oh0) * ow
        row = jax.lax.broadcasted_iota(jnp.int32, (th * ow, 1), 0)
        gf = jnp.where(row < cutoff, gf, 0.0)

    s_ref[0, 0:1, :] = jnp.sum(gf, axis=0, keepdims=True)
    s_ref[0, 1:2, :] = jnp.sum(gf * gf, axis=0, keepdims=True)


def gated_conv_with_stats(x_pad, w_all, b_cat, alpha, *, kh, kw, th, ow, ocp,
                          oh_valid, oh_padded, vmem_limit, bf16_epilogue):
    n, hp, wp, cin = x_pad.shape
    n_t = oh_padded // th
    m_pad = n * oh_padded * ow
    kernel = functools.partial(
        _gated_conv_stats_kernel, kh=kh, kw=kw, th=th, ow=ow, ocp=ocp,
        oh_valid=oh_valid, oh_padded=oh_padded, bf16_epilogue=bf16_epilogue)
    return pl.pallas_call(
        kernel,
        out_shape=(
            jax.ShapeDtypeStruct((m_pad, ocp), jnp.bfloat16),
            jax.ShapeDtypeStruct((n * n_t, 2, ocp), jnp.float32),
        ),
        grid_spec=pltpu.PrefetchScalarGridSpec(
            num_scalar_prefetch=0,
            grid=(n, n_t),
            in_specs=[
                pl.BlockSpec(memory_space=pltpu.MemorySpace.SMEM),        # alpha
                # Whole padded image per batch element; re-used (not re-DMA'd)
                # across the inner OH-tile axis.
                # TODO(synk): halo-tiled H DMA for very large images that do
                # not fit a single VMEM block.
                pl.BlockSpec((1, hp, wp, cin), lambda b, t: (b, 0, 0, 0)),
                pl.BlockSpec((kh * kw, cin, 2 * ocp), lambda b, t: (0, 0, 0)),
                pl.BlockSpec((1, 2 * ocp), lambda b, t: (0, 0)),
            ],
            out_specs=[
                pl.BlockSpec((th * ow, ocp), lambda b, t: (b * n_t + t, 0)),
                pl.BlockSpec((1, 2, ocp), lambda b, t: (b * n_t + t, 0, 0)),
            ],
        ),
        compiler_params=pltpu.CompilerParams(
            dimension_semantics=("parallel", "parallel"),
            vmem_limit_bytes=vmem_limit),
    )(alpha, x_pad, w_all, b_cat)


# -----------------------------------------------------------------------------
# Kernel 2: tiled element-wise BatchNorm apply (bf16 in, f32 out)
# -----------------------------------------------------------------------------
def _bn_apply_kernel(x_ref, scale_ref, shift_ref, o_ref):
    o_ref[...] = x_ref[...].astype(jnp.float32) * scale_ref[...] + shift_ref[...]


def bn_apply(x, scale, shift, *, tm, vmem_limit):
    m_pad, ocp = x.shape
    grid = m_pad // tm
    return pl.pallas_call(
        _bn_apply_kernel,
        out_shape=jax.ShapeDtypeStruct((m_pad, ocp), jnp.float32),
        grid_spec=pltpu.PrefetchScalarGridSpec(
            num_scalar_prefetch=0,
            grid=(grid,),
            in_specs=[
                pl.BlockSpec((tm, ocp), lambda i: (i, 0)),
                pl.BlockSpec((1, ocp), lambda i: (0, 0)),
                pl.BlockSpec((1, ocp), lambda i: (0, 0)),
            ],
            out_specs=pl.BlockSpec((tm, ocp), lambda i: (i, 0)),
        ),
        compiler_params=pltpu.CompilerParams(
            dimension_semantics=("parallel",),
            vmem_limit_bytes=vmem_limit),
    )(x, scale, shift)


# -----------------------------------------------------------------------------
# Glue: parameter setup and full forward
# -----------------------------------------------------------------------------
class GatedConv2dParams:
    """Deterministic parameter construction mirroring the PyTorch module."""

    def __init__(self, key, in_channels, out_channels, kernel_size):
        k0, k1, k2, k3 = jax.random.split(key, 4)
        fan_in = in_channels * kernel_size * kernel_size
        std = (2.0 / fan_in) ** 0.5                       # kaiming_normal_
        wshape = (out_channels, in_channels, kernel_size, kernel_size)
        self.conv_w = std * jax.random.normal(k0, wshape, jnp.float32)
        self.mask_w = std * jax.random.normal(k1, wshape, jnp.float32)
        bound = 1.0 / (fan_in ** 0.5)                      # torch conv bias init
        self.conv_b = jax.random.uniform(
            k2, (out_channels,), jnp.float32, -bound, bound)
        self.mask_b = jax.random.uniform(
            k3, (out_channels,), jnp.float32, -bound, bound)
        self.prelu_alpha = 0.2                             # PReLU(init=0.2)
        self.bn_gamma = jnp.ones((out_channels,), jnp.float32)
        self.bn_beta = jnp.zeros((out_channels,), jnp.float32)
        self.out_channels = out_channels
        self.kernel_size = kernel_size


def gated_conv2d_forward(params, x_nchw, stride=1, padding=1, eps=1e-5):
    # TODO(synk): only stride=1 / dilation=1 / groups=1 (the module defaults)
    # are implemented by the fused direct-convolution kernel.
    assert stride == 1, "fused kernel implements stride=1 only"
    tune = _chip_tuning()
    ks = params.kernel_size
    oc = params.out_channels
    n, cin, h, w = x_nchw.shape
    oh = h + 2 * padding - ks + 1
    ow = w + 2 * padding - ks + 1

    ocp = _round_up(oc, 128)                 # lane-dense output channels
    th = _choose_oh_tile(oh, ow, tune["max_rows"])
    oh_p = _round_up(oh, th)
    n_t = oh_p // th

    # Padded NHWC input in bf16.  Fused im2col: kernel 1 builds its own shifted
    # windows from this slab, so no KH*KW-inflated patches array hits HBM.
    x_nhwc = jnp.transpose(x_nchw, (0, 2, 3, 1)).astype(jnp.bfloat16)
    x_pad = jnp.pad(
        x_nhwc,
        ((0, 0), (padding, padding + (oh_p - oh)), (padding, padding), (0, 0)))

    # torch weight (OC, Cin, KH, KW) -> (KH*KW, Cin, OCp); conv || mask halves
    # concatenated along output channels so one MXU pass produces both.
    def prep_w(wt):
        r = jnp.transpose(wt, (2, 3, 1, 0)).reshape(ks * ks, cin, oc)
        return jnp.pad(r, ((0, 0), (0, 0), (0, ocp - oc)))

    w_all = jnp.concatenate(
        [prep_w(params.conv_w), prep_w(params.mask_w)], axis=2
    ).astype(jnp.bfloat16)                                   # (KH*KW, Cin, 2*OCp)
    b_cat = jnp.concatenate(
        [jnp.pad(params.conv_b, (0, ocp - oc)),
         jnp.pad(params.mask_b, (0, ocp - oc))]).reshape(1, 2 * ocp)
    alpha = jnp.full((1, 1), params.prelu_alpha, jnp.float32)

    # Kernel 1: fused im2col + gated conv + per-tile BN partial statistics.
    gated, partial = gated_conv_with_stats(
        x_pad, w_all, b_cat, alpha, kh=ks, kw=ks, th=th, ow=ow, ocp=ocp,
        oh_valid=oh, oh_padded=oh_p, vmem_limit=tune["vmem_limit"],
        bf16_epilogue=tune["bf16_epilogue"])

    # BatchNorm statistics (training mode, biased variance) from tiny partials.
    m_valid = n * oh * ow
    ssum = jnp.sum(partial[:, 0, :], axis=0)
    ssq = jnp.sum(partial[:, 1, :], axis=0)
    mean = ssum / m_valid
    var = jnp.maximum(ssq / m_valid - mean * mean, 0.0)
    gamma = jnp.pad(params.bn_gamma, (0, ocp - oc), constant_values=1.0)
    beta = jnp.pad(params.bn_beta, (0, ocp - oc))
    inv = jax.lax.rsqrt(var + eps)
    scale = (gamma * inv).reshape(1, ocp)
    shift = (beta - mean * gamma * inv).reshape(1, ocp)

    # Kernel 2: tiled, lane-dense normalize (bf16 read, f32 write).
    tm_bn = _choose_bn_tile(n * n_t, th * ow, tune["max_rows"])
    out = bn_apply(gated, scale, shift, tm=tm_bn, vmem_limit=tune["vmem_limit"])

    # (N*OHp*OW, OCp) -> NCHW (strip row/channel padding).
    # TODO(synk): fold this transpose into kernel 2's out_specs (per-tile XLU
    # transpose), or return NHWC if the consumer allows it; kept as an XLA op
    # for layout parity with the PyTorch module.
    out = out.reshape(n, oh_p, ow, ocp)[:, :oh, :, :oc]
    return jnp.transpose(out, (0, 3, 1, 2))


if __name__ == "__main__":
    key = jax.random.PRNGKey(0)
    kx, kp = jax.random.split(key)

    N, CIN, H, W = 2, 4, 16, 16
    COUT, KS, STRIDE, PAD = 8, 3, 1, 1

    x = jax.random.normal(kx, (N, CIN, H, W), jnp.float32)
    params = GatedConv2dParams(kp, CIN, COUT, KS)

    y = gated_conv2d_forward(params, x, stride=STRIDE, padding=PAD)
    jax.block_until_ready(y)
    assert y.shape == (N, COUT, H, W), y.shape
    print("KERNEL_OK")
</pallas_src>

<mosaic_0001>
module attributes {stable_mosaic.version = 11 : i64} {
  func.func @_gated_conv_stats_kernel(%arg0: i32, %arg1: i32, %arg2: memref<1x1xf32, #tpu.memory_space<smem>>, %arg3: memref<1x18x18x4xbf16, #tpu.memory_space<vmem>>, %arg4: memref<9x4x256xbf16, #tpu.memory_space<vmem>>, %arg5: memref<1x256xf32, #tpu.memory_space<vmem>>, %arg6: memref<256x128xbf16, #tpu.memory_space<vmem>>, %arg7: memref<1x2x128xf32, #tpu.memory_space<vmem>>) attributes {dimension_semantics = [#tpu.dimension_semantics<parallel>, #tpu.dimension_semantics<parallel>], iteration_bounds = array<i64: 2, 1>, scalar_prefetch = 0 : i64, scratch_operands = 0 : i64, tpu.core_type = #tpu.core_type<tc>, window_params = [{transform_indices = @transform_0, window_bounds = array<i64: 1, 1>}, {transform_indices = @transform_1, window_bounds = array<i64: 1, 18, 18, 4>}, {pipeline_mode = #tpu.pipeline_mode<synchronous>, transform_indices = @transform_2, window_bounds = array<i64: 9, 4, 256>}, {pipeline_mode = #tpu.pipeline_mode<synchronous>, transform_indices = @transform_3, window_bounds = array<i64: 1, 256>}, {transform_indices = @transform_4, window_bounds = array<i64: 256, 128>}, {transform_indices = @transform_5, window_bounds = array<i64: 1, 2, 128>}]} {
    %c16_i32 = arith.constant 16 : i32
    %0 = arith.muli %arg1, %c16_i32 : i32
    %c0_i32 = arith.constant 0 : i32
    %1 = arith.addi %0, %c0_i32 : i32
    %c0 = arith.constant 0 : index
    %2 = arith.index_cast %1 : i32 to index
    %c0_0 = arith.constant 0 : index
    %c0_1 = arith.constant 0 : index
    %3 = vector.load %arg3[%c0, %2, %c0_0, %c0_1] : memref<1x18x18x4xbf16, #tpu.memory_space<vmem>>, vector<1x16x16x4xbf16>
    %4 = vector.shape_cast %3 : vector<1x16x16x4xbf16> to vector<16x16x4xbf16>
    %5 = vector.shape_cast %4 : vector<16x16x4xbf16> to vector<256x4xbf16>
    %c0_2 = arith.constant 0 : index
    %c0_3 = arith.constant 0 : index
    %c0_4 = arith.constant 0 : index
    %6 = vector.load %arg4[%c0_2, %c0_3, %c0_4] : memref<9x4x256xbf16, #tpu.memory_space<vmem>>, vector<1x4x256xbf16>
    %7 = vector.shape_cast %6 : vector<1x4x256xbf16> to vector<4x256xbf16>
    %cst = arith.constant dense<0.000000e+00> : vector<256x256xf32>
    %8 = tpu.matmul %5, %7, %cst {dimension_numbers = #tpu.dot_dimension_numbers<[1], [0], [0], [1], [0, 0, 1, 1], [], []>} : vector<256x4xbf16>, vector<4x256xbf16>, vector<256x256xf32> -> vector<256x256xf32>
    %c0_i32_5 = arith.constant 0 : i32
    %9 = arith.addi %0, %c0_i32_5 : i32
    %c0_6 = arith.constant 0 : index
    %10 = arith.index_cast %9 : i32 to index
    %c1 = arith.constant 1 : index
    %c0_7 = arith.constant 0 : index
    %11 = vector.load %arg3[%c0_6, %10, %c1, %c0_7] : memref<1x18x18x4xbf16, #tpu.memory_space<vmem>>, vector<1x16x16x4xbf16>
    %12 = vector.shape_cast %11 : vector<1x16x16x4xbf16> to vector<16x16x4xbf16>
    %13 = vector.shape_cast %12 : vector<16x16x4xbf16> to vector<256x4xbf16>
    %c1_8 = arith.constant 1 : index
    %c0_9 = arith.constant 0 : index
    %c0_10 = arith.constant 0 : index
    %14 = vector.load %arg4[%c1_8, %c0_9, %c0_10] : memref<9x4x256xbf16, #tpu.memory_space<vmem>>, vector<1x4x256xbf16>
    %15 = vector.shape_cast %14 : vector<1x4x256xbf16> to vector<4x256xbf16>
    %cst_11 = arith.constant dense<0.000000e+00> : vector<256x256xf32>
    %16 = tpu.matmul %13, %15, %cst_11 {dimension_numbers = #tpu.dot_dimension_numbers<[1], [0], [0], [1], [0, 0, 1, 1], [], []>} : vector<256x4xbf16>, vector<4x256xbf16>, vector<256x256xf32> -> vector<256x256xf32>
    %17 = arith.addf %8, %16 : vector<256x256xf32>
    %c0_i32_12 = arith.constant 0 : i32
    %18 = arith.addi %0, %c0_i32_12 : i32
    %c0_13 = arith.constant 0 : index
    %19 = arith.index_cast %18 : i32 to index
    %c2 = arith.constant 2 : index
    %c0_14 = arith.constant 0 : index
    %20 = vector.load %arg3[%c0_13, %19, %c2, %c0_14] : memref<1x18x18x4xbf16, #tpu.memory_space<vmem>>, vector<1x16x16x4xbf16>
    %21 = vector.shape_cast %20 : vector<1x16x16x4xbf16> to vector<16x16x4xbf16>
    %22 = vector.shape_cast %21 : vector<16x16x4xbf16> to vector<256x4xbf16>
    %c2_15 = arith.constant 2 : index
    %c0_16 = arith.constant 0 : index
    %c0_17 = arith.constant 0 : index
    %23 = vector.load %arg4[%c2_15, %c0_16, %c0_17] : memref<9x4x256xbf16, #tpu.memory_space<vmem>>, vector<1x4x256xbf16>
    %24 = vector.shape_cast %23 : vector<1x4x256xbf16> to vector<4x256xbf16>
    %cst_18 = arith.constant dense<0.000000e+00> : vector<256x256xf32>
    %25 = tpu.matmul %22, %24, %cst_18 {dimension_numbers = #tpu.dot_dimension_numbers<[1], [0], [0], [1], [0, 0, 1, 1], [], []>} : vector<256x4xbf16>, vector<4x256xbf16>, vector<256x256xf32> -> vector<256x256xf32>
    %26 = arith.addf %17, %25 : vector<256x256xf32>
    %c1_i32 = arith.constant 1 : i32
    %27 = arith.addi %0, %c1_i32 : i32
    %c0_19 = arith.constant 0 : index
    %28 = arith.index_cast %27 : i32 to index
    %c0_20 = arith.constant 0 : index
    %c0_21 = arith.constant 0 : index
    %29 = vector.load %arg3[%c0_19, %28, %c0_20, %c0_21] : memref<1x18x18x4xbf16, #tpu.memory_space<vmem>>, vector<1x16x16x4xbf16>
    %30 = vector.shape_cast %29 : vector<1x16x16x4xbf16> to vector<16x16x4xbf16>
    %31 = vector.shape_cast %30 : vector<16x16x4xbf16> to vector<256x4xbf16>
    %c3 = arith.constant 3 : index
    %c0_22 = arith.constant 0 : index
    %c0_23 = arith.constant 0 : index
    %32 = vector.load %arg4[%c3, %c0_22, %c0_23] : memref<9x4x256xbf16, #tpu.memory_space<vmem>>, vector<1x4x256xbf16>
    %33 = vector.shape_cast %32 : vector<1x4x256xbf16> to vector<4x256xbf16>
    %cst_24 = arith.constant dense<0.000000e+00> : vector<256x256xf32>
    %34 = tpu.matmul %31, %33, %cst_24 {dimension_numbers = #tpu.dot_dimension_numbers<[1], [0], [0], [1], [0, 0, 1, 1], [], []>} : vector<256x4xbf16>, vector<4x256xbf16>, vector<256x256xf32> -> vector<256x256xf32>
    %35 = arith.addf %26, %34 : vector<256x256xf32>
    %c1_i32_25 = arith.constant 1 : i32
    %36 = arith.addi %0, %c1_i32_25 : i32
    %c0_26 = arith.constant 0 : index
    %37 = arith.index_cast %36 : i32 to index
    %c1_27 = arith.constant 1 : index
    %c0_28 = arith.constant 0 : index
    %38 = vector.load %arg3[%c0_26, %37, %c1_27, %c0_28] : memref<1x18x18x4xbf16, #tpu.memory_space<vmem>>, vector<1x16x16x4xbf16>
    %39 = vector.shape_cast %38 : vector<1x16x16x4xbf16> to vector<16x16x4xbf16>
    %40 = vector.shape_cast %39 : vector<16x16x4xbf16> to vector<256x4xbf16>
    %c4 = arith.constant 4 : index
    %c0_29 = arith.constant 0 : index
    %c0_30 = arith.constant 0 : index
    %41 = vector.load %arg4[%c4, %c0_29, %c0_30] : memref<9x4x256xbf16, #tpu.memory_space<vmem>>, vector<1x4x256xbf16>
    %42 = vector.shape_cast %41 : vector<1x4x256xbf16> to vector<4x256xbf16>
    %cst_31 = arith.constant dense<0.000000e+00> : vector<256x256xf32>
    %43 = tpu.matmul %40, %42, %cst_31 {dimension_numbers = #tpu.dot_dimension_numbers<[1], [0], [0], [1], [0, 0, 1, 1], [], []>} : vector<256x4xbf16>, vector<4x256xbf16>, vector<256x256xf32> -> vector<256x256xf32>
    %44 = arith.addf %35, %43 : vector<256x256xf32>
    %c1_i32_32 = arith.constant 1 : i32
    %45 = arith.addi %0, %c1_i32_32 : i32
    %c0_33 = arith.constant 0 : index
    %46 = arith.index_cast %45 : i32 to index
    %c2_34 = arith.constant 2 : index
    %c0_35 = arith.constant 0 : index
    %47 = vector.load %arg3[%c0_33, %46, %c2_34, %c0_35] : memref<1x18x18x4xbf16, #tpu.memory_space<vmem>>, vector<1x16x16x4xbf16>
    %48 = vector.shape_cast %47 : vector<1x16x16x4xbf16> to vector<16x16x4xbf16>
    %49 = vector.shape_cast %48 : vector<16x16x4xbf16> to vector<256x4xbf16>
    %c5 = arith.constant 5 : index
    %c0_36 = arith.constant 0 : index
    %c0_37 = arith.constant 0 : index
    %50 = vector.load %arg4[%c5, %c0_36, %c0_37] : memref<9x4x256xbf16, #tpu.memory_space<vmem>>, vector<1x4x256xbf16>
    %51 = vector.shape_cast %50 : vector<1x4x256xbf16> to vector<4x256xbf16>
    %cst_38 = arith.constant dense<0.000000e+00> : vector<256x256xf32>
    %52 = tpu.matmul %49, %51, %cst_38 {dimension_numbers = #tpu.dot_dimension_numbers<[1], [0], [0], [1], [0, 0, 1, 1], [], []>} : vector<256x4xbf16>, vector<4x256xbf16>, vector<256x256xf32> -> vector<256x256xf32>
    %53 = arith.addf %44, %52 : vector<256x256xf32>
    %c2_i32 = arith.constant 2 : i32
    %54 = arith.addi %0, %c2_i32 : i32
    %c0_39 = arith.constant 0 : index
    %55 = arith.index_cast %54 : i32 to index
    %c0_40 = arith.constant 0 : index
    %c0_41 = arith.constant 0 : index
    %56 = vector.load %arg3[%c0_39, %55, %c0_40, %c0_41] : memref<1x18x18x4xbf16, #tpu.memory_space<vmem>>, vector<1x16x16x4xbf16>
    %57 = vector.shape_cast %56 : vector<1x16x16x4xbf16> to vector<16x16x4xbf16>
    %58 = vector.shape_cast %57 : vector<16x16x4xbf16> to vector<256x4xbf16>
    %c6 = arith.constant 6 : index
    %c0_42 = arith.constant 0 : index
    %c0_43 = arith.constant 0 : index
    %59 = vector.load %arg4[%c6, %c0_42, %c0_43] : memref<9x4x256xbf16, #tpu.memory_space<vmem>>, vector<1x4x256xbf16>
    %60 = vector.shape_cast %59 : vector<1x4x256xbf16> to vector<4x256xbf16>
    %cst_44 = arith.constant dense<0.000000e+00> : vector<256x256xf32>
    %61 = tpu.matmul %58, %60, %cst_44 {dimension_numbers = #tpu.dot_dimension_numbers<[1], [0], [0], [1], [0, 0, 1, 1], [], []>} : vector<256x4xbf16>, vector<4x256xbf16>, vector<256x256xf32> -> vector<256x256xf32>
    %62 = arith.addf %53, %61 : vector<256x256xf32>
    %c2_i32_45 = arith.constant 2 : i32
    %63 = arith.addi %0, %c2_i32_45 : i32
    %c0_46 = arith.constant 0 : index
    %64 = arith.index_cast %63 : i32 to index
    %c1_47 = arith.constant 1 : index
    %c0_48 = arith.constant 0 : index
    %65 = vector.load %arg3[%c0_46, %64, %c1_47, %c0_48] : memref<1x18x18x4xbf16, #tpu.memory_space<vmem>>, vector<1x16x16x4xbf16>
    %66 = vector.shape_cast %65 : vector<1x16x16x4xbf16> to vector<16x16x4xbf16>
    %67 = vector.shape_cast %66 : vector<16x16x4xbf16> to vector<256x4xbf16>
    %c7 = arith.constant 7 : index
    %c0_49 = arith.constant 0 : index
    %c0_50 = arith.constant 0 : index
    %68 = vector.load %arg4[%c7, %c0_49, %c0_50] : memref<9x4x256xbf16, #tpu.memory_space<vmem>>, vector<1x4x256xbf16>
    %69 = vector.shape_cast %68 : vector<1x4x256xbf16> to vector<4x256xbf16>
    %cst_51 = arith.constant dense<0.000000e+00> : vector<256x256xf32>
    %70 = tpu.matmul %67, %69, %cst_51 {dimension_numbers = #tpu.dot_dimension_numbers<[1], [0], [0], [1], [0, 0, 1, 1], [], []>} : vector<256x4xbf16>, vector<4x256xbf16>, vector<256x256xf32> -> vector<256x256xf32>
    %71 = arith.addf %62, %70 : vector<256x256xf32>
    %c2_i32_52 = arith.constant 2 : i32
    %72 = arith.addi %0, %c2_i32_52 : i32
    %c0_53 = arith.constant 0 : index
    %73 = arith.index_cast %72 : i32 to index
    %c2_54 = arith.constant 2 : index
    %c0_55 = arith.constant 0 : index
    %74 = vector.load %arg3[%c0_53, %73, %c2_54, %c0_55] : memref<1x18x18x4xbf16, #tpu.memory_space<vmem>>, vector<1x16x16x4xbf16>
    %75 = vector.shape_cast %74 : vector<1x16x16x4xbf16> to vector<16x16x4xbf16>
    %76 = vector.shape_cast %75 : vector<16x16x4xbf16> to vector<256x4xbf16>
    %c8 = arith.constant 8 : index
    %c0_56 = arith.constant 0 : index
    %c0_57 = arith.constant 0 : index
    %77 = vector.load %arg4[%c8, %c0_56, %c0_57] : memref<9x4x256xbf16, #tpu.memory_space<vmem>>, vector<1x4x256xbf16>
    %78 = vector.shape_cast %77 : vector<1x4x256xbf16> to vector<4x256xbf16>
    %cst_58 = arith.constant dense<0.000000e+00> : vector<256x256xf32>
    %79 = tpu.matmul %76, %78, %cst_58 {dimension_numbers = #tpu.dot_dimension_numbers<[1], [0], [0], [1], [0, 0, 1, 1], [], []>} : vector<256x4xbf16>, vector<4x256xbf16>, vector<256x256xf32> -> vector<256x256xf32>
    %80 = arith.addf %71, %79 : vector<256x256xf32>
    %c0_59 = arith.constant 0 : index
    %c0_60 = arith.constant 0 : index
    %81 = vector.load %arg5[%c0_59, %c0_60] : memref<1x256xf32, #tpu.memory_space<vmem>>, vector<1x256xf32>
    %82 = vector.broadcast %81 : vector<1x256xf32> to vector<256x256xf32>
    %83 = arith.addf %80, %82 : vector<256x256xf32>
    %84 = vector.extract_strided_slice %83 {offsets = [0, 0], sizes = [256, 128], strides = [1, 1]} : vector<256x256xf32> to vector<256x128xf32>
    %85 = vector.extract_strided_slice %83 {offsets = [0, 128], sizes = [256, 128], strides = [1, 1]} : vector<256x256xf32> to vector<256x128xf32>
    %c0_61 = arith.constant 0 : index
    %c0_62 = arith.constant 0 : index
    %86 = memref.load %arg2[%c0_61, %c0_62] : memref<1x1xf32, #tpu.memory_space<smem>>
    %cst_63 = arith.constant 0.000000e+00 : f32
    %87 = vector.broadcast %cst_63 : f32 to vector<256x128xf32>
    %88 = arith.cmpf oge, %84, %87 : vector<256x128xf32>
    %89 = vector.broadcast %86 : f32 to vector<256x128xf32>
    %90 = arith.mulf %89, %84 : vector<256x128xf32>
    %91 = arith.select %88, %84, %90 : vector<256x128xi1>, vector<256x128xf32>
    %92 = arith.truncf %91 : vector<256x128xf32> to vector<256x128xbf16>
    %93 = arith.truncf %85 : vector<256x128xf32> to vector<256x128xbf16>
    %94 = arith.negf %93 : vector<256x128xbf16>
    %95 = math.exp %94 : vector<256x128xbf16>
    %cst_64 = arith.constant 1.000000e+00 : bf16
    %96 = vector.broadcast %cst_64 : bf16 to vector<256x128xbf16>
    %97 = arith.addf %96, %95 : vector<256x128xbf16>
    %98 = arith.divf %96, %97 : vector<256x128xbf16>
    %99 = arith.mulf %92, %98 : vector<256x128xbf16>
    %100 = arith.extf %99 : vector<256x128xbf16> to vector<256x128xf32>
    %c0_65 = arith.constant 0 : index
    %c0_66 = arith.constant 0 : index
    %101 = vector.load %arg6[%c0_65, %c0_66] : memref<256x128xbf16, #tpu.memory_space<vmem>>, vector<256x128xbf16>
    tpu.vector_store %arg6[%c0_65, %c0_66], %99 {strides = array<i32>} : memref<256x128xbf16, #tpu.memory_space<vmem>>, vector<256x128xbf16>,
    %cst_67 = arith.constant dense<0.000000e+00> : vector<128xf32>
    %102 = vector.multi_reduction <add>, %100, %cst_67 [0] : vector<256x128xf32> to vector<128xf32>
    %103 = vector.shape_cast %102 : vector<128xf32> to vector<1x128xf32>
    %c0_68 = arith.constant 0 : index
    %c0_69 = arith.constant 0 : index
    %c0_70 = arith.constant 0 : index
    %104 = vector.load %arg7[%c0_68, %c0_69, %c0_70] : memref<1x2x128xf32, #tpu.memory_space<vmem>>, vector<1x1x128xf32>
    %105 = vector.shape_cast %104 : vector<1x1x128xf32> to vector<1x128xf32>
    %106 = vector.shape_cast %103 : vector<1x128xf32> to vector<1x1x128xf32>
    tpu.vector_store %arg7[%c0_68, %c0_69, %c0_70], %106 {strides = array<i32>} : memref<1x2x128xf32, #tpu.memory_space<vmem>>, vector<1x1x128xf32>,
    %107 = arith.mulf %100, %100 : vector<256x128xf32>
    %cst_71 = arith.constant dense<0.000000e+00> : vector<128xf32>
    %108 = vector.multi_reduction <add>, %107, %cst_71 [0] : vector<256x128xf32> to vector<128xf32>
    %109 = vector.shape_cast %108 : vector<128xf32> to vector<1x128xf32>
    %c0_72 = arith.constant 0 : index
    %c1_73 = arith.constant 1 : index
    %c0_74 = arith.constant 0 : index
    %110 = vector.load %arg7[%c0_72, %c1_73, %c0_74] : memref<1x2x128xf32, #tpu.memory_space<vmem>>, vector<1x1x128xf32>
    %111 = vector.shape_cast %110 : vector<1x1x128xf32> to vector<1x128xf32>
    %112 = vector.shape_cast %109 : vector<1x128xf32> to vector<1x1x128xf32>
    tpu.vector_store %arg7[%c0_72, %c1_73, %c0_74], %112 {strides = array<i32>} : memref<1x2x128xf32, #tpu.memory_space<vmem>>, vector<1x1x128xf32>,
    return
  }
  func.func @transform_0(%arg0: i32, %arg1: i32) -> (i32, i32) {
    %c0_i32 = arith.constant 0 : i32
    %c0_i32_0 = arith.constant 0 : i32
    %c0_i32_1 = arith.constant 0 : i32
    return %c0_i32, %c0_i32_0 : i32, i32
  }
  func.func @transform_1(%arg0: i32, %arg1: i32) -> (i32, i32, i32, i32) {
    %c0_i32 = arith.constant 0 : i32
    %c0_i32_0 = arith.constant 0 : i32
    %c0_i32_1 = arith.constant 0 : i32
    %c0_i32_2 = arith.constant 0 : i32
    return %arg0, %c0_i32, %c0_i32_0, %c0_i32_1 : i32, i32, i32, i32
  }
  func.func @transform_2(%arg0: i32, %arg1: i32) -> (i32, i32, i32) {
    %c0_i32 = arith.constant 0 : i32
    %c0_i32_0 = arith.constant 0 : i32
    %c0_i32_1 = arith.constant 0 : i32
    %c0_i32_2 = arith.constant 0 : i32
    return %c0_i32, %c0_i32_0, %c0_i32_1 : i32, i32, i32
  }
  func.func @transform_3(%arg0: i32, %arg1: i32) -> (i32, i32) {
    %c0_i32 = arith.constant 0 : i32
    %c0_i32_0 = arith.constant 0 : i32
    %c0_i32_1 = arith.constant 0 : i32
    return %c0_i32, %c0_i32_0 : i32, i32
  }
  func.func @transform_4(%arg0: i32, %arg1: i32) -> (i32, i32) {
    %c1_i32 = arith.constant 1 : i32
    %0 = arith.muli %arg0, %c1_i32 : i32
    %1 = arith.addi %0, %arg1 : i32
    %c0_i32 = arith.constant 0 : i32
    %c0_i32_0 = arith.constant 0 : i32
    return %1, %c0_i32 : i32, i32
  }
  func.func @transform_5(%arg0: i32, %arg1: i32) -> (i32, i32, i32) {
    %c1_i32 = arith.constant 1 : i32
    %0 = arith.muli %arg0, %c1_i32 : i32
    %1 = arith.addi %0, %arg1 : i32
    %c0_i32 = arith.constant 0 : i32
    %c0_i32_0 = arith.constant 0 : i32
    %c0_i32_1 = arith.constant 0 : i32
    return %1, %c0_i32, %c0_i32_0 : i32, i32, i32
  }
}

</mosaic_0001>

<llo_original>
// kernel: tpu_custom_call.1
$region0: #{tpu_custom_call.1}
  #allocation0 [shape = 'u32[]', space=smem, size = 0x4, offset = 0x4, fixed_abs, tag = 'smem constant byte address 0x4 - core index']
  #allocation1 [shape = 'u32[144,128]{1,0:T(1,128)}', space=vmem, size = 0x12000, scoped, tag = 'internal scratch']
  #allocation2 [shape = 'f32[1,1]{1,0:T(1,128)S(6)}', space=smem, size = 0x200, scoped, tag = 'scoped memory for tpu_custom_call.1']
  %s0 = inlined_call_operand.<no memory space> [shape: f32[1,1], index: 0, kind: input, shape index: {}]
  %s1 = inlined_call_operand.vmem [shape: bf16[2,18,18,4], index: 1, kind: input, shape index: {}]
  %s2 = inlined_call_operand.vmem [shape: bf16[9,4,256], index: 2, kind: input, shape index: {}]
  %s3 = inlined_call_operand.vmem [shape: f32[1,256], index: 3, kind: input, shape index: {}]
  %s4 = inlined_call_operand.hbm [shape: bf16[512,128], index: 4, kind: output, shape index: {0}]
  %s5 = inlined_call_operand.hbm [shape: f32[2,2,128], index: 5, kind: output, shape index: {1}]
  %6 = xla_tuple %s4, %s5
  %s7 = sld [smem:[#allocation0]]
  $region57: #{tpu_custom_call.1} parent=0
    _
  %s9 = ssub.s32 1, %s7
  %s10 = scalar_select 0, %s9, %s7
  %11 = sst [smem:[#allocation2]] %s0
  $region1: #{tpu_custom_call.1} parent=0
    #allocation3 [shape = 'u8[131072]{0}', space=vmem, size = 0x20000, scoped, tag = 'output window, operand 0']
    #allocation4 [shape = 's32[2]{0}', space=sflag, size = 0x8, scoped, tag = 'scoped memory for tpu_custom_call.1']
    #allocation5 [shape = 'u8[2048]{0}', space=vmem, size = 0x800, scoped, tag = 'output window, operand 1']
    #allocation6 [shape = 's32[2]{0}', space=sflag, size = 0x8, scoped, tag = 'scoped memory for tpu_custom_call.1']
    %12 = vsyncpa [#allocation4], 0
    %s13 = scalar_lea.sflag [#allocation4], 1
    %14 = vsyncpa %s13, 0
    %15 = vsyncpa [#allocation6], 0
    %s16 = scalar_lea.sflag [#allocation6], 1
    %17 = vsyncpa %s16, 0
    loop: start=0, step=1, limit=4
    $region2: #{tpu_custom_call.1} parent=1 // loop_pre_header
      _
    $region3: #{tpu_custom_call.1} parent=1 // loop_header
      %s19 = sphi 0, %s23
      %p20 = scmp.ge.s32.totalorder %s19, 4
      %s26 = sphi 0, %s38
      %s27 = sphi 0, %s34
      %s28 = sphi 0, %s26
      %s29 = sphi 0, %s27
      %s30 = sphi 0, %s28
      %s31 = sphi 0, %s29
      %s39 = sphi 0, %s39
      %s41 = sphi 0, %s39
      %s42 = sphi 0, %s41
      %s56 = sphi 0, %s42
      %s62 = sphi 0, %s64
      %s65 = sphi 0, %s62
      %s66 = sphi 0, %s65
      %s82 = sphi 0, %s66
      %s86 = sphi 0, %s86
      %s88 = sphi 0, %s86
      %s89 = sphi 0, %s88
      %s103 = sphi 0, %s89
      %s107 = sphi 0, %s107
      %s109 = sphi 0, %s107
      %s110 = sphi 0, %s109
      %s124 = sphi 0, %s110
      %s132 = sphi 0, %s134
      %s135 = sphi 0, %s132
      %s136 = sphi 0, %s135
      %s152 = sphi 0, %s136
      %s160 = sphi 0, %s162
      %s163 = sphi 0, %s160
      %s164 = sphi 0, %s163
      %s180 = sphi 0, %s164
    $region4: #{tpu_custom_call.1} parent=1 // loop_header_branch
      %22 = sbr.rel (%p20) target = $region8
    $region5: #{tpu_custom_call.1} parent=1 // loop_body
      %s24 = ssub.s32 %s19, 1
      %s25 = ssub.s32 %s19, 2
      %s32 = sadd.s32 1, %s27
      %p33 = scmp.ge.s32.totalorder %s32, 1
      %s34 = scalar_select %p33, 0, %s32
      %s35 = sadd.s32 1, %s26
      %s36 = scalar_select %p33, %s35, %s26
      %p37 = scmp.ge.s32.totalorder %s36, 2
      %s38 = scalar_select %p37, 0, %s36
      %s40 = sadd.s32 %s39, 1
      %p43 = scmp.eq.s32.totalorder %s19, 1
      %p44 = scmp.ne.s32.totalorder %s39, %s41
      %p45 = scmp.eq.s32.totalorder %s19, 0
      %p46 = por %p44, %p45
      %p47 = scmp.ne.s32.totalorder %s39, %s41
      %p48 = scmp.eq.s32.totalorder %s24, 1
      %p49 = por %p47, %p48
      %p50 = scmp.ne.s32.totalorder %s41, %s42
      %p51 = scmp.eq.s32.totalorder %s24, 0
      %p52 = por %p50, %p51
      %p53 = scmp.ne.s32.totalorder %s41, %s42
      %p54 = scmp.eq.s32.totalorder %s25, 1
      %p55 = por %p53, %p54
      %p57 = scmp.ne.s32.totalorder %s42, %s56
      %p58 = scmp.eq.s32.totalorder %s25, 0
      %p59 = por %p57, %p58
      %s60 = ssub.s32 %s26, %s38
      %p61 = scmp.eq.s32.totalorder %s60, 0
      %s63 = sadd.s32 %s62, 1
      %s64 = scalar_select %p61, %s62, %s63
      %p67 = pneg %p61
      %p68 = scmp.eq.s32.totalorder %s19, 1
      %p69 = por %p67, %p68
      %p70 = scmp.ne.s32.totalorder %s62, %s65
      %p71 = scmp.eq.s32.totalorder %s19, 0
      %p72 = por %p70, %p71
      %p73 = scmp.ne.s32.totalorder %s62, %s65
      %p74 = scmp.eq.s32.totalorder %s24, 1
      %p75 = por %p73, %p74
      %p76 = scmp.ne.s32.totalorder %s65, %s66
      %p77 = scmp.eq.s32.totalorder %s24, 0
      %p78 = por %p76, %p77
      %p79 = scmp.ne.s32.totalorder %s65, %s66
      %p80 = scmp.eq.s32.totalorder %s25, 1
      %p81 = por %p79, %p80
      %p83 = scmp.ne.s32.totalorder %s66, %s82
      %p84 = scmp.eq.s32.totalorder %s25, 0
      %p85 = por %p83, %p84
      %s87 = sadd.s32 %s86, 1
      %p90 = scmp.eq.s32.totalorder %s19, 1
      %p91 = scmp.ne.s32.totalorder %s86, %s88
      %p92 = scmp.eq.s32.totalorder %s19, 0
      %p93 = por %p91, %p92
      %p94 = scmp.ne.s32.totalorder %s86, %s88
      %p95 = scmp.eq.s32.totalorder %s24, 1
      %p96 = por %p94, %p95
      %p97 = scmp.ne.s32.totalorder %s88, %s89
      %p98 = scmp.eq.s32.totalorder %s24, 0
      %p99 = por %p97, %p98
      %p100 = scmp.ne.s32.totalorder %s88, %s89
      %p101 = scmp.eq.s32.totalorder %s25, 1
      %p102 = por %p100, %p101
      %p104 = scmp.ne.s32.totalorder %s89, %s103
      %p105 = scmp.eq.s32.totalorder %s25, 0
      %p106 = por %p104, %p105
      %s108 = sadd.s32 %s107, 1
      %p111 = scmp.eq.s32.totalorder %s19, 1
      %p112 = scmp.ne.s32.totalorder %s107, %s109
      %p113 = scmp.eq.s32.totalorder %s19, 0
      %p114 = por %p112, %p113
      %p115 = scmp.ne.s32.totalorder %s107, %s109
      %p116 = scmp.eq.s32.totalorder %s24, 1
      %p117 = por %p115, %p116
      %p118 = scmp.ne.s32.totalorder %s109, %s110
      %p119 = scmp.eq.s32.totalorder %s24, 0
      %p120 = por %p118, %p119
      %p121 = scmp.ne.s32.totalorder %s109, %s110
      %p122 = scmp.eq.s32.totalorder %s25, 1
      %p123 = por %p121, %p122
      %p125 = scmp.ne.s32.totalorder %s110, %s124
      %p126 = scmp.eq.s32.totalorder %s25, 0
      %p127 = por %p125, %p126
      %s128 = sadd.s32 %s26, %s27
      %s129 = sadd.s32 %s38, %s34
      %s130 = ssub.s32 %s128, %s129
      %p131 = scmp.eq.s32.totalorder %s130, 0
      %s133 = sadd.s32 %s132, 1
      %s134 = scalar_select %p131, %s132, %s133
      %p137 = pneg %p131
      %p138 = scmp.eq.s32.totalorder %s19, 1
      %p139 = por %p137, %p138
      %p140 = scmp.ne.s32.totalorder %s132, %s135
      %p141 = scmp.eq.s32.totalorder %s19, 0
      %p142 = por %p140, %p141
      %p143 = scmp.ne.s32.totalorder %s132, %s135
      %p144 = scmp.eq.s32.totalorder %s24, 1
      %p145 = por %p143, %p144
      %p146 = scmp.ne.s32.totalorder %s135, %s136
      %p147 = scmp.eq.s32.totalorder %s24, 0
      %p148 = por %p146, %p147
      %p149 = scmp.ne.s32.totalorder %s135, %s136
      %p150 = scmp.eq.s32.totalorder %s25, 1
      %p151 = por %p149, %p150
      %p153 = scmp.ne.s32.totalorder %s136, %s152
      %p154 = scmp.eq.s32.totalorder %s25, 0
      %p155 = por %p153, %p154
      %s156 = sadd.s32 %s26, %s27
      %s157 = sadd.s32 %s38, %s34
      %s158 = ssub.s32 %s156, %s157
      %p159 = scmp.eq.s32.totalorder %s158, 0
      %s161 = sadd.s32 %s160, 1
      %s162 = scalar_select %p159, %s160, %s161
      %p165 = pneg %p159
      %p166 = scmp.eq.s32.totalorder %s19, 1
      %p167 = por %p165, %p166
      %p168 = scmp.ne.s32.totalorder %s160, %s163
      %p169 = scmp.eq.s32.totalorder %s19, 0
      %p170 = por %p168, %p169
      %p171 = scmp.ne.s32.totalorder %s160, %s163
      %p172 = scmp.eq.s32.totalorder %s24, 1
      %p173 = por %p171, %p172
      %p174 = scmp.ne.s32.totalorder %s163, %s164
      %p175 = scmp.eq.s32.totalorder %s24, 0
      %p176 = por %p174, %p175
      %p177 = scmp.ne.s32.totalorder %s163, %s164
      %p178 = scmp.eq.s32.totalorder %s25, 1
      %p179 = por %p177, %p178
      %p181 = scmp.ne.s32.totalorder %s164, %s180
      %p182 = scmp.eq.s32.totalorder %s25, 0
      %p183 = por %p181, %p182
      %p184 = scmp.le.s32.totalorder 1, %s19
      %p185 = scmp.lt.s32.totalorder %s19, 3
      %p186 = pnand %p184, %p185
      %p187 = pneg %p186
      // Predicated region
      $region9: #{tpu_custom_call.1} parent=5 // pred_check
        _
      $region10: #{tpu_custom_call.1} parent=5 // pred_check_branch
        %189 = sbr.rel (%p186) target = $region12
      $region11: #{tpu_custom_call.1} parent=5 // pred_region
        %s190 = ssub.s32 %s19, 1
        // Predicated region
        $region13: #{tpu_custom_call.1} parent=11 // pred_check
          %p191 = pneg %p52
        $region14: #{tpu_custom_call.1} parent=11 // pred_check_branch
          %193 = sbr.rel (%p191) target = $region16
        $region15: #{tpu_custom_call.1} parent=11 // pred_region
          _
        $region16: #{tpu_custom_call.1} parent=11 // pred_fallthru
          _
        // Predicated region
        $region17: #{tpu_custom_call.1} parent=11 // pred_check
          %p194 = pneg %p99
        $region18: #{tpu_custom_call.1} parent=11 // pred_check_branch
          %196 = sbr.rel (%p194) target = $region20
        $region19: #{tpu_custom_call.1} parent=11 // pred_region
          _
        $region20: #{tpu_custom_call.1} parent=11 // pred_fallthru
          _
        // Predicated region
        $region21: #{tpu_custom_call.1} parent=11 // pred_check
          %p197 = pneg %p120
        $region22: #{tpu_custom_call.1} parent=11 // pred_check_branch
          %199 = sbr.rel (%p197) target = $region24
        $region23: #{tpu_custom_call.1} parent=11 // pred_region
          _
        $region24: #{tpu_custom_call.1} parent=11 // pred_fallthru
          _
      $region12: #{tpu_custom_call.1} parent=5 // pred_fallthru
        _
      %p200 = scmp.lt.s32.totalorder %s19, 2
      // Predicated region
      $region25: #{tpu_custom_call.1} parent=5 // pred_check
        %p201 = pneg %p200
      $region26: #{tpu_custom_call.1} parent=5 // pred_check_branch
        %203 = sbr.rel (%p201) target = $region28
      $region27: #{tpu_custom_call.1} parent=5 // pred_region
        // Predicated region
        $region29: #{tpu_custom_call.1} parent=27 // pred_check
          %p204 = pneg %p72
        $region30: #{tpu_custom_call.1} parent=27 // pred_check_branch
          %206 = sbr.rel (%p204) target = $region32
        $region31: #{tpu_custom_call.1} parent=27 // pred_region
          %p207 = scmp.lt.s32.totalorder %s26, 1
          %s208 = scalar_select %p207, %s26, 1
          %s209 = smul.addr %s208, 54
          %s210 = smul.addr %s209, 4
          %s211 = scalar_lea.vmem %s1, %s210
        $region32: #{tpu_custom_call.1} parent=27 // pred_fallthru
          _
      $region28: #{tpu_custom_call.1} parent=5 // pred_fallthru
        _
      %p212 = scmp.le.s32.totalorder 1, %s19
      %p213 = scmp.lt.s32.totalorder %s19, 3
      %p214 = pnand %p212, %p213
      %p215 = pneg %p214
      // Predicated region
      $region33: #{tpu_custom_call.1} parent=5 // pred_check
        _
      $region34: #{tpu_custom_call.1} parent=5 // pred_check_branch
        %217 = sbr.rel (%p214) target = $region36
      $region35: #{tpu_custom_call.1} parent=5 // pred_region
        %s218 = ssub.s32 %s19, 1
        %p219 = pneg %p52
        %p220 = pneg %p49
        %p221 = scmp.lt.s32.totalorder %s28, 1
        %s222 = scalar_select %p221, %s28, 1
        %s223 = smul.addr %s222, 54
        %s224 = smul.addr %s223, 4
        %s225 = scalar_lea.vmem %s1, %s224
        %p226 = pneg %p78
        %p227 = pneg %p75
        %p228 = pneg %p99
        %p229 = pneg %p96
        %p230 = pneg %p120
        %p231 = pneg %p117
        %p232 = pneg %p148
        %p233 = pneg %p145
        %s234 = sand.u32 %s135, 1
        %s235 = scalar_lea.sflag [#allocation4], %s234
        %s236 = sand.u32 %s135, 1
        %s237 = smul.addr %s236, 128
        %s238 = scalar_lea.vmem [#allocation3], %s237
        %p239 = pneg %p176
        %p240 = pneg %p173
        %s241 = sand.u32 %s163, 1
        %s242 = scalar_lea.sflag [#allocation6], %s241
        %s243 = sand.u32 %s163, 1
        %s244 = smul.addr %s243, 2
        %s245 = scalar_lea.vmem [#allocation5], %s244
        %p246 = scmp.lt.s32.totalorder %s28, 1
        %s247 = scalar_select %p246, %s28, 1
        %s248 = smul.addr %s247, 54
        %s249 = smul.addr %s248, 4
        %s250 = scalar_lea.vmem %s1, %s249
        %s251 = sadd.s32 %s28, %s29
        %s252 = smul.u32 32, %s251
        %s253 = sadd.s32 %s28, %s29
        %s256 = smul.u32 %s29, 16
        %s257 = smul.u32 %s256, 3
        %s258 = smul.addr %s257, 4
        %s259 = scalar_lea.vmem %s250, %s258
        %v260 = vld [vmem:[%s259] sm:$0xf]
        %v261 = vld [vmem:[%s259 + $0x4] sm:$0xf]
        %v262 = vld [vmem:[%s259 + $0xc] sm:$0xf]
        %v263 = vld [vmem:[%s259 + $0x10] sm:$0xf]
        %v264 = vld [vmem:[%s259 + $0x18] sm:$0xf]
        %v265 = vld [vmem:[%s259 + $0x1c] sm:$0xf]
        %v266 = vld [vmem:[%s259 + $0x24] sm:$0xf]
        %v267 = vld [vmem:[%s259 + $0x28] sm:$0xf]
        %v268 = vld [vmem:[%s259 + $0x30] sm:$0xf]
        %v269 = vld [vmem:[%s259 + $0x34] sm:$0xf]
        %v270 = vld [vmem:[%s259 + $0x3c] sm:$0xf]
        %v271 = vld [vmem:[%s259 + $0x40] sm:$0xf]
        %v272 = vld [vmem:[%s259 + $0x48] sm:$0xf]
        %v273 = vld [vmem:[%s259 + $0x4c] sm:$0xf]
        %v274 = vld [vmem:[%s259 + $0x54] sm:$0xf]
        %v275 = vld [vmem:[%s259 + $0x58] sm:$0xf]
        %v276 = vld [vmem:[%s259 + $0x60] sm:$0xf]
        %v277 = vld [vmem:[%s259 + $0x64] sm:$0xf]
        %v278 = vld [vmem:[%s259 + $0x6c] sm:$0xf]
        %v279 = vld [vmem:[%s259 + $0x70] sm:$0xf]
        %v280 = vld [vmem:[%s259 + $0x78] sm:$0xf]
        %v281 = vld [vmem:[%s259 + $0x7c] sm:$0xf]
        %v282 = vld [vmem:[%s259 + $0x84] sm:$0xf]
        %v283 = vld [vmem:[%s259 + $0x88] sm:$0xf]
        %v284 = vld [vmem:[%s259 + $0x90] sm:$0xf]
        %v285 = vld [vmem:[%s259 + $0x94] sm:$0xf]
        %v286 = vld [vmem:[%s259 + $0x9c] sm:$0xf]
        %v287 = vld [vmem:[%s259 + $0xa0] sm:$0xf]
        %v288 = vld [vmem:[%s259 + $0xa8] sm:$0xf]
        %v289 = vld [vmem:[%s259 + $0xac] sm:$0xf]
        %v290 = vld [vmem:[%s259 + $0xb4] sm:$0xf]
        %v291 = vld [vmem:[%s259 + $0xb8] sm:$0xf]
        %v292 = vld [vmem:[%s2] sm:$0xf]
        %v293 = vld [vmem:[%s259 + $0x8] sm:$0x1]
        %v294 = vld [vmem:[%s259 + $0x14] sm:$0x1]
        %v295 = vld [vmem:[%s259 + $0x20] sm:$0x1]
        %v296 = vld [vmem:[%s259 + $0x2c] sm:$0x1]
        %v297 = vld [vmem:[%s259 + $0x38] sm:$0x1]
        %v298 = vld [vmem:[%s259 + $0x44] sm:$0x1]
        %v299 = vld [vmem:[%s259 + $0x50] sm:$0x1]
        %v300 = vld [vmem:[%s259 + $0x5c] sm:$0x1]
        %v301 = vld [vmem:[%s259 + $0x68] sm:$0x1]
        %v302 = vld [vmem:[%s259 + $0x74] sm:$0x1]
        %v303 = vld [vmem:[%s259 + $0x80] sm:$0x1]
        %v304 = vld [vmem:[%s259 + $0x8c] sm:$0x1]
        %v305 = vld [vmem:[%s259 + $0x98] sm:$0x1]
        %v306 = vld [vmem:[%s259 + $0xa4] sm:$0x1]
        %v307 = vld [vmem:[%s259 + $0xb0] sm:$0x1]
        %v308 = vld [vmem:[%s259 + $0xbc] sm:$0x1]
        %vm309 = vsmask.f32 3328
        %vm310 = vsmask.f32 7440
        %vm311 = vmor %vm309, %vm310
        %v313 = vshrl.u32 %v260, 16
        %v315 = vrot.slane %v313, 4
        %v316 = vshll.u32 %v260, 16
        %v318 = vrot.slane %v316, 5
        %v319 = vor.u32 %v315, %v318
        %v320 = vrot.slane %v319, 4
        %v322 = vshll.u32 %v261, 16
        %v324 = vrot.slane %v322, 5
        %v325 = vsel %vm311, %v320, %v324
        %v326 = vshrl.u32 %v261, 16
        %v328 = vrot.slane %v326, 4
        %v329 = vor.u32 %v328, %v324
        %v330 = vrot.slane %v329, 4
        %v332 = vshll.u32 %v293, 16
        %v334 = vrot.slane %v332, 5
        %v335 = vsel %vm311, %v330, %v334
        %v337 = vshrl.u32 %v262, 16
        %v339 = vrot.slane %v337, 4
        %v340 = vshll.u32 %v262, 16
        %v342 = vrot.slane %v340, 5
        %v343 = vor.u32 %v339, %v342
        %v344 = vrot.slane %v343, 4
        %v346 = vshll.u32 %v263, 16
        %v348 = vrot.slane %v346, 5
        %v349 = vsel %vm311, %v344, %v348
        %v350 = vshrl.u32 %v263, 16
        %v352 = vrot.slane %v350, 4
        %v353 = vor.u32 %v352, %v348
        %v354 = vrot.slane %v353, 4
        %v356 = vshll.u32 %v294, 16
        %v358 = vrot.slane %v356, 5
        %v359 = vsel %vm311, %v354, %v358
        %v361 = vshrl.u32 %v264, 16
        %v363 = vrot.slane %v361, 4
        %v364 = vshll.u32 %v264, 16
        %v366 = vrot.slane %v364, 5
        %v367 = vor.u32 %v363, %v366
        %v368 = vrot.slane %v367, 4
        %v370 = vshll.u32 %v265, 16
        %v372 = vrot.slane %v370, 5
        %v373 = vsel %vm311, %v368, %v372
        %v374 = vshrl.u32 %v265, 16
        %v376 = vrot.slane %v374, 4
        %v377 = vor.u32 %v376, %v372
        %v378 = vrot.slane %v377, 4
        %v380 = vshll.u32 %v295, 16
        %v382 = vrot.slane %v380, 5
        %v383 = vsel %vm311, %v378, %v382
        %v385 = vshrl.u32 %v266, 16
        %v387 = vrot.slane %v385, 4
        %v388 = vshll.u32 %v266, 16
        %v390 = vrot.slane %v388, 5
        %v391 = vor.u32 %v387, %v390
        %v392 = vrot.slane %v391, 4
        %v394 = vshll.u32 %v267, 16
        %v396 = vrot.slane %v394, 5
        %v397 = vsel %vm311, %v392, %v396
        %v398 = vshrl.u32 %v267, 16
        %v400 = vrot.slane %v398, 4
        %v401 = vor.u32 %v400, %v396
        %v402 = vrot.slane %v401, 4
        %v404 = vshll.u32 %v296, 16
        %v406 = vrot.slane %v404, 5
        %v407 = vsel %vm311, %v402, %v406
        %v409 = vshrl.u32 %v268, 16
        %v411 = vrot.slane %v409, 4
        %v412 = vshll.u32 %v268, 16
        %v414 = vrot.slane %v412, 5
        %v415 = vor.u32 %v411, %v414
        %v416 = vrot.slane %v415, 4
        %v418 = vshll.u32 %v269, 16
        %v420 = vrot.slane %v418, 5
        %v421 = vsel %vm311, %v416, %v420
        %v422 = vshrl.u32 %v269, 16
        %v424 = vrot.slane %v422, 4
        %v425 = vor.u32 %v424, %v420
        %v426 = vrot.slane %v425, 4
        %v428 = vshll.u32 %v297, 16
        %v430 = vrot.slane %v428, 5
        %v431 = vsel %vm311, %v426, %v430
        %v433 = vshrl.u32 %v270, 16
        %v435 = vrot.slane %v433, 4
        %v436 = vshll.u32 %v270, 16
        %v438 = vrot.slane %v436, 5
        %v439 = vor.u32 %v435, %v438
        %v440 = vrot.slane %v439, 4
        %v442 = vshll.u32 %v271, 16
        %v444 = vrot.slane %v442, 5
        %v445 = vsel %vm311, %v440, %v444
        %v446 = vshrl.u32 %v271, 16
        %v448 = vrot.slane %v446, 4
        %v449 = vor.u32 %v448, %v444
        %v450 = vrot.slane %v449, 4
        %v452 = vshll.u32 %v298, 16
        %v454 = vrot.slane %v452, 5
        %v455 = vsel %vm311, %v450, %v454
        %v457 = vshrl.u32 %v272, 16
        %v459 = vrot.slane %v457, 4
        %v460 = vshll.u32 %v272, 16
        %v462 = vrot.slane %v460, 5
        %v463 = vor.u32 %v459, %v462
        %v464 = vrot.slane %v463, 4
        %v466 = vshll.u32 %v273, 16
        %v468 = vrot.slane %v466, 5
        %v469 = vsel %vm311, %v464, %v468
        %v470 = vshrl.u32 %v273, 16
        %v472 = vrot.slane %v470, 4
        %v473 = vor.u32 %v472, %v468
        %v474 = vrot.slane %v473, 4
        %v476 = vshll.u32 %v299, 16
        %v478 = vrot.slane %v476, 5
        %v479 = vsel %vm311, %v474, %v478
        %v481 = vshrl.u32 %v274, 16
        %v483 = vrot.slane %v481, 4
        %v484 = vshll.u32 %v274, 16
        %v486 = vrot.slane %v484, 5
        %v487 = vor.u32 %v483, %v486
        %v488 = vrot.slane %v487, 4
        %v490 = vshll.u32 %v275, 16
        %v492 = vrot.slane %v490, 5
        %v493 = vsel %vm311, %v488, %v492
        %v494 = vshrl.u32 %v275, 16
        %v496 = vrot.slane %v494, 4
        %v497 = vor.u32 %v496, %v492
        %v498 = vrot.slane %v497, 4
        %v500 = vshll.u32 %v300, 16
        %v502 = vrot.slane %v500, 5
        %v503 = vsel %vm311, %v498, %v502
        %v505 = vshrl.u32 %v276, 16
        %v507 = vrot.slane %v505, 4
        %v508 = vshll.u32 %v276, 16
        %v510 = vrot.slane %v508, 5
        %v511 = vor.u32 %v507, %v510
        %v512 = vrot.slane %v511, 4
        %v514 = vshll.u32 %v277, 16
        %v516 = vrot.slane %v514, 5
        %v517 = vsel %vm311, %v512, %v516
        %v518 = vshrl.u32 %v277, 16
        %v520 = vrot.slane %v518, 4
        %v521 = vor.u32 %v520, %v516
        %v522 = vrot.slane %v521, 4
        %v524 = vshll.u32 %v301, 16
        %v526 = vrot.slane %v524, 5
        %v527 = vsel %vm311, %v522, %v526
        %v529 = vshrl.u32 %v278, 16
        %v531 = vrot.slane %v529, 4
        %v532 = vshll.u32 %v278, 16
        %v534 = vrot.slane %v532, 5
        %v535 = vor.u32 %v531, %v534
        %v536 = vrot.slane %v535, 4
        %v538 = vshll.u32 %v279, 16
        %v540 = vrot.slane %v538, 5
        %v541 = vsel %vm311, %v536, %v540
        %v542 = vshrl.u32 %v279, 16
        %v544 = vrot.slane %v542, 4
        %v545 = vor.u32 %v544, %v540
        %v546 = vrot.slane %v545, 4
        %v548 = vshll.u32 %v302, 16
        %v550 = vrot.slane %v548, 5
        %v551 = vsel %vm311, %v546, %v550
        %v553 = vshrl.u32 %v280, 16
        %v555 = vrot.slane %v553, 4
        %v556 = vshll.u32 %v280, 16
        %v558 = vrot.slane %v556, 5
        %v559 = vor.u32 %v555, %v558
        %v560 = vrot.slane %v559, 4
        %v562 = vshll.u32 %v281, 16
        %v564 = vrot.slane %v562, 5
        %v565 = vsel %vm311, %v560, %v564
        %v566 = vshrl.u32 %v281, 16
        %v568 = vrot.slane %v566, 4
        %v569 = vor.u32 %v568, %v564
        %v570 = vrot.slane %v569, 4
        %v572 = vshll.u32 %v303, 16
        %v574 = vrot.slane %v572, 5
        %v575 = vsel %vm311, %v570, %v574
        %v577 = vshrl.u32 %v282, 16
        %v579 = vrot.slane %v577, 4
        %v580 = vshll.u32 %v282, 16
        %v582 = vrot.slane %v580, 5
        %v583 = vor.u32 %v579, %v582
        %v584 = vrot.slane %v583, 4
        %v586 = vshll.u32 %v283, 16
        %v588 = vrot.slane %v586, 5
        %v589 = vsel %vm311, %v584, %v588
        %v590 = vshrl.u32 %v283, 16
        %v592 = vrot.slane %v590, 4
        %v593 = vor.u32 %v592, %v588
        %v594 = vrot.slane %v593, 4
        %v596 = vshll.u32 %v304, 16
        %v598 = vrot.slane %v596, 5
        %v599 = vsel %vm311, %v594, %v598
        %v601 = vshrl.u32 %v284, 16
        %v603 = vrot.slane %v601, 4
        %v604 = vshll.u32 %v284, 16
        %v606 = vrot.slane %v604, 5
        %v607 = vor.u32 %v603, %v606
        %v608 = vrot.slane %v607, 4
        %v610 = vshll.u32 %v285, 16
        %v612 = vrot.slane %v610, 5
        %v613 = vsel %vm311, %v608, %v612
        %v614 = vshrl.u32 %v285, 16
        %v616 = vrot.slane %v614, 4
        %v617 = vor.u32 %v616, %v612
        %v618 = vrot.slane %v617, 4
        %v620 = vshll.u32 %v305, 16
        %v622 = vrot.slane %v620, 5
        %v623 = vsel %vm311, %v618, %v622
        %v625 = vshrl.u32 %v286, 16
        %v627 = vrot.slane %v625, 4
        %v628 = vshll.u32 %v286, 16
        %v630 = vrot.slane %v628, 5
        %v631 = vor.u32 %v627, %v630
        %v632 = vrot.slane %v631, 4
        %v634 = vshll.u32 %v287, 16
        %v636 = vrot.slane %v634, 5
        %v637 = vsel %vm311, %v632, %v636
        %v638 = vshrl.u32 %v287, 16
        %v640 = vrot.slane %v638, 4
        %v641 = vor.u32 %v640, %v636
        %v642 = vrot.slane %v641, 4
        %v644 = vshll.u32 %v306, 16
        %v646 = vrot.slane %v644, 5
        %v647 = vsel %vm311, %v642, %v646
        %v649 = vshrl.u32 %v288, 16
        %v651 = vrot.slane %v649, 4
        %v652 = vshll.u32 %v288, 16
        %v654 = vrot.slane %v652, 5
        %v655 = vor.u32 %v651, %v654
        %v656 = vrot.slane %v655, 4
        %v658 = vshll.u32 %v289, 16
        %v660 = vrot.slane %v658, 5
        %v661 = vsel %vm311, %v656, %v660
        %v662 = vshrl.u32 %v289, 16
        %v664 = vrot.slane %v662, 4
        %v665 = vor.u32 %v664, %v660
        %v666 = vrot.slane %v665, 4
        %v668 = vshll.u32 %v307, 16
        %v670 = vrot.slane %v668, 5
        %v671 = vsel %vm311, %v666, %v670
        %v673 = vshrl.u32 %v290, 16
        %v675 = vrot.slane %v673, 4
        %v676 = vshll.u32 %v290, 16
        %v678 = vrot.slane %v676, 5
        %v679 = vor.u32 %v675, %v678
        %v680 = vrot.slane %v679, 4
        %v682 = vshll.u32 %v291, 16
        %v684 = vrot.slane %v682, 5
        %v685 = vsel %vm311, %v680, %v684
        %v686 = vshrl.u32 %v291, 16
        %v688 = vrot.slane %v686, 4
        %v689 = vor.u32 %v688, %v684
        %v690 = vrot.slane %v689, 4
        %v692 = vshll.u32 %v308, 16
        %v694 = vrot.slane %v692, 5
        %v695 = vsel %vm311, %v690, %v694
        %s696 = scalar_lea.vmem %s2, 4
        %v697 = vld [vmem:[%s696] sm:$0xf]
        %v698 = vunpack.c.l.b16 %v325
        %v699 = vunpack.c.l.b16 %v335
        %v700 = vunpack.c.l.b16 %v349
        %v701 = vunpack.c.l.b16 %v359
        %v702 = vunpack.c.l.b16 %v373
        %v703 = vunpack.c.l.b16 %v383
        %v704 = vunpack.c.l.b16 %v397
        %v705 = vunpack.c.l.b16 %v407
        %v706 = vunpack.c.l.b16 %v421
        %v707 = vunpack.c.l.b16 %v431
        %v708 = vunpack.c.l.b16 %v445
        %v709 = vunpack.c.l.b16 %v455
        %v710 = vunpack.c.l.b16 %v469
        %v711 = vunpack.c.l.b16 %v479
        %v712 = vunpack.c.l.b16 %v493
        %v713 = vunpack.c.l.b16 %v503
        %v714 = vunpack.c.l.b16 %v517
        %v715 = vunpack.c.l.b16 %v527
        %v716 = vunpack.c.l.b16 %v541
        %v717 = vunpack.c.l.b16 %v551
        %v718 = vunpack.c.l.b16 %v565
        %v719 = vunpack.c.l.b16 %v575
        %v720 = vunpack.c.l.b16 %v589
        %v721 = vunpack.c.l.b16 %v599
        %v722 = vunpack.c.l.b16 %v613
        %v723 = vunpack.c.l.b16 %v623
        %v724 = vunpack.c.l.b16 %v637
        %v725 = vunpack.c.l.b16 %v647
        %v726 = vunpack.c.l.b16 %v661
        %v727 = vunpack.c.l.b16 %v671
        %v728 = vunpack.c.l.b16 %v685
        %v729 = vunpack.c.l.b16 %v695
        %v730 = vpack.c.b16 %v699, %v698
        %v731 = vpack.c.b16 %v701, %v700
        %v732 = vpack.c.b16 %v703, %v702
        %v733 = vpack.c.b16 %v705, %v704
        %v734 = vpack.c.b16 %v707, %v706
        %v735 = vpack.c.b16 %v709, %v708
        %v736 = vpack.c.b16 %v711, %v710
        %v737 = vpack.c.b16 %v713, %v712
        %v738 = vpack.c.b16 %v715, %v714
        %v739 = vpack.c.b16 %v717, %v716
        %v740 = vpack.c.b16 %v719, %v718
        %v741 = vpack.c.b16 %v721, %v720
        %v742 = vpack.c.b16 %v723, %v722
        %v743 = vpack.c.b16 %v725, %v724
        %v744 = vpack.c.b16 %v727, %v726
        %v745 = vpack.c.b16 %v729, %v728
        %v748 = vunpack.c.l.s4 1983009808
        %v749 = vunpack.c.0.s8 %v748
        %v750 = vlaneseq
        %v751 = vshrl.u32 %v750, 7
        %v752 = vsub.s32 %v749, %v751
        %v753 = vrot.slane %v697, %v752
        %v754 = vcombine.high %v753, %v753
        %vm755 = vcmask 31744
        %v757 = vsel %vm755, %v730, 0
        %v760 = vsel %vm755, %v731, 0
        %v763 = vsel %vm755, %v732, 0
        %v766 = vsel %vm755, %v733, 0
        %v769 = vsel %vm755, %v734, 0
        %v772 = vsel %vm755, %v735, 0
        %v775 = vsel %vm755, %v736, 0
        %v778 = vsel %vm755, %v737, 0
        %v781 = vsel %vm755, %v738, 0
        %v784 = vsel %vm755, %v739, 0
        %v787 = vsel %vm755, %v740, 0
        %v790 = vsel %vm755, %v741, 0
        %v793 = vsel %vm755, %v742, 0
        %v796 = vsel %vm755, %v743, 0
        %v799 = vsel %vm755, %v744, 0
        %v802 = vsel %vm755, %v745, 0
        %vm804 = vcmask 1041408
        %v806 = vsel %vm804, %v753, 0
        %v809 = vsel %vm804, %v754, 0
        %811 = vmatprep.subr.bf16.mxu0 0
        %812 = vmatpush1.bf16.msra.mxu0 0
        %813 = vmatprep.subr.bf16.mxu0 0
        %814 = vmatpush1.bf16.msra.mxu0 0
        %815 = vmatprep.subr.bf16.mxu0 0
        %816 = vmatpush1.bf16.msra.mxu0 0
        %817 = vmatprep.subr.bf16.mxu0 0
        %818 = vmatpush1.bf16.msra.mxu0 0
        %819 = vmatprep.subr.bf16.mxu0 0
        %820 = vmatpush1.bf16.msra.mxu0 0
        %821 = vmatprep.subr.bf16.mxu0 0
        %822 = vmatpush1.bf16.msra.mxu0 0
        %823 = vmatprep.subr.bf16.mxu0 0
        %824 = vmatpush1.bf16.msra.mxu0 0
        %825 = vmatprep.subr.bf16.mxu0 %v809
        %826 = vmatpush1.bf16.msra.mxu0 %v806
        %827 = vmatprep.subr.bf16.mxu0 0
        %828 = vmatpush2.bf16.msra.mxu0 0
        %829 = vmatprep.subr.bf16.mxu0 0
        %830 = vmatpush2.bf16.msra.mxu0 0
        %831 = vmatprep.subr.bf16.mxu0 0
        %832 = vmatpush2.bf16.msra.mxu0 0
        %833 = vmatprep.subr.bf16.mxu0 0
        %834 = vmatpush2.bf16.msra.mxu0 0
        %835 = vmatprep.subr.bf16.mxu0 0
        %836 = vmatpush2.bf16.msra.mxu0 0
        %837 = vmatprep.subr.bf16.mxu0 0
        %838 = vmatpush2.bf16.msra.mxu0 0
        %839 = vmatprep.subr.bf16.mxu0 0
        %840 = vmatpush2.bf16.msra.mxu0 0
        %841 = vmatprep.subr.bf16.mxu0 0
        %842 = vmatpush2.bf16.msra.mxu0 0
        %843 = vmatprep.mubr.bf16.mxu0 0
        %844 = vmatmul.mubr.bf16.gmra.mxu0 %v757
        %v845 = vpop.f32.mrf.mxu0
        %v846 = vadd.f32 0.0, %v845
        %v847 = vpop.f32.mrf.mxu0
        %v848 = vadd.f32 0.0, %v847
        %v849 = vpop.f32.mrf.mxu0
        %v850 = vadd.f32 0.0, %v849
        %v851 = vpop.f32.mrf.mxu0
        %v852 = vadd.f32 0.0, %v851
        %853 = vmatprep.mubr.bf16.mxu0 0
        %854 = vmatmul.mubr.bf16.gmra.mxu0 %v760
        %v855 = vpop.f32.mrf.mxu0
        %v856 = vadd.f32 0.0, %v855
        %v857 = vpop.f32.mrf.mxu0
        %v858 = vadd.f32 0.0, %v857
        %v859 = vpop.f32.mrf.mxu0
        %v860 = vadd.f32 0.0, %v859
        %v861 = vpop.f32.mrf.mxu0
        %v862 = vadd.f32 0.0, %v861
        %863 = vmatprep.mubr.bf16.mxu0 0
        %864 = vmatmul.mubr.bf16.gmra.mxu0 %v763
        %v865 = vpop.f32.mrf.mxu0
        %v866 = vadd.f32 0.0, %v865
        %v867 = vpop.f32.mrf.mxu0
        %v868 = vadd.f32 0.0, %v867
        %v869 = vpop.f32.mrf.mxu0
        %v870 = vadd.f32 0.0, %v869
        %v871 = vpop.f32.mrf.mxu0
        %v872 = vadd.f32 0.0, %v871
        %873 = vmatprep.mubr.bf16.mxu0 0
        %874 = vmatmul.mubr.bf16.gmra.mxu0 %v766
        %v875 = vpop.f32.mrf.mxu0
        %v876 = vadd.f32 0.0, %v875
        %v877 = vpop.f32.mrf.mxu0
        %v878 = vadd.f32 0.0, %v877
        %v879 = vpop.f32.mrf.mxu0
        %v880 = vadd.f32 0.0, %v879
        %v881 = vpop.f32.mrf.mxu0
        %v882 = vadd.f32 0.0, %v881
        %883 = vmatprep.mubr.bf16.mxu0 0
        %884 = vmatmul.mubr.bf16.gmra.mxu0 %v769
        %v885 = vpop.f32.mrf.mxu0
        %v886 = vadd.f32 0.0, %v885
        %v887 = vpop.f32.mrf.mxu0
        %v888 = vadd.f32 0.0, %v887
        %v889 = vpop.f32.mrf.mxu0
        %v890 = vadd.f32 0.0, %v889
        %v891 = vpop.f32.mrf.mxu0
        %v892 = vadd.f32 0.0, %v891
        %893 = vmatprep.mubr.bf16.mxu0 0
        %894 = vmatmul.mubr.bf16.gmra.mxu0 %v772
        %v895 = vpop.f32.mrf.mxu0
        %v896 = vadd.f32 0.0, %v895
        %v897 = vpop.f32.mrf.mxu0
        %v898 = vadd.f32 0.0, %v897
        %v899 = vpop.f32.mrf.mxu0
        %v900 = vadd.f32 0.0, %v899
        %v901 = vpop.f32.mrf.mxu0
        %v902 = vadd.f32 0.0, %v901
        %903 = vmatprep.mubr.bf16.mxu0 0
        %904 = vmatmul.mubr.bf16.gmra.mxu0 %v775
        %v905 = vpop.f32.mrf.mxu0
        %v906 = vadd.f32 0.0, %v905
        %v907 = vpop.f32.mrf.mxu0
        %v908 = vadd.f32 0.0, %v907
        %v909 = vpop.f32.mrf.mxu0
        %v910 = vadd.f32 0.0, %v909
        %v911 = vpop.f32.mrf.mxu0
        %v912 = vadd.f32 0.0, %v911
        %913 = vmatprep.mubr.bf16.mxu0 0
        %914 = vmatmul.mubr.bf16.gmra.mxu0 %v778
        %v915 = vpop.f32.mrf.mxu0
        %v916 = vadd.f32 0.0, %v915
        %v917 = vpop.f32.mrf.mxu0
        %v918 = vadd.f32 0.0, %v917
        %v919 = vpop.f32.mrf.mxu0
        %v920 = vadd.f32 0.0, %v919
        %v921 = vpop.f32.mrf.mxu0
        %v922 = vadd.f32 0.0, %v921
        %923 = vmatprep.mubr.bf16.mxu0 0
        %924 = vmatmul.mubr.bf16.gmra.mxu0 %v781
        %v925 = vpop.f32.mrf.mxu0
        %v926 = vadd.f32 0.0, %v925
        %v927 = vpop.f32.mrf.mxu0
        %v928 = vadd.f32 0.0, %v927
        %v929 = vpop.f32.mrf.mxu0
        %v930 = vadd.f32 0.0, %v929
        %v931 = vpop.f32.mrf.mxu0
        %v932 = vadd.f32 0.0, %v931
        %933 = vmatprep.mubr.bf16.mxu0 0
        %934 = vmatmul.mubr.bf16.gmra.mxu0 %v784
        %v935 = vpop.f32.mrf.mxu0
        %v936 = vadd.f32 0.0, %v935
        %v937 = vpop.f32.mrf.mxu0
        %v938 = vadd.f32 0.0, %v937
        %v939 = vpop.f32.mrf.mxu0
        %v940 = vadd.f32 0.0, %v939
        %v941 = vpop.f32.mrf.mxu0
        %v942 = vadd.f32 0.0, %v941
        %943 = vmatprep.mubr.bf16.mxu0 0
        %944 = vmatmul.mubr.bf16.gmra.mxu0 %v787
        %v945 = vpop.f32.mrf.mxu0
        %v946 = vadd.f32 0.0, %v945
        %v947 = vpop.f32.mrf.mxu0
        %v948 = vadd.f32 0.0, %v947
        %v949 = vpop.f32.mrf.mxu0
        %v950 = vadd.f32 0.0, %v949
        %v951 = vpop.f32.mrf.mxu0
        %v952 = vadd.f32 0.0, %v951
        %953 = vmatprep.mubr.bf16.mxu0 0
        %954 = vmatmul.mubr.bf16.gmra.mxu0 %v790
        %v955 = vpop.f32.mrf.mxu0
        %v956 = vadd.f32 0.0, %v955
        %v957 = vpop.f32.mrf.mxu0
        %v958 = vadd.f32 0.0, %v957
        %v959 = vpop.f32.mrf.mxu0
        %v960 = vadd.f32 0.0, %v959
        %v961 = vpop.f32.mrf.mxu0
        %v962 = vadd.f32 0.0, %v961
        %963 = vmatprep.mubr.bf16.mxu0 0
        %964 = vmatmul.mubr.bf16.gmra.mxu0 %v793
        %v965 = vpop.f32.mrf.mxu0
        %v966 = vadd.f32 0.0, %v965
        %v967 = vpop.f32.mrf.mxu0
        %v968 = vadd.f32 0.0, %v967
        %v969 = vpop.f32.mrf.mxu0
        %v970 = vadd.f32 0.0, %v969
        %v971 = vpop.f32.mrf.mxu0
        %v972 = vadd.f32 0.0, %v971
        %973 = vmatprep.mubr.bf16.mxu0 0
        %974 = vmatmul.mubr.bf16.gmra.mxu0 %v796
        %v975 = vpop.f32.mrf.mxu0
        %v976 = vadd.f32 0.0, %v975
        %v977 = vpop.f32.mrf.mxu0
        %v978 = vadd.f32 0.0, %v977
        %v979 = vpop.f32.mrf.mxu0
        %v980 = vadd.f32 0.0, %v979
        %v981 = vpop.f32.mrf.mxu0
        %v982 = vadd.f32 0.0, %v981
        %983 = vmatprep.mubr.bf16.mxu0 0
        %984 = vmatmul.mubr.bf16.gmra.mxu0 %v799
        %v985 = vpop.f32.mrf.mxu0
        %v986 = vadd.f32 0.0, %v985
        %v987 = vpop.f32.mrf.mxu0
        %v988 = vadd.f32 0.0, %v987
        %v989 = vpop.f32.mrf.mxu0
        %v990 = vadd.f32 0.0, %v989
        %v991 = vpop.f32.mrf.mxu0
        %v992 = vadd.f32 0.0, %v991
        %993 = vmatprep.mubr.bf16.mxu0 0
        %994 = vmatmul.mubr.bf16.gmra.mxu0 %v802
        %v995 = vpop.f32.mrf.mxu0
        %v996 = vadd.f32 0.0, %v995
        %v997 = vpop.f32.mrf.mxu0
        %v998 = vadd.f32 0.0, %v997
        %v999 = vpop.f32.mrf.mxu0
        %v1000 = vadd.f32 0.0, %v999
        %v1001 = vpop.f32.mrf.mxu0
        %v1002 = vadd.f32 0.0, %v1001
        %1003 = vdwg.mxu0
        %v1036 = vunpack.c.l.b16 %v260
        %v1037 = vunpack.c.l.b16 %v261
        %v1038 = vunpack.c.l.b16 %v262
        %v1039 = vunpack.c.l.b16 %v263
        %v1040 = vunpack.c.l.b16 %v264
        %v1041 = vunpack.c.l.b16 %v265
        %v1042 = vunpack.c.l.b16 %v266
        %v1043 = vunpack.c.l.b16 %v267
        %v1044 = vunpack.c.l.b16 %v268
        %v1045 = vunpack.c.l.b16 %v269
        %v1046 = vunpack.c.l.b16 %v270
        %v1047 = vunpack.c.l.b16 %v271
        %v1048 = vunpack.c.l.b16 %v272
        %v1049 = vunpack.c.l.b16 %v273
        %v1050 = vunpack.c.l.b16 %v274
        %v1051 = vunpack.c.l.b16 %v275
        %v1052 = vunpack.c.l.b16 %v276
        %v1053 = vunpack.c.l.b16 %v277
        %v1054 = vunpack.c.l.b16 %v278
        %v1055 = vunpack.c.l.b16 %v279
        %v1056 = vunpack.c.l.b16 %v280
        %v1057 = vunpack.c.l.b16 %v281
        %v1058 = vunpack.c.l.b16 %v282
        %v1059 = vunpack.c.l.b16 %v283
        %v1060 = vunpack.c.l.b16 %v284
        %v1061 = vunpack.c.l.b16 %v285
        %v1062 = vunpack.c.l.b16 %v286
        %v1063 = vunpack.c.l.b16 %v287
        %v1064 = vunpack.c.l.b16 %v288
        %v1065 = vunpack.c.l.b16 %v289
        %v1066 = vunpack.c.l.b16 %v290
        %v1067 = vunpack.c.l.b16 %v291
        %v1068 = vpack.c.b16 %v1037, %v1036
        %v1069 = vpack.c.b16 %v1039, %v1038
        %v1070 = vpack.c.b16 %v1041, %v1040
        %v1071 = vpack.c.b16 %v1043, %v1042
        %v1072 = vpack.c.b16 %v1045, %v1044
        %v1073 = vpack.c.b16 %v1047, %v1046
        %v1074 = vpack.c.b16 %v1049, %v1048
        %v1075 = vpack.c.b16 %v1051, %v1050
        %v1076 = vpack.c.b16 %v1053, %v1052
        %v1077 = vpack.c.b16 %v1055, %v1054
        %v1078 = vpack.c.b16 %v1057, %v1056
        %v1079 = vpack.c.b16 %v1059, %v1058
        %v1080 = vpack.c.b16 %v1061, %v1060
        %v1081 = vpack.c.b16 %v1063, %v1062
        %v1082 = vpack.c.b16 %v1065, %v1064
        %v1083 = vpack.c.b16 %v1067, %v1066
        %v1086 = vunpack.c.l.s4 1983009808
        %v1087 = vunpack.c.0.s8 %v1086
        %v1088 = vlaneseq
        %v1089 = vshrl.u32 %v1088, 7
        %v1090 = vsub.s32 %v1087, %v1089
        %v1091 = vrot.slane %v292, %v1090
        %v1092 = vcombine.high %v1091, %v1091
        %v1094 = vsel %vm755, %v1068, 0
        %v1097 = vsel %vm755, %v1069, 0
        %v1100 = vsel %vm755, %v1070, 0
        %v1103 = vsel %vm755, %v1071, 0
        %v1106 = vsel %vm755, %v1072, 0
        %v1109 = vsel %vm755, %v1073, 0
        %v1112 = vsel %vm755, %v1074, 0
        %v1115 = vsel %vm755, %v1075, 0
        %v1118 = vsel %vm755, %v1076, 0
        %v1121 = vsel %vm755, %v1077, 0
        %v1124 = vsel %vm755, %v1078, 0
        %v1127 = vsel %vm755, %v1079, 0
        %v1130 = vsel %vm755, %v1080, 0
        %v1133 = vsel %vm755, %v1081, 0
        %v1136 = vsel %vm755, %v1082, 0
        %v1139 = vsel %vm755, %v1083, 0
        %v1142 = vsel %vm804, %v1091, 0
        %v1145 = vsel %vm804, %v1092, 0
        %1147 = vmatprep.subr.bf16.mxu0 0
        %1148 = vmatpush1.bf16.msra.mxu0 0
        %1149 = vmatprep.subr.bf16.mxu0 0
        %1150 = vmatpush1.bf16.msra.mxu0 0
        %1151 = vmatprep.subr.bf16.mxu0 0
        %1152 = vmatpush1.bf16.msra.mxu0 0
        %1153 = vmatprep.subr.bf16.mxu0 0
        %1154 = vmatpush1.bf16.msra.mxu0 0
        %1155 = vmatprep.subr.bf16.mxu0 0
        %1156 = vmatpush1.bf16.msra.mxu0 0
        %1157 = vmatprep.subr.bf16.mxu0 0
        %1158 = vmatpush1.bf16.msra.mxu0 0
        %1159 = vmatprep.subr.bf16.mxu0 0
        %1160 = vmatpush1.bf16.msra.mxu0 0
        %1161 = vmatprep.subr.bf16.mxu0 %v1145
        %1162 = vmatpush1.bf16.msra.mxu0 %v1142
        %1163 = vmatprep.subr.bf16.mxu0 0
        %1164 = vmatpush2.bf16.msra.mxu0 0
        %1165 = vmatprep.subr.bf16.mxu0 0
        %1166 = vmatpush2.bf16.msra.mxu0 0
        %1167 = vmatprep.subr.bf16.mxu0 0
        %1168 = vmatpush2.bf16.msra.mxu0 0
        %1169 = vmatprep.subr.bf16.mxu0 0
        %1170 = vmatpush2.bf16.msra.mxu0 0
        %1171 = vmatprep.subr.bf16.mxu0 0
        %1172 = vmatpush2.bf16.msra.mxu0 0
        %1173 = vmatprep.subr.bf16.mxu0 0
        %1174 = vmatpush2.bf16.msra.mxu0 0
        %1175 = vmatprep.subr.bf16.mxu0 0
        %1176 = vmatpush2.bf16.msra.mxu0 0
        %1177 = vmatprep.subr.bf16.mxu0 0
        %1178 = vmatpush2.bf16.msra.mxu0 0
        %1179 = vmatprep.mubr.bf16.mxu0 0
        %1180 = vmatmul.mubr.bf16.gmra.mxu0 %v1094
        %v1181 = vpop.f32.mrf.mxu0
        %v1182 = vadd.f32 %v846, %v1181
        %v1183 = vpop.f32.mrf.mxu0
        %v1184 = vadd.f32 %v848, %v1183
        %v1185 = vpop.f32.mrf.mxu0
        %v1186 = vadd.f32 %v850, %v1185
        %v1187 = vpop.f32.mrf.mxu0
        %v1188 = vadd.f32 %v852, %v1187
        %1189 = vmatprep.mubr.bf16.mxu0 0
        %1190 = vmatmul.mubr.bf16.gmra.mxu0 %v1097
        %v1191 = vpop.f32.mrf.mxu0
        %v1192 = vadd.f32 %v856, %v1191
        %v1193 = vpop.f32.mrf.mxu0
        %v1194 = vadd.f32 %v858, %v1193
        %v1195 = vpop.f32.mrf.mxu0
        %v1196 = vadd.f32 %v860, %v1195
        %v1197 = vpop.f32.mrf.mxu0
        %v1198 = vadd.f32 %v862, %v1197
        %1199 = vmatprep.mubr.bf16.mxu0 0
        %1200 = vmatmul.mubr.bf16.gmra.mxu0 %v1100
        %v1201 = vpop.f32.mrf.mxu0
        %v1202 = vadd.f32 %v866, %v1201
        %v1203 = vpop.f32.mrf.mxu0
        %v1204 = vadd.f32 %v868, %v1203
        %v1205 = vpop.f32.mrf.mxu0
        %v1206 = vadd.f32 %v870, %v1205
        %v1207 = vpop.f32.mrf.mxu0
        %v1208 = vadd.f32 %v872, %v1207
        %1209 = vmatprep.mubr.bf16.mxu0 0
        %1210 = vmatmul.mubr.bf16.gmra.mxu0 %v1103
        %v1211 = vpop.f32.mrf.mxu0
        %v1212 = vadd.f32 %v876, %v1211
        %v1213 = vpop.f32.mrf.mxu0
        %v1214 = vadd.f32 %v878, %v1213
        %v1215 = vpop.f32.mrf.mxu0
        %v1216 = vadd.f32 %v880, %v1215
        %v1217 = vpop.f32.mrf.mxu0
        %v1218 = vadd.f32 %v882, %v1217
        %1219 = vmatprep.mubr.bf16.mxu0 0
        %1220 = vmatmul.mubr.bf16.gmra.mxu0 %v1106
        %v1221 = vpop.f32.mrf.mxu0
        %v1222 = vadd.f32 %v886, %v1221
        %v1223 = vpop.f32.mrf.mxu0
        %v1224 = vadd.f32 %v888, %v1223
        %v1225 = vpop.f32.mrf.mxu0
        %v1226 = vadd.f32 %v890, %v1225
        %v1227 = vpop.f32.mrf.mxu0
        %v1228 = vadd.f32 %v892, %v1227
        %1229 = vmatprep.mubr.bf16.mxu0 0
        %1230 = vmatmul.mubr.bf16.gmra.mxu0 %v1109
        %v1231 = vpop.f32.mrf.mxu0
        %v1232 = vadd.f32 %v896, %v1231
        %v1233 = vpop.f32.mrf.mxu0
        %v1234 = vadd.f32 %v898, %v1233
        %v1235 = vpop.f32.mrf.mxu0
        %v1236 = vadd.f32 %v900, %v1235
        %v1237 = vpop.f32.mrf.mxu0
        %v1238 = vadd.f32 %v902, %v1237
        %1239 = vmatprep.mubr.bf16.mxu0 0
        %1240 = vmatmul.mubr.bf16.gmra.mxu0 %v1112
        %v1241 = vpop.f32.mrf.mxu0
        %v1242 = vadd.f32 %v906, %v1241
        %v1243 = vpop.f32.mrf.mxu0
        %v1244 = vadd.f32 %v908, %v1243
        %v1245 = vpop.f32.mrf.mxu0
        %v1246 = vadd.f32 %v910, %v1245
        %v1247 = vpop.f32.mrf.mxu0
        %v1248 = vadd.f32 %v912, %v1247
        %1249 = vmatprep.mubr.bf16.mxu0 0
        %1250 = vmatmul.mubr.bf16.gmra.mxu0 %v1115
        %v1251 = vpop.f32.mrf.mxu0
        %v1252 = vadd.f32 %v916, %v1251
        %v1253 = vpop.f32.mrf.mxu0
        %v1254 = vadd.f32 %v918, %v1253
        %v1255 = vpop.f32.mrf.mxu0
        %v1256 = vadd.f32 %v920, %v1255
        %v1257 = vpop.f32.mrf.mxu0
        %v1258 = vadd.f32 %v922, %v1257
        %1259 = vmatprep.mubr.bf16.mxu0 0
        %1260 = vmatmul.mubr.bf16.gmra.mxu0 %v1118
        %v1261 = vpop.f32.mrf.mxu0
        %v1262 = vadd.f32 %v926, %v1261
        %v1263 = vpop.f32.mrf.mxu0
        %v1264 = vadd.f32 %v928, %v1263
        %v1265 = vpop.f32.mrf.mxu0
        %v1266 = vadd.f32 %v930, %v1265
        %v1267 = vpop.f32.mrf.mxu0
        %v1268 = vadd.f32 %v932, %v1267
        %1269 = vmatprep.mubr.bf16.mxu0 0
        %1270 = vmatmul.mubr.bf16.gmra.mxu0 %v1121
        %v1271 = vpop.f32.mrf.mxu0
        %v1272 = vadd.f32 %v936, %v1271
        %v1273 = vpop.f32.mrf.mxu0
        %v1274 = vadd.f32 %v938, %v1273
        %v1275 = vpop.f32.mrf.mxu0
        %v1276 = vadd.f32 %v940, %v1275
        %v1277 = vpop.f32.mrf.mxu0
        %v1278 = vadd.f32 %v942, %v1277
        %1279 = vmatprep.mubr.bf16.mxu0 0
        %1280 = vmatmul.mubr.bf16.gmra.mxu0 %v1124
        %v1281 = vpop.f32.mrf.mxu0
        %v1282 = vadd.f32 %v946, %v1281
        %v1283 = vpop.f32.mrf.mxu0
        %v1284 = vadd.f32 %v948, %v1283
        %v1285 = vpop.f32.mrf.mxu0
        %v1286 = vadd.f32 %v950, %v1285
        %v1287 = vpop.f32.mrf.mxu0
        %v1288 = vadd.f32 %v952, %v1287
        %1289 = vmatprep.mubr.bf16.mxu0 0
        %1290 = vmatmul.mubr.bf16.gmra.mxu0 %v1127
        %v1291 = vpop.f32.mrf.mxu0
        %v1292 = vadd.f32 %v956, %v1291
        %v1293 = vpop.f32.mrf.mxu0
        %v1294 = vadd.f32 %v958, %v1293
        %v1295 = vpop.f32.mrf.mxu0
        %v1296 = vadd.f32 %v960, %v1295
        %v1297 = vpop.f32.mrf.mxu0
        %v1298 = vadd.f32 %v962, %v1297
        %1299 = vmatprep.mubr.bf16.mxu0 0
        %1300 = vmatmul.mubr.bf16.gmra.mxu0 %v1130
        %v1301 = vpop.f32.mrf.mxu0
        %v1302 = vadd.f32 %v966, %v1301
        %v1303 = vpop.f32.mrf.mxu0
        %v1304 = vadd.f32 %v968, %v1303
        %v1305 = vpop.f32.mrf.mxu0
        %v1306 = vadd.f32 %v970, %v1305
        %v1307 = vpop.f32.mrf.mxu0
        %v1308 = vadd.f32 %v972, %v1307
        %1309 = vmatprep.mubr.bf16.mxu0 0
        %1310 = vmatmul.mubr.bf16.gmra.mxu0 %v1133
        %v1311 = vpop.f32.mrf.mxu0
        %v1312 = vadd.f32 %v976, %v1311
        %v1313 = vpop.f32.mrf.mxu0
        %v1314 = vadd.f32 %v978, %v1313
        %v1315 = vpop.f32.mrf.mxu0
        %v1316 = vadd.f32 %v980, %v1315
        %v1317 = vpop.f32.mrf.mxu0
        %v1318 = vadd.f32 %v982, %v1317
        %1319 = vmatprep.mubr.bf16.mxu0 0
        %1320 = vmatmul.mubr.bf16.gmra.mxu0 %v1136
        %v1321 = vpop.f32.mrf.mxu0
        %v1322 = vadd.f32 %v986, %v1321
        %v1323 = vpop.f32.mrf.mxu0
        %v1324 = vadd.f32 %v988, %v1323
        %v1325 = vpop.f32.mrf.mxu0
        %v1326 = vadd.f32 %v990, %v1325
        %v1327 = vpop.f32.mrf.mxu0
        %v1328 = vadd.f32 %v992, %v1327
        %1329 = vmatprep.mubr.bf16.mxu0 0
        %1330 = vmatmul.mubr.bf16.gmra.mxu0 %v1139
        %v1331 = vpop.f32.mrf.mxu0
        %v1332 = vadd.f32 %v996, %v1331
        %v1333 = vpop.f32.mrf.mxu0
        %v1334 = vadd.f32 %v998, %v1333
        %v1335 = vpop.f32.mrf.mxu0
        %v1336 = vadd.f32 %v1000, %v1335
        %v1337 = vpop.f32.mrf.mxu0
        %v1338 = vadd.f32 %v1002, %v1337
        %1339 = vdwg.mxu0
        %v1340 = vld [vmem:[%s259] sm:$0xe]
        %v1341 = vld [vmem:[%s259 + $0x4] sm:$0xf]
        %v1342 = vld [vmem:[%s259 + $0x8] sm:$0x1]
        %v1343 = vld [vmem:[%s259 + $0xc] sm:$0xe]
        %v1344 = vld [vmem:[%s259 + $0x10] sm:$0xf]
        %v1345 = vld [vmem:[%s259 + $0x14] sm:$0x1]
        %v1346 = vld [vmem:[%s259 + $0x18] sm:$0xe]
        %v1347 = vld [vmem:[%s259 + $0x1c] sm:$0xf]
        %v1348 = vld [vmem:[%s259 + $0x20] sm:$0x1]
        %v1349 = vld [vmem:[%s259 + $0x24] sm:$0xe]
        %v1350 = vld [vmem:[%s259 + $0x28] sm:$0xf]
        %v1351 = vld [vmem:[%s259 + $0x2c] sm:$0x1]
        %v1352 = vld [vmem:[%s259 + $0x30] sm:$0xe]
        %v1353 = vld [vmem:[%s259 + $0x34] sm:$0xf]
        %v1354 = vld [vmem:[%s259 + $0x38] sm:$0x1]
        %v1355 = vld [vmem:[%s259 + $0x3c] sm:$0xe]
        %v1356 = vld [vmem:[%s259 + $0x40] sm:$0xf]
        %v1357 = vld [vmem:[%s259 + $0x44] sm:$0x1]
        %v1358 = vld [vmem:[%s259 + $0x48] sm:$0xe]
        %v1359 = vld [vmem:[%s259 + $0x4c] sm:$0xf]
        %v1360 = vld [vmem:[%s259 + $0x50] sm:$0x1]
        %v1361 = vld [vmem:[%s259 + $0x54] sm:$0xe]
        %v1362 = vld [vmem:[%s259 + $0x58] sm:$0xf]
        %v1363 = vld [vmem:[%s259 + $0x5c] sm:$0x1]
        %v1364 = vld [vmem:[%s259 + $0x60] sm:$0xe]
        %v1365 = vld [vmem:[%s259 + $0x64] sm:$0xf]
        %v1366 = vld [vmem:[%s259 + $0x68] sm:$0x1]
        %v1367 = vld [vmem:[%s259 + $0x6c] sm:$0xe]
        %v1368 = vld [vmem:[%s259 + $0x70] sm:$0xf]
        %v1369 = vld [vmem:[%s259 + $0x74] sm:$0x1]
        %v1370 = vld [vmem:[%s259 + $0x78] sm:$0xe]
        %v1371 = vld [vmem:[%s259 + $0x7c] sm:$0xf]
        %v1372 = vld [vmem:[%s259 + $0x80] sm:$0x1]
        %v1373 = vld [vmem:[%s259 + $0x84] sm:$0xe]
        %v1374 = vld [vmem:[%s259 + $0x88] sm:$0xf]
        %v1375 = vld [vmem:[%s259 + $0x8c] sm:$0x1]
        %v1376 = vld [vmem:[%s259 + $0x90] sm:$0xe]
        %v1377 = vld [vmem:[%s259 + $0x94] sm:$0xf]
        %v1378 = vld [vmem:[%s259 + $0x98] sm:$0x1]
        %v1379 = vld [vmem:[%s259 + $0x9c] sm:$0xe]
        %v1380 = vld [vmem:[%s259 + $0xa0] sm:$0xf]
        %v1381 = vld [vmem:[%s259 + $0xa4] sm:$0x1]
        %v1382 = vld [vmem:[%s259 + $0xa8] sm:$0xe]
        %v1383 = vld [vmem:[%s259 + $0xac] sm:$0xf]
        %v1384 = vld [vmem:[%s259 + $0xb0] sm:$0x1]
        %v1385 = vld [vmem:[%s259 + $0xb4] sm:$0xe]
        %v1386 = vld [vmem:[%s259 + $0xb8] sm:$0xf]
        %v1387 = vld [vmem:[%s259 + $0xbc] sm:$0x1]
        %vm1436 = vcmask 1042432
        %vm1437 = vcmask 1046532
        %vm1438 = vmor %vm1436, %vm1437
        %v1439 = vrot.slane %v1340, 5
        %v1440 = vrot.slane %v1439, 4
        %v1441 = vrot.slane %v1341, 5
        %v1442 = vsel %vm1438, %v1440, %v1441
        %v1443 = vrot.slane %v1441, 4
        %v1444 = vrot.slane %v1342, 5
        %v1445 = vsel %vm1438, %v1443, %v1444
        %v1446 = vrot.slane %v1343, 5
        %v1447 = vrot.slane %v1446, 4
        %v1448 = vrot.slane %v1344, 5
        %v1449 = vsel %vm1438, %v1447, %v1448
        %v1450 = vrot.slane %v1448, 4
        %v1451 = vrot.slane %v1345, 5
        %v1452 = vsel %vm1438, %v1450, %v1451
        %v1453 = vrot.slane %v1346, 5
        %v1454 = vrot.slane %v1453, 4
        %v1455 = vrot.slane %v1347, 5
        %v1456 = vsel %vm1438, %v1454, %v1455
        %v1457 = vrot.slane %v1455, 4
        %v1458 = vrot.slane %v1348, 5
        %v1459 = vsel %vm1438, %v1457, %v1458
        %v1460 = vrot.slane %v1349, 5
        %v1461 = vrot.slane %v1460, 4
        %v1462 = vrot.slane %v1350, 5
        %v1463 = vsel %vm1438, %v1461, %v1462
        %v1464 = vrot.slane %v1462, 4
        %v1465 = vrot.slane %v1351, 5
        %v1466 = vsel %vm1438, %v1464, %v1465
        %v1467 = vrot.slane %v1352, 5
        %v1468 = vrot.slane %v1467, 4
        %v1469 = vrot.slane %v1353, 5
        %v1470 = vsel %vm1438, %v1468, %v1469
        %v1471 = vrot.slane %v1469, 4
        %v1472 = vrot.slane %v1354, 5
        %v1473 = vsel %vm1438, %v1471, %v1472
        %v1474 = vrot.slane %v1355, 5
        %v1475 = vrot.slane %v1474, 4
        %v1476 = vrot.slane %v1356, 5
        %v1477 = vsel %vm1438, %v1475, %v1476
        %v1478 = vrot.slane %v1476, 4
        %v1479 = vrot.slane %v1357, 5
        %v1480 = vsel %vm1438, %v1478, %v1479
        %v1481 = vrot.slane %v1358, 5
        %v1482 = vrot.slane %v1481, 4
        %v1483 = vrot.slane %v1359, 5
        %v1484 = vsel %vm1438, %v1482, %v1483
        %v1485 = vrot.slane %v1483, 4
        %v1486 = vrot.slane %v1360, 5
        %v1487 = vsel %vm1438, %v1485, %v1486
        %v1488 = vrot.slane %v1361, 5
        %v1489 = vrot.slane %v1488, 4
        %v1490 = vrot.slane %v1362, 5
        %v1491 = vsel %vm1438, %v1489, %v1490
        %v1492 = vrot.slane %v1490, 4
        %v1493 = vrot.slane %v1363, 5
        %v1494 = vsel %vm1438, %v1492, %v1493
        %v1495 = vrot.slane %v1364, 5
        %v1496 = vrot.slane %v1495, 4
        %v1497 = vrot.slane %v1365, 5
        %v1498 = vsel %vm1438, %v1496, %v1497
        %v1499 = vrot.slane %v1497, 4
        %v1500 = vrot.slane %v1366, 5
        %v1501 = vsel %vm1438, %v1499, %v1500
        %v1502 = vrot.slane %v1367, 5
        %v1503 = vrot.slane %v1502, 4
        %v1504 = vrot.slane %v1368, 5
        %v1505 = vsel %vm1438, %v1503, %v1504
        %v1506 = vrot.slane %v1504, 4
        %v1507 = vrot.slane %v1369, 5
        %v1508 = vsel %vm1438, %v1506, %v1507
        %v1509 = vrot.slane %v1370, 5
        %v1510 = vrot.slane %v1509, 4
        %v1511 = vrot.slane %v1371, 5
        %v1512 = vsel %vm1438, %v1510, %v1511
        %v1513 = vrot.slane %v1511, 4
        %v1514 = vrot.slane %v1372, 5
        %v1515 = vsel %vm1438, %v1513, %v1514
        %v1516 = vrot.slane %v1373, 5
        %v1517 = vrot.slane %v1516, 4
        %v1518 = vrot.slane %v1374, 5
        %v1519 = vsel %vm1438, %v1517, %v1518
        %v1520 = vrot.slane %v1518, 4
        %v1521 = vrot.slane %v1375, 5
        %v1522 = vsel %vm1438, %v1520, %v1521
        %v1523 = vrot.slane %v1376, 5
        %v1524 = vrot.slane %v1523, 4
        %v1525 = vrot.slane %v1377, 5
        %v1526 = vsel %vm1438, %v1524, %v1525
        %v1527 = vrot.slane %v1525, 4
        %v1528 = vrot.slane %v1378, 5
        %v1529 = vsel %vm1438, %v1527, %v1528
        %v1530 = vrot.slane %v1379, 5
        %v1531 = vrot.slane %v1530, 4
        %v1532 = vrot.slane %v1380, 5
        %v1533 = vsel %vm1438, %v1531, %v1532
        %v1534 = vrot.slane %v1532, 4
        %v1535 = vrot.slane %v1381, 5
        %v1536 = vsel %vm1438, %v1534, %v1535
        %v1537 = vrot.slane %v1382, 5
        %v1538 = vrot.slane %v1537, 4
        %v1539 = vrot.slane %v1383, 5
        %v1540 = vsel %vm1438, %v1538, %v1539
        %v1541 = vrot.slane %v1539, 4
        %v1542 = vrot.slane %v1384, 5
        %v1543 = vsel %vm1438, %v1541, %v1542
        %v1544 = vrot.slane %v1385, 5
        %v1545 = vrot.slane %v1544, 4
        %v1546 = vrot.slane %v1386, 5
        %v1547 = vsel %vm1438, %v1545, %v1546
        %v1548 = vrot.slane %v1546, 4
        %v1549 = vrot.slane %v1387, 5
        %v1550 = vsel %vm1438, %v1548, %v1549
        %s1551 = scalar_lea.vmem %s2, 8
        %v1552 = vld [vmem:[%s1551] sm:$0xf]
        %v1553 = vunpack.c.l.b16 %v1442
        %v1554 = vunpack.c.l.b16 %v1445
        %v1555 = vunpack.c.l.b16 %v1449
        %v1556 = vunpack.c.l.b16 %v1452
        %v1557 = vunpack.c.l.b16 %v1456
        %v1558 = vunpack.c.l.b16 %v1459
        %v1559 = vunpack.c.l.b16 %v1463
        %v1560 = vunpack.c.l.b16 %v1466
        %v1561 = vunpack.c.l.b16 %v1470
        %v1562 = vunpack.c.l.b16 %v1473
        %v1563 = vunpack.c.l.b16 %v1477
        %v1564 = vunpack.c.l.b16 %v1480
        %v1565 = vunpack.c.l.b16 %v1484
        %v1566 = vunpack.c.l.b16 %v1487
        %v1567 = vunpack.c.l.b16 %v1491
        %v1568 = vunpack.c.l.b16 %v1494
        %v1569 = vunpack.c.l.b16 %v1498
        %v1570 = vunpack.c.l.b16 %v1501
        %v1571 = vunpack.c.l.b16 %v1505
        %v1572 = vunpack.c.l.b16 %v1508
        %v1573 = vunpack.c.l.b16 %v1512
        %v1574 = vunpack.c.l.b16 %v1515
        %v1575 = vunpack.c.l.b16 %v1519
        %v1576 = vunpack.c.l.b16 %v1522
        %v1577 = vunpack.c.l.b16 %v1526
        %v1578 = vunpack.c.l.b16 %v1529
        %v1579 = vunpack.c.l.b16 %v1533
        %v1580 = vunpack.c.l.b16 %v1536
        %v1581 = vunpack.c.l.b16 %v1540
        %v1582 = vunpack.c.l.b16 %v1543
        %v1583 = vunpack.c.l.b16 %v1547
        %v1584 = vunpack.c.l.b16 %v1550
        %v1585 = vpack.c.b16 %v1554, %v1553
        %v1586 = vpack.c.b16 %v1556, %v1555
        %v1587 = vpack.c.b16 %v1558, %v1557
        %v1588 = vpack.c.b16 %v1560, %v1559
        %v1589 = vpack.c.b16 %v1562, %v1561
        %v1590 = vpack.c.b16 %v1564, %v1563
        %v1591 = vpack.c.b16 %v1566, %v1565
        %v1592 = vpack.c.b16 %v1568, %v1567
        %v1593 = vpack.c.b16 %v1570, %v1569
        %v1594 = vpack.c.b16 %v1572, %v1571
        %v1595 = vpack.c.b16 %v1574, %v1573
        %v1596 = vpack.c.b16 %v1576, %v1575
        %v1597 = vpack.c.b16 %v1578, %v1577
        %v1598 = vpack.c.b16 %v1580, %v1579
        %v1599 = vpack.c.b16 %v1582, %v1581
        %v1600 = vpack.c.b16 %v1584, %v1583
        %v1603 = vunpack.c.l.s4 1983009808
        %v1604 = vunpack.c.0.s8 %v1603
        %v1605 = vlaneseq
        %v1606 = vshrl.u32 %v1605, 7
        %v1607 = vsub.s32 %v1604, %v1606
        %v1608 = vrot.slane %v1552, %v1607
        %v1609 = vcombine.high %v1608, %v1608
        %v1611 = vsel %vm755, %v1585, 0
        %v1614 = vsel %vm755, %v1586, 0
        %v1617 = vsel %vm755, %v1587, 0
        %v1620 = vsel %vm755, %v1588, 0
        %v1623 = vsel %vm755, %v1589, 0
        %v1626 = vsel %vm755, %v1590, 0
        %v1629 = vsel %vm755, %v1591, 0
        %v1632 = vsel %vm755, %v1592, 0
        %v1635 = vsel %vm755, %v1593, 0
        %v1638 = vsel %vm755, %v1594, 0
        %v1641 = vsel %vm755, %v1595, 0
        %v1644 = vsel %vm755, %v1596, 0
        %v1647 = vsel %vm755, %v1597, 0
        %v1650 = vsel %vm755, %v1598, 0
        %v1653 = vsel %vm755, %v1599, 0
        %v1656 = vsel %vm755, %v1600, 0
        %v1659 = vsel %vm804, %v1608, 0
        %v1662 = vsel %vm804, %v1609, 0
        %1664 = vmatprep.subr.bf16.mxu0 0
        %1665 = vmatpush1.bf16.msra.mxu0 0
        %1666 = vmatprep.subr.bf16.mxu0 0
        %1667 = vmatpush1.bf16.msra.mxu0 0
        %1668 = vmatprep.subr.bf16.mxu0 0
        %1669 = vmatpush1.bf16.msra.mxu0 0
        %1670 = vmatprep.subr.bf16.mxu0 0
        %1671 = vmatpush1.bf16.msra.mxu0 0
        %1672 = vmatprep.subr.bf16.mxu0 0
        %1673 = vmatpush1.bf16.msra.mxu0 0
        %1674 = vmatprep.subr.bf16.mxu0 0
        %1675 = vmatpush1.bf16.msra.mxu0 0
        %1676 = vmatprep.subr.bf16.mxu0 0
        %1677 = vmatpush1.bf16.msra.mxu0 0
        %1678 = vmatprep.subr.bf16.mxu0 %v1662
        %1679 = vmatpush1.bf16.msra.mxu0 %v1659
        %1680 = vmatprep.subr.bf16.mxu0 0
        %1681 = vmatpush2.bf16.msra.mxu0 0
        %1682 = vmatprep.subr.bf16.mxu0 0
        %1683 = vmatpush2.bf16.msra.mxu0 0
        %1684 = vmatprep.subr.bf16.mxu0 0
        %1685 = vmatpush2.bf16.msra.mxu0 0
        %1686 = vmatprep.subr.bf16.mxu0 0
        %1687 = vmatpush2.bf16.msra.mxu0 0
        %1688 = vmatprep.subr.bf16.mxu0 0
        %1689 = vmatpush2.bf16.msra.mxu0 0
        %1690 = vmatprep.subr.bf16.mxu0 0
        %1691 = vmatpush2.bf16.msra.mxu0 0
        %1692 = vmatprep.subr.bf16.mxu0 0
        %1693 = vmatpush2.bf16.msra.mxu0 0
        %1694 = vmatprep.subr.bf16.mxu0 0
        %1695 = vmatpush2.bf16.msra.mxu0 0
        %1696 = vmatprep.mubr.bf16.mxu0 0
        %1697 = vmatmul.mubr.bf16.gmra.mxu0 %v1611
        %v1698 = vpop.f32.mrf.mxu0
        %v1699 = vadd.f32 0.0, %v1698
        %v1700 = vpop.f32.mrf.mxu0
        %v1701 = vadd.f32 0.0, %v1700
        %v1702 = vpop.f32.mrf.mxu0
        %v1703 = vadd.f32 0.0, %v1702
        %v1704 = vpop.f32.mrf.mxu0
        %v1705 = vadd.f32 0.0, %v1704
        %1706 = vmatprep.mubr.bf16.mxu0 0
        %1707 = vmatmul.mubr.bf16.gmra.mxu0 %v1614
        %v1708 = vpop.f32.mrf.mxu0
        %v1709 = vadd.f32 0.0, %v1708
        %v1710 = vpop.f32.mrf.mxu0
        %v1711 = vadd.f32 0.0, %v1710
        %v1712 = vpop.f32.mrf.mxu0
        %v1713 = vadd.f32 0.0, %v1712
        %v1714 = vpop.f32.mrf.mxu0
        %v1715 = vadd.f32 0.0, %v1714
        %1716 = vmatprep.mubr.bf16.mxu0 0
        %1717 = vmatmul.mubr.bf16.gmra.mxu0 %v1617
        %v1718 = vpop.f32.mrf.mxu0
        %v1719 = vadd.f32 0.0, %v1718
        %v1720 = vpop.f32.mrf.mxu0
        %v1721 = vadd.f32 0.0, %v1720
        %v1722 = vpop.f32.mrf.mxu0
        %v1723 = vadd.f32 0.0, %v1722
        %v1724 = vpop.f32.mrf.mxu0
        %v1725 = vadd.f32 0.0, %v1724
        %1726 = vmatprep.mubr.bf16.mxu0 0
        %1727 = vmatmul.mubr.bf16.gmra.mxu0 %v1620
        %v1728 = vpop.f32.mrf.mxu0
        %v1729 = vadd.f32 0.0, %v1728
        %v1730 = vpop.f32.mrf.mxu0
        %v1731 = vadd.f32 0.0, %v1730
        %v1732 = vpop.f32.mrf.mxu0
        %v1733 = vadd.f32 0.0, %v1732
        %v1734 = vpop.f32.mrf.mxu0
        %v1735 = vadd.f32 0.0, %v1734
        %1736 = vmatprep.mubr.bf16.mxu0 0
        %1737 = vmatmul.mubr.bf16.gmra.mxu0 %v1623
        %v1738 = vpop.f32.mrf.mxu0
        %v1739 = vadd.f32 0.0, %v1738
        %v1740 = vpop.f32.mrf.mxu0
        %v1741 = vadd.f32 0.0, %v1740
        %v1742 = vpop.f32.mrf.mxu0
        %v1743 = vadd.f32 0.0, %v1742
        %v1744 = vpop.f32.mrf.mxu0
        %v1745 = vadd.f32 0.0, %v1744
        %1746 = vmatprep.mubr.bf16.mxu0 0
        %1747 = vmatmul.mubr.bf16.gmra.mxu0 %v1626
        %v1748 = vpop.f32.mrf.mxu0
        %v1749 = vadd.f32 0.0, %v1748
        %v1750 = vpop.f32.mrf.mxu0
        %v1751 = vadd.f32 0.0, %v1750
        %v1752 = vpop.f32.mrf.mxu0
        %v1753 = vadd.f32 0.0, %v1752
        %v1754 = vpop.f32.mrf.mxu0
        %v1755 = vadd.f32 0.0, %v1754
        %1756 = vmatprep.mubr.bf16.mxu0 0
        %1757 = vmatmul.mubr.bf16.gmra.mxu0 %v1629
        %v1758 = vpop.f32.mrf.mxu0
        %v1759 = vadd.f32 0.0, %v1758
        %v1760 = vpop.f32.mrf.mxu0
        %v1761 = vadd.f32 0.0, %v1760
        %v1762 = vpop.f32.mrf.mxu0
        %v1763 = vadd.f32 0.0, %v1762
        %v1764 = vpop.f32.mrf.mxu0
        %v1765 = vadd.f32 0.0, %v1764
        %1766 = vmatprep.mubr.bf16.mxu0 0
        %1767 = vmatmul.mubr.bf16.gmra.mxu0 %v1632
        %v1768 = vpop.f32.mrf.mxu0
        %v1769 = vadd.f32 0.0, %v1768
        %v1770 = vpop.f32.mrf.mxu0
        %v1771 = vadd.f32 0.0, %v1770
        %v1772 = vpop.f32.mrf.mxu0
        %v1773 = vadd.f32 0.0, %v1772
        %v1774 = vpop.f32.mrf.mxu0
        %v1775 = vadd.f32 0.0, %v1774
        %1776 = vmatprep.mubr.bf16.mxu0 0
        %1777 = vmatmul.mubr.bf16.gmra.mxu0 %v1635
        %v1778 = vpop.f32.mrf.mxu0
        %v1779 = vadd.f32 0.0, %v1778
        %v1780 = vpop.f32.mrf.mxu0
        %v1781 = vadd.f32 0.0, %v1780
        %v1782 = vpop.f32.mrf.mxu0
        %v1783 = vadd.f32 0.0, %v1782
        %v1784 = vpop.f32.mrf.mxu0
        %v1785 = vadd.f32 0.0, %v1784
        %1786 = vmatprep.mubr.bf16.mxu0 0
        %1787 = vmatmul.mubr.bf16.gmra.mxu0 %v1638
        %v1788 = vpop.f32.mrf.mxu0
        %v1789 = vadd.f32 0.0, %v1788
        %v1790 = vpop.f32.mrf.mxu0
        %v1791 = vadd.f32 0.0, %v1790
        %v1792 = vpop.f32.mrf.mxu0
        %v1793 = vadd.f32 0.0, %v1792
        %v1794 = vpop.f32.mrf.mxu0
        %v1795 = vadd.f32 0.0, %v1794
        %1796 = vmatprep.mubr.bf16.mxu0 0
        %1797 = vmatmul.mubr.bf16.gmra.mxu0 %v1641
        %v1798 = vpop.f32.mrf.mxu0
        %v1799 = vadd.f32 0.0, %v1798
        %v1800 = vpop.f32.mrf.mxu0
        %v1801 = vadd.f32 0.0, %v1800
        %v1802 = vpop.f32.mrf.mxu0
        %v1803 = vadd.f32 0.0, %v1802
        %v1804 = vpop.f32.mrf.mxu0
        %v1805 = vadd.f32 0.0, %v1804
        %1806 = vmatprep.mubr.bf16.mxu0 0
        %1807 = vmatmul.mubr.bf16.gmra.mxu0 %v1644
        %v1808 = vpop.f32.mrf.mxu0
        %v1809 = vadd.f32 0.0, %v1808
        %v1810 = vpop.f32.mrf.mxu0
        %v1811 = vadd.f32 0.0, %v1810
        %v1812 = vpop.f32.mrf.mxu0
        %v1813 = vadd.f32 0.0, %v1812
        %v1814 = vpop.f32.mrf.mxu0
        %v1815 = vadd.f32 0.0, %v1814
        %1816 = vmatprep.mubr.bf16.mxu0 0
        %1817 = vmatmul.mubr.bf16.gmra.mxu0 %v1647
        %v1818 = vpop.f32.mrf.mxu0
        %v1819 = vadd.f32 0.0, %v1818
        %v1820 = vpop.f32.mrf.mxu0
        %v1821 = vadd.f32 0.0, %v1820
        %v1822 = vpop.f32.mrf.mxu0
        %v1823 = vadd.f32 0.0, %v1822
        %v1824 = vpop.f32.mrf.mxu0
        %v1825 = vadd.f32 0.0, %v1824
        %1826 = vmatprep.mubr.bf16.mxu0 0
        %1827 = vmatmul.mubr.bf16.gmra.mxu0 %v1650
        %v1828 = vpop.f32.mrf.mxu0
        %v1829 = vadd.f32 0.0, %v1828
        %v1830 = vpop.f32.mrf.mxu0
        %v1831 = vadd.f32 0.0, %v1830
        %v1832 = vpop.f32.mrf.mxu0
        %v1833 = vadd.f32 0.0, %v1832
        %v1834 = vpop.f32.mrf.mxu0
        %v1835 = vadd.f32 0.0, %v1834
        %1836 = vmatprep.mubr.bf16.mxu0 0
        %1837 = vmatmul.mubr.bf16.gmra.mxu0 %v1653
        %v1838 = vpop.f32.mrf.mxu0
        %v1839 = vadd.f32 0.0, %v1838
        %v1840 = vpop.f32.mrf.mxu0
        %v1841 = vadd.f32 0.0, %v1840
        %v1842 = vpop.f32.mrf.mxu0
        %v1843 = vadd.f32 0.0, %v1842
        %v1844 = vpop.f32.mrf.mxu0
        %v1845 = vadd.f32 0.0, %v1844
        %1846 = vmatprep.mubr.bf16.mxu0 0
        %1847 = vmatmul.mubr.bf16.gmra.mxu0 %v1656
        %v1848 = vpop.f32.mrf.mxu0
        %v1849 = vadd.f32 0.0, %v1848
        %v1850 = vpop.f32.mrf.mxu0
        %v1851 = vadd.f32 0.0, %v1850
        %v1852 = vpop.f32.mrf.mxu0
        %v1853 = vadd.f32 0.0, %v1852
        %v1854 = vpop.f32.mrf.mxu0
        %v1855 = vadd.f32 0.0, %v1854
        %1856 = vdwg.mxu0
        %v1857 = vadd.f32 %v1182, %v1699
        %v1858 = vadd.f32 %v1184, %v1701
        %v1859 = vadd.f32 %v1186, %v1703
        %v1860 = vadd.f32 %v1188, %v1705
        %v1861 = vadd.f32 %v1192, %v1709
        %v1862 = vadd.f32 %v1194, %v1711
        %v1863 = vadd.f32 %v1196, %v1713
        %v1864 = vadd.f32 %v1198, %v1715
        %v1865 = vadd.f32 %v1202, %v1719
        %v1866 = vadd.f32 %v1204, %v1721
        %v1867 = vadd.f32 %v1206, %v1723
        %v1868 = vadd.f32 %v1208, %v1725
        %v1869 = vadd.f32 %v1212, %v1729
        %v1870 = vadd.f32 %v1214, %v1731
        %v1871 = vadd.f32 %v1216, %v1733
        %v1872 = vadd.f32 %v1218, %v1735
        %v1873 = vadd.f32 %v1222, %v1739
        %v1874 = vadd.f32 %v1224, %v1741
        %v1875 = vadd.f32 %v1226, %v1743
        %v1876 = vadd.f32 %v1228, %v1745
        %v1877 = vadd.f32 %v1232, %v1749
        %v1878 = vadd.f32 %v1234, %v1751
        %v1879 = vadd.f32 %v1236, %v1753
        %v1880 = vadd.f32 %v1238, %v1755
        %v1881 = vadd.f32 %v1242, %v1759
        %v1882 = vadd.f32 %v1244, %v1761
        %v1883 = vadd.f32 %v1246, %v1763
        %v1884 = vadd.f32 %v1248, %v1765
        %v1885 = vadd.f32 %v1252, %v1769
        %v1886 = vadd.f32 %v1254, %v1771
        %v1887 = vadd.f32 %v1256, %v1773
        %v1888 = vadd.f32 %v1258, %v1775
        %v1889 = vadd.f32 %v1262, %v1779
        %v1890 = vadd.f32 %v1264, %v1781
        %v1891 = vadd.f32 %v1266, %v1783
        %v1892 = vadd.f32 %v1268, %v1785
        %v1893 = vadd.f32 %v1272, %v1789
        %v1894 = vadd.f32 %v1274, %v1791
        %v1895 = vadd.f32 %v1276, %v1793
        %v1896 = vadd.f32 %v1278, %v1795
        %v1897 = vadd.f32 %v1282, %v1799
        %v1898 = vadd.f32 %v1284, %v1801
        %v1899 = vadd.f32 %v1286, %v1803
        %v1900 = vadd.f32 %v1288, %v1805
        %v1901 = vadd.f32 %v1292, %v1809
        %v1902 = vadd.f32 %v1294, %v1811
        %v1903 = vadd.f32 %v1296, %v1813
        %v1904 = vadd.f32 %v1298, %v1815
        %v1905 = vadd.f32 %v1302, %v1819
        %v1906 = vadd.f32 %v1304, %v1821
        %v1907 = vadd.f32 %v1306, %v1823
        %v1908 = vadd.f32 %v1308, %v1825
        %v1909 = vadd.f32 %v1312, %v1829
        %v1910 = vadd.f32 %v1314, %v1831
        %v1911 = vadd.f32 %v1316, %v1833
        %v1912 = vadd.f32 %v1318, %v1835
        %v1913 = vadd.f32 %v1322, %v1839
        %v1914 = vadd.f32 %v1324, %v1841
        %v1915 = vadd.f32 %v1326, %v1843
        %v1916 = vadd.f32 %v1328, %v1845
        %v1917 = vadd.f32 %v1332, %v1849
        %v1918 = vadd.f32 %v1334, %v1851
        %v1919 = vadd.f32 %v1336, %v1853
        %v1920 = vadd.f32 %v1338, %v1855
        %s1921 = sadd.s32 %s256, 1
        %s1922 = smul.u32 %s1921, 3
        %s1923 = smul.addr %s1922, 4
        %s1924 = scalar_lea.vmem %s250, %s1923
        %v1925 = vld [vmem:[%s1924] sm:$0xf]
        %v1926 = vld [vmem:[%s1924 + $0x4] sm:$0xf]
        %v1927 = vld [vmem:[%s1924 + $0xc] sm:$0xf]
        %v1928 = vld [vmem:[%s1924 + $0x10] sm:$0xf]
        %v1929 = vld [vmem:[%s1924 + $0x18] sm:$0xf]
        %v1930 = vld [vmem:[%s1924 + $0x1c] sm:$0xf]
        %v1931 = vld [vmem:[%s1924 + $0x24] sm:$0xf]
        %v1932 = vld [vmem:[%s1924 + $0x28] sm:$0xf]
        %v1933 = vld [vmem:[%s1924 + $0x30] sm:$0xf]
        %v1934 = vld [vmem:[%s1924 + $0x34] sm:$0xf]
        %v1935 = vld [vmem:[%s1924 + $0x3c] sm:$0xf]
        %v1936 = vld [vmem:[%s1924 + $0x40] sm:$0xf]
        %v1937 = vld [vmem:[%s1924 + $0x48] sm:$0xf]
        %v1938 = vld [vmem:[%s1924 + $0x4c] sm:$0xf]
        %v1939 = vld [vmem:[%s1924 + $0x54] sm:$0xf]
        %v1940 = vld [vmem:[%s1924 + $0x58] sm:$0xf]
        %v1941 = vld [vmem:[%s1924 + $0x60] sm:$0xf]
        %v1942 = vld [vmem:[%s1924 + $0x64] sm:$0xf]
        %v1943 = vld [vmem:[%s1924 + $0x6c] sm:$0xf]
        %v1944 = vld [vmem:[%s1924 + $0x70] sm:$0xf]
        %v1945 = vld [vmem:[%s1924 + $0x78] sm:$0xf]
        %v1946 = vld [vmem:[%s1924 + $0x7c] sm:$0xf]
        %v1947 = vld [vmem:[%s1924 + $0x84] sm:$0xf]
        %v1948 = vld [vmem:[%s1924 + $0x88] sm:$0xf]
        %v1949 = vld [vmem:[%s1924 + $0x90] sm:$0xf]
        %v1950 = vld [vmem:[%s1924 + $0x94] sm:$0xf]
        %v1951 = vld [vmem:[%s1924 + $0x9c] sm:$0xf]
        %v1952 = vld [vmem:[%s1924 + $0xa0] sm:$0xf]
        %v1953 = vld [vmem:[%s1924 + $0xa8] sm:$0xf]
        %v1954 = vld [vmem:[%s1924 + $0xac] sm:$0xf]
        %v1955 = vld [vmem:[%s1924 + $0xb4] sm:$0xf]
        %v1956 = vld [vmem:[%s1924 + $0xb8] sm:$0xf]
        %s1957 = scalar_lea.vmem %s2, 12
        %v1958 = vld [vmem:[%s1957] sm:$0xf]
        %v1991 = vunpack.c.l.b16 %v1925
        %v1992 = vunpack.c.l.b16 %v1926
        %v1993 = vunpack.c.l.b16 %v1927
        %v1994 = vunpack.c.l.b16 %v1928
        %v1995 = vunpack.c.l.b16 %v1929
        %v1996 = vunpack.c.l.b16 %v1930
        %v1997 = vunpack.c.l.b16 %v1931
        %v1998 = vunpack.c.l.b16 %v1932
        %v1999 = vunpack.c.l.b16 %v1933
        %v2000 = vunpack.c.l.b16 %v1934
        %v2001 = vunpack.c.l.b16 %v1935
        %v2002 = vunpack.c.l.b16 %v1936
        %v2003 = vunpack.c.l.b16 %v1937
        %v2004 = vunpack.c.l.b16 %v1938
        %v2005 = vunpack.c.l.b16 %v1939
        %v2006 = vunpack.c.l.b16 %v1940
        %v2007 = vunpack.c.l.b16 %v1941
        %v2008 = vunpack.c.l.b16 %v1942
        %v2009 = vunpack.c.l.b16 %v1943
        %v2010 = vunpack.c.l.b16 %v1944
        %v2011 = vunpack.c.l.b16 %v1945
        %v2012 = vunpack.c.l.b16 %v1946
        %v2013 = vunpack.c.l.b16 %v1947
        %v2014 = vunpack.c.l.b16 %v1948
        %v2015 = vunpack.c.l.b16 %v1949
        %v2016 = vunpack.c.l.b16 %v1950
        %v2017 = vunpack.c.l.b16 %v1951
        %v2018 = vunpack.c.l.b16 %v1952
        %v2019 = vunpack.c.l.b16 %v1953
        %v2020 = vunpack.c.l.b16 %v1954
        %v2021 = vunpack.c.l.b16 %v1955
        %v2022 = vunpack.c.l.b16 %v1956
        %v2023 = vpack.c.b16 %v1992, %v1991
        %v2024 = vpack.c.b16 %v1994, %v1993
        %v2025 = vpack.c.b16 %v1996, %v1995
        %v2026 = vpack.c.b16 %v1998, %v1997
        %v2027 = vpack.c.b16 %v2000, %v1999
        %v2028 = vpack.c.b16 %v2002, %v2001
        %v2029 = vpack.c.b16 %v2004, %v2003
        %v2030 = vpack.c.b16 %v2006, %v2005
        %v2031 = vpack.c.b16 %v2008, %v2007
        %v2032 = vpack.c.b16 %v2010, %v2009
        %v2033 = vpack.c.b16 %v2012, %v2011
        %v2034 = vpack.c.b16 %v2014, %v2013
        %v2035 = vpack.c.b16 %v2016, %v2015
        %v2036 = vpack.c.b16 %v2018, %v2017
        %v2037 = vpack.c.b16 %v2020, %v2019
        %v2038 = vpack.c.b16 %v2022, %v2021
        %v2041 = vunpack.c.l.s4 1983009808
        %v2042 = vunpack.c.0.s8 %v2041
        %v2043 = vlaneseq
        %v2044 = vshrl.u32 %v2043, 7
        %v2045 = vsub.s32 %v2042, %v2044
        %v2046 = vrot.slane %v1958, %v2045
        %v2047 = vcombine.high %v2046, %v2046
        %v2049 = vsel %vm755, %v2023, 0
        %v2052 = vsel %vm755, %v2024, 0
        %v2055 = vsel %vm755, %v2025, 0
        %v2058 = vsel %vm755, %v2026, 0
        %v2061 = vsel %vm755, %v2027, 0
        %v2064 = vsel %vm755, %v2028, 0
        %v2067 = vsel %vm755, %v2029, 0
        %v2070 = vsel %vm755, %v2030, 0
        %v2073 = vsel %vm755, %v2031, 0
        %v2076 = vsel %vm755, %v2032, 0
        %v2079 = vsel %vm755, %v2033, 0
        %v2082 = vsel %vm755, %v2034, 0
        %v2085 = vsel %vm755, %v2035, 0
        %v2088 = vsel %vm755, %v2036, 0
        %v2091 = vsel %vm755, %v2037, 0
        %v2094 = vsel %vm755, %v2038, 0
        %v2097 = vsel %vm804, %v2046, 0
        %v2100 = vsel %vm804, %v2047, 0
        %2102 = vmatprep.subr.bf16.mxu0 0
        %2103 = vmatpush1.bf16.msra.mxu0 0
        %2104 = vmatprep.subr.bf16.mxu0 0
        %2105 = vmatpush1.bf16.msra.mxu0 0
        %2106 = vmatprep.subr.bf16.mxu0 0
        %2107 = vmatpush1.bf16.msra.mxu0 0
        %2108 = vmatprep.subr.bf16.mxu0 0
        %2109 = vmatpush1.bf16.msra.mxu0 0
        %2110 = vmatprep.subr.bf16.mxu0 0
        %2111 = vmatpush1.bf16.msra.mxu0 0
        %2112 = vmatprep.subr.bf16.mxu0 0
        %2113 = vmatpush1.bf16.msra.mxu0 0
        %2114 = vmatprep.subr.bf16.mxu0 0
        %2115 = vmatpush1.bf16.msra.mxu0 0
        %2116 = vmatprep.subr.bf16.mxu0 %v2100
        %2117 = vmatpush1.bf16.msra.mxu0 %v2097
        %2118 = vmatprep.subr.bf16.mxu0 0
        %2119 = vmatpush2.bf16.msra.mxu0 0
        %2120 = vmatprep.subr.bf16.mxu0 0
        %2121 = vmatpush2.bf16.msra.mxu0 0
        %2122 = vmatprep.subr.bf16.mxu0 0
        %2123 = vmatpush2.bf16.msra.mxu0 0
        %2124 = vmatprep.subr.bf16.mxu0 0
        %2125 = vmatpush2.bf16.msra.mxu0 0
        %2126 = vmatprep.subr.bf16.mxu0 0
        %2127 = vmatpush2.bf16.msra.mxu0 0
        %2128 = vmatprep.subr.bf16.mxu0 0
        %2129 = vmatpush2.bf16.msra.mxu0 0
        %2130 = vmatprep.subr.bf16.mxu0 0
        %2131 = vmatpush2.bf16.msra.mxu0 0
        %2132 = vmatprep.subr.bf16.mxu0 0
        %2133 = vmatpush2.bf16.msra.mxu0 0
        %2134 = vmatprep.mubr.bf16.mxu0 0
        %2135 = vmatmul.mubr.bf16.gmra.mxu0 %v2049
        %v2136 = vpop.f32.mrf.mxu0
        %v2137 = vadd.f32 0.0, %v2136
        %v2138 = vpop.f32.mrf.mxu0
        %v2139 = vadd.f32 0.0, %v2138
        %v2140 = vpop.f32.mrf.mxu0
        %v2141 = vadd.f32 0.0, %v2140
        %v2142 = vpop.f32.mrf.mxu0
        %v2143 = vadd.f32 0.0, %v2142
        %2144 = vmatprep.mubr.bf16.mxu0 0
        %2145 = vmatmul.mubr.bf16.gmra.mxu0 %v2052
        %v2146 = vpop.f32.mrf.mxu0
        %v2147 = vadd.f32 0.0, %v2146
        %v2148 = vpop.f32.mrf.mxu0
        %v2149 = vadd.f32 0.0, %v2148
        %v2150 = vpop.f32.mrf.mxu0
        %v2151 = vadd.f32 0.0, %v2150
        %v2152 = vpop.f32.mrf.mxu0
        %v2153 = vadd.f32 0.0, %v2152
        %2154 = vmatprep.mubr.bf16.mxu0 0
        %2155 = vmatmul.mubr.bf16.gmra.mxu0 %v2055
        %v2156 = vpop.f32.mrf.mxu0
        %v2157 = vadd.f32 0.0, %v2156
        %v2158 = vpop.f32.mrf.mxu0
        %v2159 = vadd.f32 0.0, %v2158
        %v2160 = vpop.f32.mrf.mxu0
        %v2161 = vadd.f32 0.0, %v2160
        %v2162 = vpop.f32.mrf.mxu0
        %v2163 = vadd.f32 0.0, %v2162
        %2164 = vmatprep.mubr.bf16.mxu0 0
        %2165 = vmatmul.mubr.bf16.gmra.mxu0 %v2058
        %v2166 = vpop.f32.mrf.mxu0
        %v2167 = vadd.f32 0.0, %v2166
        %v2168 = vpop.f32.mrf.mxu0
        %v2169 = vadd.f32 0.0, %v2168
        %v2170 = vpop.f32.mrf.mxu0
        %v2171 = vadd.f32 0.0, %v2170
        %v2172 = vpop.f32.mrf.mxu0
        %v2173 = vadd.f32 0.0, %v2172
        %2174 = vmatprep.mubr.bf16.mxu0 0
        %2175 = vmatmul.mubr.bf16.gmra.mxu0 %v2061
        %v2176 = vpop.f32.mrf.mxu0
        %v2177 = vadd.f32 0.0, %v2176
        %v2178 = vpop.f32.mrf.mxu0
        %v2179 = vadd.f32 0.0, %v2178
        %v2180 = vpop.f32.mrf.mxu0
        %v2181 = vadd.f32 0.0, %v2180
        %v2182 = vpop.f32.mrf.mxu0
        %v2183 = vadd.f32 0.0, %v2182
        %2184 = vmatprep.mubr.bf16.mxu0 0
        %2185 = vmatmul.mubr.bf16.gmra.mxu0 %v2064
        %v2186 = vpop.f32.mrf.mxu0
        %v2187 = vadd.f32 0.0, %v2186
        %v2188 = vpop.f32.mrf.mxu0
        %v2189 = vadd.f32 0.0, %v2188
        %v2190 = vpop.f32.mrf.mxu0
        %v2191 = vadd.f32 0.0, %v2190
        %v2192 = vpop.f32.mrf.mxu0
        %v2193 = vadd.f32 0.0, %v2192
        %2194 = vmatprep.mubr.bf16.mxu0 0
        %2195 = vmatmul.mubr.bf16.gmra.mxu0 %v2067
        %v2196 = vpop.f32.mrf.mxu0
        %v2197 = vadd.f32 0.0, %v2196
        %v2198 = vpop.f32.mrf.mxu0
        %v2199 = vadd.f32 0.0, %v2198
        %v2200 = vpop.f32.mrf.mxu0
        %v2201 = vadd.f32 0.0, %v2200
        %v2202 = vpop.f32.mrf.mxu0
        %v2203 = vadd.f32 0.0, %v2202
        %2204 = vmatprep.mubr.bf16.mxu0 0
        %2205 = vmatmul.mubr.bf16.gmra.mxu0 %v2070
        %v2206 = vpop.f32.mrf.mxu0
        %v2207 = vadd.f32 0.0, %v2206
        %v2208 = vpop.f32.mrf.mxu0
        %v2209 = vadd.f32 0.0, %v2208
        %v2210 = vpop.f32.mrf.mxu0
        %v2211 = vadd.f32 0.0, %v2210
        %v2212 = vpop.f32.mrf.mxu0
        %v2213 = vadd.f32 0.0, %v2212
        %2214 = vmatprep.mubr.bf16.mxu0 0
        %2215 = vmatmul.mubr.bf16.gmra.mxu0 %v2073
        %v2216 = vpop.f32.mrf.mxu0
        %v2217 = vadd.f32 0.0, %v2216
        %v2218 = vpop.f32.mrf.mxu0
        %v2219 = vadd.f32 0.0, %v2218
        %v2220 = vpop.f32.mrf.mxu0
        %v2221 = vadd.f32 0.0, %v2220
        %v2222 = vpop.f32.mrf.mxu0
        %v2223 = vadd.f32 0.0, %v2222
        %2224 = vmatprep.mubr.bf16.mxu0 0
        %2225 = vmatmul.mubr.bf16.gmra.mxu0 %v2076
        %v2226 = vpop.f32.mrf.mxu0
        %v2227 = vadd.f32 0.0, %v2226
        %v2228 = vpop.f32.mrf.mxu0
        %v2229 = vadd.f32 0.0, %v2228
        %v2230 = vpop.f32.mrf.mxu0
        %v2231 = vadd.f32 0.0, %v2230
        %v2232 = vpop.f32.mrf.mxu0
        %v2233 = vadd.f32 0.0, %v2232
        %2234 = vmatprep.mubr.bf16.mxu0 0
        %2235 = vmatmul.mubr.bf16.gmra.mxu0 %v2079
        %v2236 = vpop.f32.mrf.mxu0
        %v2237 = vadd.f32 0.0, %v2236
        %v2238 = vpop.f32.mrf.mxu0
        %v2239 = vadd.f32 0.0, %v2238
        %v2240 = vpop.f32.mrf.mxu0
        %v2241 = vadd.f32 0.0, %v2240
        %v2242 = vpop.f32.mrf.mxu0
        %v2243 = vadd.f32 0.0, %v2242
        %2244 = vmatprep.mubr.bf16.mxu0 0
        %2245 = vmatmul.mubr.bf16.gmra.mxu0 %v2082
        %v2246 = vpop.f32.mrf.mxu0
        %v2247 = vadd.f32 0.0, %v2246
        %v2248 = vpop.f32.mrf.mxu0
        %v2249 = vadd.f32 0.0, %v2248
        %v2250 = vpop.f32.mrf.mxu0
        %v2251 = vadd.f32 0.0, %v2250
        %v2252 = vpop.f32.mrf.mxu0
        %v2253 = vadd.f32 0.0, %v2252
        %2254 = vmatprep.mubr.bf16.mxu0 0
        %2255 = vmatmul.mubr.bf16.gmra.mxu0 %v2085
        %v2256 = vpop.f32.mrf.mxu0
        %v2257 = vadd.f32 0.0, %v2256
        %v2258 = vpop.f32.mrf.mxu0
        %v2259 = vadd.f32 0.0, %v2258
        %v2260 = vpop.f32.mrf.mxu0
        %v2261 = vadd.f32 0.0, %v2260
        %v2262 = vpop.f32.mrf.mxu0
        %v2263 = vadd.f32 0.0, %v2262
        %2264 = vmatprep.mubr.bf16.mxu0 0
        %2265 = vmatmul.mubr.bf16.gmra.mxu0 %v2088
        %v2266 = vpop.f32.mrf.mxu0
        %v2267 = vadd.f32 0.0, %v2266
        %v2268 = vpop.f32.mrf.mxu0
        %v2269 = vadd.f32 0.0, %v2268
        %v2270 = vpop.f32.mrf.mxu0
        %v2271 = vadd.f32 0.0, %v2270
        %v2272 = vpop.f32.mrf.mxu0
        %v2273 = vadd.f32 0.0, %v2272
        %2274 = vmatprep.mubr.bf16.mxu0 0
        %2275 = vmatmul.mubr.bf16.gmra.mxu0 %v2091
        %v2276 = vpop.f32.mrf.mxu0
        %v2277 = vadd.f32 0.0, %v2276
        %v2278 = vpop.f32.mrf.mxu0
        %v2279 = vadd.f32 0.0, %v2278
        %v2280 = vpop.f32.mrf.mxu0
        %v2281 = vadd.f32 0.0, %v2280
        %v2282 = vpop.f32.mrf.mxu0
        %v2283 = vadd.f32 0.0, %v2282
        %2284 = vmatprep.mubr.bf16.mxu0 0
        %2285 = vmatmul.mubr.bf16.gmra.mxu0 %v2094
        %v2286 = vpop.f32.mrf.mxu0
        %v2287 = vadd.f32 0.0, %v2286
        %v2288 = vpop.f32.mrf.mxu0
        %v2289 = vadd.f32 0.0, %v2288
        %v2290 = vpop.f32.mrf.mxu0
        %v2291 = vadd.f32 0.0, %v2290
        %v2292 = vpop.f32.mrf.mxu0
        %v2293 = vadd.f32 0.0, %v2292
        %2294 = vdwg.mxu0
        %v2295 = vadd.f32 %v1857, %v2137
        %v2296 = vadd.f32 %v1858, %v2139
        %v2297 = vadd.f32 %v1859, %v2141
        %v2298 = vadd.f32 %v1860, %v2143
        %v2299 = vadd.f32 %v1861, %v2147
        %v2300 = vadd.f32 %v1862, %v2149
        %v2301 = vadd.f32 %v1863, %v2151
        %v2302 = vadd.f32 %v1864, %v2153
        %v2303 = vadd.f32 %v1865, %v2157
        %v2304 = vadd.f32 %v1866, %v2159
        %v2305 = vadd.f32 %v1867, %v2161
        %v2306 = vadd.f32 %v1868, %v2163
        %v2307 = vadd.f32 %v1869, %v2167
        %v2308 = vadd.f32 %v1870, %v2169
        %v2309 = vadd.f32 %v1871, %v2171
        %v2310 = vadd.f32 %v1872, %v2173
        %v2311 = vadd.f32 %v1873, %v2177
        %v2312 = vadd.f32 %v1874, %v2179
        %v2313 = vadd.f32 %v1875, %v2181
        %v2314 = vadd.f32 %v1876, %v2183
        %v2315 = vadd.f32 %v1877, %v2187
        %v2316 = vadd.f32 %v1878, %v2189
        %v2317 = vadd.f32 %v1879, %v2191
        %v2318 = vadd.f32 %v1880, %v2193
        %v2319 = vadd.f32 %v1881, %v2197
        %v2320 = vadd.f32 %v1882, %v2199
        %v2321 = vadd.f32 %v1883, %v2201
        %v2322 = vadd.f32 %v1884, %v2203
        %v2323 = vadd.f32 %v1885, %v2207
        %v2324 = vadd.f32 %v1886, %v2209
        %v2325 = vadd.f32 %v1887, %v2211
        %v2326 = vadd.f32 %v1888, %v2213
        %v2327 = vadd.f32 %v1889, %v2217
        %v2328 = vadd.f32 %v1890, %v2219
        %v2329 = vadd.f32 %v1891, %v2221
        %v2330 = vadd.f32 %v1892, %v2223
        %v2331 = vadd.f32 %v1893, %v2227
        %v2332 = vadd.f32 %v1894, %v2229
        %v2333 = vadd.f32 %v1895, %v2231
        %v2334 = vadd.f32 %v1896, %v2233
        %v2335 = vadd.f32 %v1897, %v2237
        %v2336 = vadd.f32 %v1898, %v2239
        %v2337 = vadd.f32 %v1899, %v2241
        %v2338 = vadd.f32 %v1900, %v2243
        %v2339 = vadd.f32 %v1901, %v2247
        %v2340 = vadd.f32 %v1902, %v2249
        %v2341 = vadd.f32 %v1903, %v2251
        %v2342 = vadd.f32 %v1904, %v2253
        %v2343 = vadd.f32 %v1905, %v2257
        %v2344 = vadd.f32 %v1906, %v2259
        %v2345 = vadd.f32 %v1907, %v2261
        %v2346 = vadd.f32 %v1908, %v2263
        %v2347 = vadd.f32 %v1909, %v2267
        %v2348 = vadd.f32 %v1910, %v2269
        %v2349 = vadd.f32 %v1911, %v2271
        %v2350 = vadd.f32 %v1912, %v2273
        %v2351 = vadd.f32 %v1913, %v2277
        %v2352 = vadd.f32 %v1914, %v2279
        %v2353 = vadd.f32 %v1915, %v2281
        %v2354 = vadd.f32 %v1916, %v2283
        %v2355 = vadd.f32 %v1917, %v2287
        %v2356 = vadd.f32 %v1918, %v2289
        %v2357 = vadd.f32 %v1919, %v2291
        %v2358 = vadd.f32 %v1920, %v2293
        %v2359 = vld [vmem:[%s1924] sm:$0xf]
        %v2360 = vld [vmem:[%s1924 + $0x4] sm:$0xf]
        %v2361 = vld [vmem:[%s1924 + $0x8] sm:$0x1]
        %v2362 = vld [vmem:[%s1924 + $0xc] sm:$0xf]
        %v2363 = vld [vmem:[%s1924 + $0x10] sm:$0xf]
        %v2364 = vld [vmem:[%s1924 + $0x14] sm:$0x1]
        %v2365 = vld [vmem:[%s1924 + $0x18] sm:$0xf]
        %v2366 = vld [vmem:[%s1924 + $0x1c] sm:$0xf]
        %v2367 = vld [vmem:[%s1924 + $0x20] sm:$0x1]
        %v2368 = vld [vmem:[%s1924 + $0x24] sm:$0xf]
        %v2369 = vld [vmem:[%s1924 + $0x28] sm:$0xf]
        %v2370 = vld [vmem:[%s1924 + $0x2c] sm:$0x1]
        %v2371 = vld [vmem:[%s1924 + $0x30] sm:$0xf]
        %v2372 = vld [vmem:[%s1924 + $0x34] sm:$0xf]
        %v2373 = vld [vmem:[%s1924 + $0x38] sm:$0x1]
        %v2374 = vld [vmem:[%s1924 + $0x3c] sm:$0xf]
        %v2375 = vld [vmem:[%s1924 + $0x40] sm:$0xf]
        %v2376 = vld [vmem:[%s1924 + $0x44] sm:$0x1]
        %v2377 = vld [vmem:[%s1924 + $0x48] sm:$0xf]
        %v2378 = vld [vmem:[%s1924 + $0x4c] sm:$0xf]
        %v2379 = vld [vmem:[%s1924 + $0x50] sm:$0x1]
        %v2380 = vld [vmem:[%s1924 + $0x54] sm:$0xf]
        %v2381 = vld [vmem:[%s1924 + $0x58] sm:$0xf]
        %v2382 = vld [vmem:[%s1924 + $0x5c] sm:$0x1]
        %v2383 = vld [vmem:[%s1924 + $0x60] sm:$0xf]
        %v2384 = vld [vmem:[%s1924 + $0x64] sm:$0xf]
        %v2385 = vld [vmem:[%s1924 + $0x68] sm:$0x1]
        %v2386 = vld [vmem:[%s1924 + $0x6c] sm:$0xf]
        %v2387 = vld [vmem:[%s1924 + $0x70] sm:$0xf]
        %v2388 = vld [vmem:[%s1924 + $0x74] sm:$0x1]
        %v2389 = vld [vmem:[%s1924 + $0x78] sm:$0xf]
        %v2390 = vld [vmem:[%s1924 + $0x7c] sm:$0xf]
        %v2391 = vld [vmem:[%s1924 + $0x80] sm:$0x1]
        %v2392 = vld [vmem:[%s1924 + $0x84] sm:$0xf]
        %v2393 = vld [vmem:[%s1924 + $0x88] sm:$0xf]
        %v2394 = vld [vmem:[%s1924 + $0x8c] sm:$0x1]
        %v2395 = vld [vmem:[%s1924 + $0x90] sm:$0xf]
        %v2396 = vld [vmem:[%s1924 + $0x94] sm:$0xf]
        %v2397 = vld [vmem:[%s1924 + $0x98] sm:$0x1]
        %v2398 = vld [vmem:[%s1924 + $0x9c] sm:$0xf]
        %v2399 = vld [vmem:[%s1924 + $0xa0] sm:$0xf]
        %v2400 = vld [vmem:[%s1924 + $0xa4] sm:$0x1]
        %v2401 = vld [vmem:[%s1924 + $0xa8] sm:$0xf]
        %v2402 = vld [vmem:[%s1924 + $0xac] sm:$0xf]
        %v2403 = vld [vmem:[%s1924 + $0xb0] sm:$0x1]
        %v2404 = vld [vmem:[%s1924 + $0xb4] sm:$0xf]
        %v2405 = vld [vmem:[%s1924 + $0xb8] sm:$0xf]
        %v2406 = vld [vmem:[%s1924 + $0xbc] sm:$0x1]
        %v2408 = vshrl.u32 %v2359, 16
        %v2410 = vrot.slane %v2408, 4
        %v2411 = vshll.u32 %v2359, 16
        %v2413 = vrot.slane %v2411, 5
        %v2414 = vor.u32 %v2410, %v2413
        %v2415 = vrot.slane %v2414, 4
        %v2417 = vshll.u32 %v2360, 16
        %v2419 = vrot.slane %v2417, 5
        %v2420 = vsel %vm311, %v2415, %v2419
        %v2421 = vshrl.u32 %v2360, 16
        %v2423 = vrot.slane %v2421, 4
        %v2424 = vor.u32 %v2423, %v2419
        %v2425 = vrot.slane %v2424, 4
        %v2427 = vshll.u32 %v2361, 16
        %v2429 = vrot.slane %v2427, 5
        %v2430 = vsel %vm311, %v2425, %v2429
        %v2432 = vshrl.u32 %v2362, 16
        %v2434 = vrot.slane %v2432, 4
        %v2435 = vshll.u32 %v2362, 16
        %v2437 = vrot.slane %v2435, 5
        %v2438 = vor.u32 %v2434, %v2437
        %v2439 = vrot.slane %v2438, 4
        %v2441 = vshll.u32 %v2363, 16
        %v2443 = vrot.slane %v2441, 5
        %v2444 = vsel %vm311, %v2439, %v2443
        %v2445 = vshrl.u32 %v2363, 16
        %v2447 = vrot.slane %v2445, 4
        %v2448 = vor.u32 %v2447, %v2443
        %v2449 = vrot.slane %v2448, 4
        %v2451 = vshll.u32 %v2364, 16
        %v2453 = vrot.slane %v2451, 5
        %v2454 = vsel %vm311, %v2449, %v2453
        %v2456 = vshrl.u32 %v2365, 16
        %v2458 = vrot.slane %v2456, 4
        %v2459 = vshll.u32 %v2365, 16
        %v2461 = vrot.slane %v2459, 5
        %v2462 = vor.u32 %v2458, %v2461
        %v2463 = vrot.slane %v2462, 4
        %v2465 = vshll.u32 %v2366, 16
        %v2467 = vrot.slane %v2465, 5
        %v2468 = vsel %vm311, %v2463, %v2467
        %v2469 = vshrl.u32 %v2366, 16
        %v2471 = vrot.slane %v2469, 4
        %v2472 = vor.u32 %v2471, %v2467
        %v2473 = vrot.slane %v2472, 4
        %v2475 = vshll.u32 %v2367, 16
        %v2477 = vrot.slane %v2475, 5
        %v2478 = vsel %vm311, %v2473, %v2477
        %v2480 = vshrl.u32 %v2368, 16
        %v2482 = vrot.slane %v2480, 4
        %v2483 = vshll.u32 %v2368, 16
        %v2485 = vrot.slane %v2483, 5
        %v2486 = vor.u32 %v2482, %v2485
        %v2487 = vrot.slane %v2486, 4
        %v2489 = vshll.u32 %v2369, 16
        %v2491 = vrot.slane %v2489, 5
        %v2492 = vsel %vm311, %v2487, %v2491
        %v2493 = vshrl.u32 %v2369, 16
        %v2495 = vrot.slane %v2493, 4
        %v2496 = vor.u32 %v2495, %v2491
        %v2497 = vrot.slane %v2496, 4
        %v2499 = vshll.u32 %v2370, 16
        %v2501 = vrot.slane %v2499, 5
        %v2502 = vsel %vm311, %v2497, %v2501
        %v2504 = vshrl.u32 %v2371, 16
        %v2506 = vrot.slane %v2504, 4
        %v2507 = vshll.u32 %v2371, 16
        %v2509 = vrot.slane %v2507, 5
        %v2510 = vor.u32 %v2506, %v2509
        %v2511 = vrot.slane %v2510, 4
        %v2513 = vshll.u32 %v2372, 16
        %v2515 = vrot.slane %v2513, 5
        %v2516 = vsel %vm311, %v2511, %v2515
        %v2517 = vshrl.u32 %v2372, 16
        %v2519 = vrot.slane %v2517, 4
        %v2520 = vor.u32 %v2519, %v2515
        %v2521 = vrot.slane %v2520, 4
        %v2523 = vshll.u32 %v2373, 16
        %v2525 = vrot.slane %v2523, 5
        %v2526 = vsel %vm311, %v2521, %v2525
        %v2528 = vshrl.u32 %v2374, 16
        %v2530 = vrot.slane %v2528, 4
        %v2531 = vshll.u32 %v2374, 16
        %v2533 = vrot.slane %v2531, 5
        %v2534 = vor.u32 %v2530, %v2533
        %v2535 = vrot.slane %v2534, 4
        %v2537 = vshll.u32 %v2375, 16
        %v2539 = vrot.slane %v2537, 5
        %v2540 = vsel %vm311, %v2535, %v2539
        %v2541 = vshrl.u32 %v2375, 16
        %v2543 = vrot.slane %v2541, 4
        %v2544 = vor.u32 %v2543, %v2539
        %v2545 = vrot.slane %v2544, 4
        %v2547 = vshll.u32 %v2376, 16
        %v2549 = vrot.slane %v2547, 5
        %v2550 = vsel %vm311, %v2545, %v2549
        %v2552 = vshrl.u32 %v2377, 16
        %v2554 = vrot.slane %v2552, 4
        %v2555 = vshll.u32 %v2377, 16
        %v2557 = vrot.slane %v2555, 5
        %v2558 = vor.u32 %v2554, %v2557
        %v2559 = vrot.slane %v2558, 4
        %v2561 = vshll.u32 %v2378, 16
        %v2563 = vrot.slane %v2561, 5
        %v2564 = vsel %vm311, %v2559, %v2563
        %v2565 = vshrl.u32 %v2378, 16
        %v2567 = vrot.slane %v2565, 4
        %v2568 = vor.u32 %v2567, %v2563
        %v2569 = vrot.slane %v2568, 4
        %v2571 = vshll.u32 %v2379, 16
        %v2573 = vrot.slane %v2571, 5
        %v2574 = vsel %vm311, %v2569, %v2573
        %v2576 = vshrl.u32 %v2380, 16
        %v2578 = vrot.slane %v2576, 4
        %v2579 = vshll.u32 %v2380, 16
        %v2581 = vrot.slane %v2579, 5
        %v2582 = vor.u32 %v2578, %v2581
        %v2583 = vrot.slane %v2582, 4
        %v2585 = vshll.u32 %v2381, 16
        %v2587 = vrot.slane %v2585, 5
        %v2588 = vsel %vm311, %v2583, %v2587
        %v2589 = vshrl.u32 %v2381, 16
        %v2591 = vrot.slane %v2589, 4
        %v2592 = vor.u32 %v2591, %v2587
        %v2593 = vrot.slane %v2592, 4
        %v2595 = vshll.u32 %v2382, 16
        %v2597 = vrot.slane %v2595, 5
        %v2598 = vsel %vm311, %v2593, %v2597
        %v2600 = vshrl.u32 %v2383, 16
        %v2602 = vrot.slane %v2600, 4
        %v2603 = vshll.u32 %v2383, 16
        %v2605 = vrot.slane %v2603, 5
        %v2606 = vor.u32 %v2602, %v2605
        %v2607 = vrot.slane %v2606, 4
        %v2609 = vshll.u32 %v2384, 16
        %v2611 = vrot.slane %v2609, 5
        %v2612 = vsel %vm311, %v2607, %v2611
        %v2613 = vshrl.u32 %v2384, 16
        %v2615 = vrot.slane %v2613, 4
        %v2616 = vor.u32 %v2615, %v2611
        %v2617 = vrot.slane %v2616, 4
        %v2619 = vshll.u32 %v2385, 16
        %v2621 = vrot.slane %v2619, 5
        %v2622 = vsel %vm311, %v2617, %v2621
        %v2624 = vshrl.u32 %v2386, 16
        %v2626 = vrot.slane %v2624, 4
        %v2627 = vshll.u32 %v2386, 16
        %v2629 = vrot.slane %v2627, 5
        %v2630 = vor.u32 %v2626, %v2629
        %v2631 = vrot.slane %v2630, 4
        %v2633 = vshll.u32 %v2387, 16
        %v2635 = vrot.slane %v2633, 5
        %v2636 = vsel %vm311, %v2631, %v2635
        %v2637 = vshrl.u32 %v2387, 16
        %v2639 = vrot.slane %v2637, 4
        %v2640 = vor.u32 %v2639, %v2635
        %v2641 = vrot.slane %v2640, 4
        %v2643 = vshll.u32 %v2388, 16
        %v2645 = vrot.slane %v2643, 5
        %v2646 = vsel %vm311, %v2641, %v2645
        %v2648 = vshrl.u32 %v2389, 16
        %v2650 = vrot.slane %v2648, 4
        %v2651 = vshll.u32 %v2389, 16
        %v2653 = vrot.slane %v2651, 5
        %v2654 = vor.u32 %v2650, %v2653
        %v2655 = vrot.slane %v2654, 4
        %v2657 = vshll.u32 %v2390, 16
        %v2659 = vrot.slane %v2657, 5
        %v2660 = vsel %vm311, %v2655, %v2659
        %v2661 = vshrl.u32 %v2390, 16
        %v2663 = vrot.slane %v2661, 4
        %v2664 = vor.u32 %v2663, %v2659
        %v2665 = vrot.slane %v2664, 4
        %v2667 = vshll.u32 %v2391, 16
        %v2669 = vrot.slane %v2667, 5
        %v2670 = vsel %vm311, %v2665, %v2669
        %v2672 = vshrl.u32 %v2392, 16
        %v2674 = vrot.slane %v2672, 4
        %v2675 = vshll.u32 %v2392, 16
        %v2677 = vrot.slane %v2675, 5
        %v2678 = vor.u32 %v2674, %v2677
        %v2679 = vrot.slane %v2678, 4
        %v2681 = vshll.u32 %v2393, 16
        %v2683 = vrot.slane %v2681, 5
        %v2684 = vsel %vm311, %v2679, %v2683
        %v2685 = vshrl.u32 %v2393, 16
        %v2687 = vrot.slane %v2685, 4
        %v2688 = vor.u32 %v2687, %v2683
        %v2689 = vrot.slane %v2688, 4
        %v2691 = vshll.u32 %v2394, 16
        %v2693 = vrot.slane %v2691, 5
        %v2694 = vsel %vm311, %v2689, %v2693
        %v2696 = vshrl.u32 %v2395, 16
        %v2698 = vrot.slane %v2696, 4
        %v2699 = vshll.u32 %v2395, 16
        %v2701 = vrot.slane %v2699, 5
        %v2702 = vor.u32 %v2698, %v2701
        %v2703 = vrot.slane %v2702, 4
        %v2705 = vshll.u32 %v2396, 16
        %v2707 = vrot.slane %v2705, 5
        %v2708 = vsel %vm311, %v2703, %v2707
        %v2709 = vshrl.u32 %v2396, 16
        %v2711 = vrot.slane %v2709, 4
        %v2712 = vor.u32 %v2711, %v2707
        %v2713 = vrot.slane %v2712, 4
        %v2715 = vshll.u32 %v2397, 16
        %v2717 = vrot.slane %v2715, 5
        %v2718 = vsel %vm311, %v2713, %v2717
        %v2720 = vshrl.u32 %v2398, 16
        %v2722 = vrot.slane %v2720, 4
        %v2723 = vshll.u32 %v2398, 16
        %v2725 = vrot.slane %v2723, 5
        %v2726 = vor.u32 %v2722, %v2725
        %v2727 = vrot.slane %v2726, 4
        %v2729 = vshll.u32 %v2399, 16
        %v2731 = vrot.slane %v2729, 5
        %v2732 = vsel %vm311, %v2727, %v2731
        %v2733 = vshrl.u32 %v2399, 16
        %v2735 = vrot.slane %v2733, 4
        %v2736 = vor.u32 %v2735, %v2731
        %v2737 = vrot.slane %v2736, 4
        %v2739 = vshll.u32 %v2400, 16
        %v2741 = vrot.slane %v2739, 5
        %v2742 = vsel %vm311, %v2737, %v2741
        %v2744 = vshrl.u32 %v2401, 16
        %v2746 = vrot.slane %v2744, 4
        %v2747 = vshll.u32 %v2401, 16
        %v2749 = vrot.slane %v2747, 5
        %v2750 = vor.u32 %v2746, %v2749
        %v2751 = vrot.slane %v2750, 4
        %v2753 = vshll.u32 %v2402, 16
        %v2755 = vrot.slane %v2753, 5
        %v2756 = vsel %vm311, %v2751, %v2755
        %v2757 = vshrl.u32 %v2402, 16
        %v2759 = vrot.slane %v2757, 4
        %v2760 = vor.u32 %v2759, %v2755
        %v2761 = vrot.slane %v2760, 4
        %v2763 = vshll.u32 %v2403, 16
        %v2765 = vrot.slane %v2763, 5
        %v2766 = vsel %vm311, %v2761, %v2765
        %v2768 = vshrl.u32 %v2404, 16
        %v2770 = vrot.slane %v2768, 4
        %v2771 = vshll.u32 %v2404, 16
        %v2773 = vrot.slane %v2771, 5
        %v2774 = vor.u32 %v2770, %v2773
        %v2775 = vrot.slane %v2774, 4
        %v2777 = vshll.u32 %v2405, 16
        %v2779 = vrot.slane %v2777, 5
        %v2780 = vsel %vm311, %v2775, %v2779
        %v2781 = vshrl.u32 %v2405, 16
        %v2783 = vrot.slane %v2781, 4
        %v2784 = vor.u32 %v2783, %v2779
        %v2785 = vrot.slane %v2784, 4
        %v2787 = vshll.u32 %v2406, 16
        %v2789 = vrot.slane %v2787, 5
        %v2790 = vsel %vm311, %v2785, %v2789
        %s2791 = scalar_lea.vmem %s2, 16
        %v2792 = vld [vmem:[%s2791] sm:$0xf]
        %v2793 = vunpack.c.l.b16 %v2420
        %v2794 = vunpack.c.l.b16 %v2430
        %v2795 = vunpack.c.l.b16 %v2444
        %v2796 = vunpack.c.l.b16 %v2454
        %v2797 = vunpack.c.l.b16 %v2468
        %v2798 = vunpack.c.l.b16 %v2478
        %v2799 = vunpack.c.l.b16 %v2492
        %v2800 = vunpack.c.l.b16 %v2502
        %v2801 = vunpack.c.l.b16 %v2516
        %v2802 = vunpack.c.l.b16 %v2526
        %v2803 = vunpack.c.l.b16 %v2540
        %v2804 = vunpack.c.l.b16 %v2550
        %v2805 = vunpack.c.l.b16 %v2564
        %v2806 = vunpack.c.l.b16 %v2574
        %v2807 = vunpack.c.l.b16 %v2588
        %v2808 = vunpack.c.l.b16 %v2598
        %v2809 = vunpack.c.l.b16 %v2612
        %v2810 = vunpack.c.l.b16 %v2622
        %v2811 = vunpack.c.l.b16 %v2636
        %v2812 = vunpack.c.l.b16 %v2646
        %v2813 = vunpack.c.l.b16 %v2660
        %v2814 = vunpack.c.l.b16 %v2670
        %v2815 = vunpack.c.l.b16 %v2684
        %v2816 = vunpack.c.l.b16 %v2694
        %v2817 = vunpack.c.l.b16 %v2708
        %v2818 = vunpack.c.l.b16 %v2718
        %v2819 = vunpack.c.l.b16 %v2732
        %v2820 = vunpack.c.l.b16 %v2742
        %v2821 = vunpack.c.l.b16 %v2756
        %v2822 = vunpack.c.l.b16 %v2766
        %v2823 = vunpack.c.l.b16 %v2780
        %v2824 = vunpack.c.l.b16 %v2790
        %v2825 = vpack.c.b16 %v2794, %v2793
        %v2826 = vpack.c.b16 %v2796, %v2795
        %v2827 = vpack.c.b16 %v2798, %v2797
        %v2828 = vpack.c.b16 %v2800, %v2799
        %v2829 = vpack.c.b16 %v2802, %v2801
        %v2830 = vpack.c.b16 %v2804, %v2803
        %v2831 = vpack.c.b16 %v2806, %v2805
        %v2832 = vpack.c.b16 %v2808, %v2807
        %v2833 = vpack.c.b16 %v2810, %v2809
        %v2834 = vpack.c.b16 %v2812, %v2811
        %v2835 = vpack.c.b16 %v2814, %v2813
        %v2836 = vpack.c.b16 %v2816, %v2815
        %v2837 = vpack.c.b16 %v2818, %v2817
        %v2838 = vpack.c.b16 %v2820, %v2819
        %v2839 = vpack.c.b16 %v2822, %v2821
        %v2840 = vpack.c.b16 %v2824, %v2823
        %v2843 = vunpack.c.l.s4 1983009808
        %v2844 = vunpack.c.0.s8 %v2843
        %v2845 = vlaneseq
        %v2846 = vshrl.u32 %v2845, 7
        %v2847 = vsub.s32 %v2844, %v2846
        %v2848 = vrot.slane %v2792, %v2847
        %v2849 = vcombine.high %v2848, %v2848
        %v2851 = vsel %vm755, %v2825, 0
        %v2854 = vsel %vm755, %v2826, 0
        %v2857 = vsel %vm755, %v2827, 0
        %v2860 = vsel %vm755, %v2828, 0
        %v2863 = vsel %vm755, %v2829, 0
        %v2866 = vsel %vm755, %v2830, 0
        %v2869 = vsel %vm755, %v2831, 0
        %v2872 = vsel %vm755, %v2832, 0
        %v2875 = vsel %vm755, %v2833, 0
        %v2878 = vsel %vm755, %v2834, 0
        %v2881 = vsel %vm755, %v2835, 0
        %v2884 = vsel %vm755, %v2836, 0
        %v2887 = vsel %vm755, %v2837, 0
        %v2890 = vsel %vm755, %v2838, 0
        %v2893 = vsel %vm755, %v2839, 0
        %v2896 = vsel %vm755, %v2840, 0
        %v2899 = vsel %vm804, %v2848, 0
        %v2902 = vsel %vm804, %v2849, 0
        %2904 = vmatprep.subr.bf16.mxu0 0
        %2905 = vmatpush1.bf16.msra.mxu0 0
        %2906 = vmatprep.subr.bf16.mxu0 0
        %2907 = vmatpush1.bf16.msra.mxu0 0
        %2908 = vmatprep.subr.bf16.mxu0 0
        %2909 = vmatpush1.bf16.msra.mxu0 0
        %2910 = vmatprep.subr.bf16.mxu0 0
        %2911 = vmatpush1.bf16.msra.mxu0 0
        %2912 = vmatprep.subr.bf16.mxu0 0
        %2913 = vmatpush1.bf16.msra.mxu0 0
        %2914 = vmatprep.subr.bf16.mxu0 0
        %2915 = vmatpush1.bf16.msra.mxu0 0
        %2916 = vmatprep.subr.bf16.mxu0 0
        %2917 = vmatpush1.bf16.msra.mxu0 0
        %2918 = vmatprep.subr.bf16.mxu0 %v2902
        %2919 = vmatpush1.bf16.msra.mxu0 %v2899
        %2920 = vmatprep.subr.bf16.mxu0 0
        %2921 = vmatpush2.bf16.msra.mxu0 0
        %2922 = vmatprep.subr.bf16.mxu0 0
        %2923 = vmatpush2.bf16.msra.mxu0 0
        %2924 = vmatprep.subr.bf16.mxu0 0
        %2925 = vmatpush2.bf16.msra.mxu0 0
        %2926 = vmatprep.subr.bf16.mxu0 0
        %2927 = vmatpush2.bf16.msra.mxu0 0
        %2928 = vmatprep.subr.bf16.mxu0 0
        %2929 = vmatpush2.bf16.msra.mxu0 0
        %2930 = vmatprep.subr.bf16.mxu0 0
        %2931 = vmatpush2.bf16.msra.mxu0 0
        %2932 = vmatprep.subr.bf16.mxu0 0
        %2933 = vmatpush2.bf16.msra.mxu0 0
        %2934 = vmatprep.subr.bf16.mxu0 0
        %2935 = vmatpush2.bf16.msra.mxu0 0
        %2936 = vmatprep.mubr.bf16.mxu0 0
        %2937 = vmatmul.mubr.bf16.gmra.mxu0 %v2851
        %v2938 = vpop.f32.mrf.mxu0
        %v2939 = vadd.f32 0.0, %v2938
        %v2940 = vpop.f32.mrf.mxu0
        %v2941 = vadd.f32 0.0, %v2940
        %v2942 = vpop.f32.mrf.mxu0
        %v2943 = vadd.f32 0.0, %v2942
        %v2944 = vpop.f32.mrf.mxu0
        %v2945 = vadd.f32 0.0, %v2944
        %2946 = vmatprep.mubr.bf16.mxu0 0
        %2947 = vmatmul.mubr.bf16.gmra.mxu0 %v2854
        %v2948 = vpop.f32.mrf.mxu0
        %v2949 = vadd.f32 0.0, %v2948
        %v2950 = vpop.f32.mrf.mxu0
        %v2951 = vadd.f32 0.0, %v2950
        %v2952 = vpop.f32.mrf.mxu0
        %v2953 = vadd.f32 0.0, %v2952
        %v2954 = vpop.f32.mrf.mxu0
        %v2955 = vadd.f32 0.0, %v2954
        %2956 = vmatprep.mubr.bf16.mxu0 0
        %2957 = vmatmul.mubr.bf16.gmra.mxu0 %v2857
        %v2958 = vpop.f32.mrf.mxu0
        %v2959 = vadd.f32 0.0, %v2958
        %v2960 = vpop.f32.mrf.mxu0
        %v2961 = vadd.f32 0.0, %v2960
        %v2962 = vpop.f32.mrf.mxu0
        %v2963 = vadd.f32 0.0, %v2962
        %v2964 = vpop.f32.mrf.mxu0
        %v2965 = vadd.f32 0.0, %v2964
        %2966 = vmatprep.mubr.bf16.mxu0 0
        %2967 = vmatmul.mubr.bf16.gmra.mxu0 %v2860
        %v2968 = vpop.f32.mrf.mxu0
        %v2969 = vadd.f32 0.0, %v2968
        %v2970 = vpop.f32.mrf.mxu0
        %v2971 = vadd.f32 0.0, %v2970
        %v2972 = vpop.f32.mrf.mxu0
        %v2973 = vadd.f32 0.0, %v2972
        %v2974 = vpop.f32.mrf.mxu0
        %v2975 = vadd.f32 0.0, %v2974
        %2976 = vmatprep.mubr.bf16.mxu0 0
        %2977 = vmatmul.mubr.bf16.gmra.mxu0 %v2863
        %v2978 = vpop.f32.mrf.mxu0
        %v2979 = vadd.f32 0.0, %v2978
        %v2980 = vpop.f32.mrf.mxu0
        %v2981 = vadd.f32 0.0, %v2980
        %v2982 = vpop.f32.mrf.mxu0
        %v2983 = vadd.f32 0.0, %v2982
        %v2984 = vpop.f32.mrf.mxu0
        %v2985 = vadd.f32 0.0, %v2984
        %2986 = vmatprep.mubr.bf16.mxu0 0
        %2987 = vmatmul.mubr.bf16.gmra.mxu0 %v2866
        %v2988 = vpop.f32.mrf.mxu0
        %v2989 = vadd.f32 0.0, %v2988
        %v2990 = vpop.f32.mrf.mxu0
        %v2991 = vadd.f32 0.0, %v2990
        %v2992 = vpop.f32.mrf.mxu0
        %v2993 = vadd.f32 0.0, %v2992
        %v2994 = vpop.f32.mrf.mxu0
        %v2995 = vadd.f32 0.0, %v2994
        %2996 = vmatprep.mubr.bf16.mxu0 0
        %2997 = vmatmul.mubr.bf16.gmra.mxu0 %v2869
        %v2998 = vpop.f32.mrf.mxu0
        %v2999 = vadd.f32 0.0, %v2998
        %v3000 = vpop.f32.mrf.mxu0
        %v3001 = vadd.f32 0.0, %v3000
        %v3002 = vpop.f32.mrf.mxu0
        %v3003 = vadd.f32 0.0, %v3002
        %v3004 = vpop.f32.mrf.mxu0
        %v3005 = vadd.f32 0.0, %v3004
        %3006 = vmatprep.mubr.bf16.mxu0 0
        %3007 = vmatmul.mubr.bf16.gmra.mxu0 %v2872
        %v3008 = vpop.f32.mrf.mxu0
        %v3009 = vadd.f32 0.0, %v3008
        %v3010 = vpop.f32.mrf.mxu0
        %v3011 = vadd.f32 0.0, %v3010
        %v3012 = vpop.f32.mrf.mxu0
        %v3013 = vadd.f32 0.0, %v3012
        %v3014 = vpop.f32.mrf.mxu0
        %v3015 = vadd.f32 0.0, %v3014
        %3016 = vmatprep.mubr.bf16.mxu0 0
        %3017 = vmatmul.mubr.bf16.gmra.mxu0 %v2875
        %v3018 = vpop.f32.mrf.mxu0
        %v3019 = vadd.f32 0.0, %v3018
        %v3020 = vpop.f32.mrf.mxu0
        %v3021 = vadd.f32 0.0, %v3020
        %v3022 = vpop.f32.mrf.mxu0
        %v3023 = vadd.f32 0.0, %v3022
        %v3024 = vpop.f32.mrf.mxu0
        %v3025 = vadd.f32 0.0, %v3024
        %3026 = vmatprep.mubr.bf16.mxu0 0
        %3027 = vmatmul.mubr.bf16.gmra.mxu0 %v2878
        %v3028 = vpop.f32.mrf.mxu0
        %v3029 = vadd.f32 0.0, %v3028
        %v3030 = vpop.f32.mrf.mxu0
        %v3031 = vadd.f32 0.0, %v3030
        %v3032 = vpop.f32.mrf.mxu0
        %v3033 = vadd.f32 0.0, %v3032
        %v3034 = vpop.f32.mrf.mxu0
        %v3035 = vadd.f32 0.0, %v3034
        %3036 = vmatprep.mubr.bf16.mxu0 0
        %3037 = vmatmul.mubr.bf16.gmra.mxu0 %v2881
        %v3038 = vpop.f32.mrf.mxu0
        %v3039 = vadd.f32 0.0, %v3038
        %v3040 = vpop.f32.mrf.mxu0
        %v3041 = vadd.f32 0.0, %v3040
        %v3042 = vpop.f32.mrf.mxu0
        %v3043 = vadd.f32 0.0, %v3042
        %v3044 = vpop.f32.mrf.mxu0
        %v3045 = vadd.f32 0.0, %v3044
        %3046 = vmatprep.mubr.bf16.mxu0 0
        %3047 = vmatmul.mubr.bf16.gmra.mxu0 %v2884
        %v3048 = vpop.f32.mrf.mxu0
        %v3049 = vadd.f32 0.0, %v3048
        %v3050 = vpop.f32.mrf.mxu0
        %v3051 = vadd.f32 0.0, %v3050
        %v3052 = vpop.f32.mrf.mxu0
        %v3053 = vadd.f32 0.0, %v3052
        %v3054 = vpop.f32.mrf.mxu0
        %v3055 = vadd.f32 0.0, %v3054
        %3056 = vmatprep.mubr.bf16.mxu0 0
        %3057 = vmatmul.mubr.bf16.gmra.mxu0 %v2887
        %v3058 = vpop.f32.mrf.mxu0
        %v3059 = vadd.f32 0.0, %v3058
        %v3060 = vpop.f32.mrf.mxu0
        %v3061 = vadd.f32 0.0, %v3060
        %v3062 = vpop.f32.mrf.mxu0
        %v3063 = vadd.f32 0.0, %v3062
        %v3064 = vpop.f32.mrf.mxu0
        %v3065 = vadd.f32 0.0, %v3064
        %3066 = vmatprep.mubr.bf16.mxu0 0
        %3067 = vmatmul.mubr.bf16.gmra.mxu0 %v2890
        %v3068 = vpop.f32.mrf.mxu0
        %v3069 = vadd.f32 0.0, %v3068
        %v3070 = vpop.f32.mrf.mxu0
        %v3071 = vadd.f32 0.0, %v3070
        %v3072 = vpop.f32.mrf.mxu0
        %v3073 = vadd.f32 0.0, %v3072
        %v3074 = vpop.f32.mrf.mxu0
        %v3075 = vadd.f32 0.0, %v3074
        %3076 = vmatprep.mubr.bf16.mxu0 0
        %3077 = vmatmul.mubr.bf16.gmra.mxu0 %v2893
        %v3078 = vpop.f32.mrf.mxu0
        %v3079 = vadd.f32 0.0, %v3078
        %v3080 = vpop.f32.mrf.mxu0
        %v3081 = vadd.f32 0.0, %v3080
        %v3082 = vpop.f32.mrf.mxu0
        %v3083 = vadd.f32 0.0, %v3082
        %v3084 = vpop.f32.mrf.mxu0
        %v3085 = vadd.f32 0.0, %v3084
        %3086 = vmatprep.mubr.bf16.mxu0 0
        %3087 = vmatmul.mubr.bf16.gmra.mxu0 %v2896
        %v3088 = vpop.f32.mrf.mxu0
        %v3089 = vadd.f32 0.0, %v3088
        %v3090 = vpop.f32.mrf.mxu0
        %v3091 = vadd.f32 0.0, %v3090
        %v3092 = vpop.f32.mrf.mxu0
        %v3093 = vadd.f32 0.0, %v3092
        %v3094 = vpop.f32.mrf.mxu0
        %v3095 = vadd.f32 0.0, %v3094
        %3096 = vdwg.mxu0
        %v3097 = vadd.f32 %v2295, %v2939
        %v3098 = vadd.f32 %v2296, %v2941
        %v3099 = vadd.f32 %v2297, %v2943
        %v3100 = vadd.f32 %v2298, %v2945
        %v3101 = vadd.f32 %v2299, %v2949
        %v3102 = vadd.f32 %v2300, %v2951
        %v3103 = vadd.f32 %v2301, %v2953
        %v3104 = vadd.f32 %v2302, %v2955
        %v3105 = vadd.f32 %v2303, %v2959
        %v3106 = vadd.f32 %v2304, %v2961
        %v3107 = vadd.f32 %v2305, %v2963
        %v3108 = vadd.f32 %v2306, %v2965
        %v3109 = vadd.f32 %v2307, %v2969
        %v3110 = vadd.f32 %v2308, %v2971
        %v3111 = vadd.f32 %v2309, %v2973
        %v3112 = vadd.f32 %v2310, %v2975
        %v3113 = vadd.f32 %v2311, %v2979
        %v3114 = vadd.f32 %v2312, %v2981
        %v3115 = vadd.f32 %v2313, %v2983
        %v3116 = vadd.f32 %v2314, %v2985
        %v3117 = vadd.f32 %v2315, %v2989
        %v3118 = vadd.f32 %v2316, %v2991
        %v3119 = vadd.f32 %v2317, %v2993
        %v3120 = vadd.f32 %v2318, %v2995
        %v3121 = vadd.f32 %v2319, %v2999
        %v3122 = vadd.f32 %v2320, %v3001
        %v3123 = vadd.f32 %v2321, %v3003
        %v3124 = vadd.f32 %v2322, %v3005
        %v3125 = vadd.f32 %v2323, %v3009
        %v3126 = vadd.f32 %v2324, %v3011
        %v3127 = vadd.f32 %v2325, %v3013
        %v3128 = vadd.f32 %v2326, %v3015
        %v3129 = vadd.f32 %v2327, %v3019
        %v3130 = vadd.f32 %v2328, %v3021
        %v3131 = vadd.f32 %v2329, %v3023
        %v3132 = vadd.f32 %v2330, %v3025
        %v3133 = vadd.f32 %v2331, %v3029
        %v3134 = vadd.f32 %v2332, %v3031
        %v3135 = vadd.f32 %v2333, %v3033
        %v3136 = vadd.f32 %v2334, %v3035
        %v3137 = vadd.f32 %v2335, %v3039
        %v3138 = vadd.f32 %v2336, %v3041
        %v3139 = vadd.f32 %v2337, %v3043
        %v3140 = vadd.f32 %v2338, %v3045
        %v3141 = vadd.f32 %v2339, %v3049
        %v3142 = vadd.f32 %v2340, %v3051
        %v3143 = vadd.f32 %v2341, %v3053
        %v3144 = vadd.f32 %v2342, %v3055
        %v3145 = vadd.f32 %v2343, %v3059
        %v3146 = vadd.f32 %v2344, %v3061
        %v3147 = vadd.f32 %v2345, %v3063
        %v3148 = vadd.f32 %v2346, %v3065
        %v3149 = vadd.f32 %v2347, %v3069
        %v3150 = vadd.f32 %v2348, %v3071
        %v3151 = vadd.f32 %v2349, %v3073
        %v3152 = vadd.f32 %v2350, %v3075
        %v3153 = vadd.f32 %v2351, %v3079
        %v3154 = vadd.f32 %v2352, %v3081
        %v3155 = vadd.f32 %v2353, %v3083
        %v3156 = vadd.f32 %v2354, %v3085
        %v3157 = vadd.f32 %v2355, %v3089
        %v3158 = vadd.f32 %v2356, %v3091
        %v3159 = vadd.f32 %v2357, %v3093
        %v3160 = vadd.f32 %v2358, %v3095
        %v3161 = vld [vmem:[%s1924] sm:$0xe]
        %v3162 = vld [vmem:[%s1924 + $0x4] sm:$0xf]
        %v3163 = vld [vmem:[%s1924 + $0x8] sm:$0x1]
        %v3164 = vld [vmem:[%s1924 + $0xc] sm:$0xe]
        %v3165 = vld [vmem:[%s1924 + $0x10] sm:$0xf]
        %v3166 = vld [vmem:[%s1924 + $0x14] sm:$0x1]
        %v3167 = vld [vmem:[%s1924 + $0x18] sm:$0xe]
        %v3168 = vld [vmem:[%s1924 + $0x1c] sm:$0xf]
        %v3169 = vld [vmem:[%s1924 + $0x20] sm:$0x1]
        %v3170 = vld [vmem:[%s1924 + $0x24] sm:$0xe]
        %v3171 = vld [vmem:[%s1924 + $0x28] sm:$0xf]
        %v3172 = vld [vmem:[%s1924 + $0x2c] sm:$0x1]
        %v3173 = vld [vmem:[%s1924 + $0x30] sm:$0xe]
        %v3174 = vld [vmem:[%s1924 + $0x34] sm:$0xf]
        %v3175 = vld [vmem:[%s1924 + $0x38] sm:$0x1]
        %v3176 = vld [vmem:[%s1924 + $0x3c] sm:$0xe]
        %v3177 = vld [vmem:[%s1924 + $0x40] sm:$0xf]
        %v3178 = vld [vmem:[%s1924 + $0x44] sm:$0x1]
        %v3179 = vld [vmem:[%s1924 + $0x48] sm:$0xe]
        %v3180 = vld [vmem:[%s1924 + $0x4c] sm:$0xf]
        %v3181 = vld [vmem:[%s1924 + $0x50] sm:$0x1]
        %v3182 = vld [vmem:[%s1924 + $0x54] sm:$0xe]
        %v3183 = vld [vmem:[%s1924 + $0x58] sm:$0xf]
        %v3184 = vld [vmem:[%s1924 + $0x5c] sm:$0x1]
        %v3185 = vld [vmem:[%s1924 + $0x60] sm:$0xe]
        %v3186 = vld [vmem:[%s1924 + $0x64] sm:$0xf]
        %v3187 = vld [vmem:[%s1924 + $0x68] sm:$0x1]
        %v3188 = vld [vmem:[%s1924 + $0x6c] sm:$0xe]
        %v3189 = vld [vmem:[%s1924 + $0x70] sm:$0xf]
        %v3190 = vld [vmem:[%s1924 + $0x74] sm:$0x1]
        %v3191 = vld [vmem:[%s1924 + $0x78] sm:$0xe]
        %v3192 = vld [vmem:[%s1924 + $0x7c] sm:$0xf]
        %v3193 = vld [vmem:[%s1924 + $0x80] sm:$0x1]
        %v3194 = vld [vmem:[%s1924 + $0x84] sm:$0xe]
        %v3195 = vld [vmem:[%s1924 + $0x88] sm:$0xf]
        %v3196 = vld [vmem:[%s1924 + $0x8c] sm:$0x1]
        %v3197 = vld [vmem:[%s1924 + $0x90] sm:$0xe]
        %v3198 = vld [vmem:[%s1924 + $0x94] sm:$0xf]
        %v3199 = vld [vmem:[%s1924 + $0x98] sm:$0x1]
        %v3200 = vld [vmem:[%s1924 + $0x9c] sm:$0xe]
        %v3201 = vld [vmem:[%s1924 + $0xa0] sm:$0xf]
        %v3202 = vld [vmem:[%s1924 + $0xa4] sm:$0x1]
        %v3203 = vld [vmem:[%s1924 + $0xa8] sm:$0xe]
        %v3204 = vld [vmem:[%s1924 + $0xac] sm:$0xf]
        %v3205 = vld [vmem:[%s1924 + $0xb0] sm:$0x1]
        %v3206 = vld [vmem:[%s1924 + $0xb4] sm:$0xe]
        %v3207 = vld [vmem:[%s1924 + $0xb8] sm:$0xf]
        %v3208 = vld [vmem:[%s1924 + $0xbc] sm:$0x1]
        %v3257 = vrot.slane %v3161, 5
        %v3258 = vrot.slane %v3257, 4
        %v3259 = vrot.slane %v3162, 5
        %v3260 = vsel %vm1438, %v3258, %v3259
        %v3261 = vrot.slane %v3259, 4
        %v3262 = vrot.slane %v3163, 5
        %v3263 = vsel %vm1438, %v3261, %v3262
        %v3264 = vrot.slane %v3164, 5
        %v3265 = vrot.slane %v3264, 4
        %v3266 = vrot.slane %v3165, 5
        %v3267 = vsel %vm1438, %v3265, %v3266
        %v3268 = vrot.slane %v3266, 4
        %v3269 = vrot.slane %v3166, 5
        %v3270 = vsel %vm1438, %v3268, %v3269
        %v3271 = vrot.slane %v3167, 5
        %v3272 = vrot.slane %v3271, 4
        %v3273 = vrot.slane %v3168, 5
        %v3274 = vsel %vm1438, %v3272, %v3273
        %v3275 = vrot.slane %v3273, 4
        %v3276 = vrot.slane %v3169, 5
        %v3277 = vsel %vm1438, %v3275, %v3276
        %v3278 = vrot.slane %v3170, 5
        %v3279 = vrot.slane %v3278, 4
        %v3280 = vrot.slane %v3171, 5
        %v3281 = vsel %vm1438, %v3279, %v3280
        %v3282 = vrot.slane %v3280, 4
        %v3283 = vrot.slane %v3172, 5
        %v3284 = vsel %vm1438, %v3282, %v3283
        %v3285 = vrot.slane %v3173, 5
        %v3286 = vrot.slane %v3285, 4
        %v3287 = vrot.slane %v3174, 5
        %v3288 = vsel %vm1438, %v3286, %v3287
        %v3289 = vrot.slane %v3287, 4
        %v3290 = vrot.slane %v3175, 5
        %v3291 = vsel %vm1438, %v3289, %v3290
        %v3292 = vrot.slane %v3176, 5
        %v3293 = vrot.slane %v3292, 4
        %v3294 = vrot.slane %v3177, 5
        %v3295 = vsel %vm1438, %v3293, %v3294
        %v3296 = vrot.slane %v3294, 4
        %v3297 = vrot.slane %v3178, 5
        %v3298 = vsel %vm1438, %v3296, %v3297
        %v3299 = vrot.slane %v3179, 5
        %v3300 = vrot.slane %v3299, 4
        %v3301 = vrot.slane %v3180, 5
        %v3302 = vsel %vm1438, %v3300, %v3301
        %v3303 = vrot.slane %v3301, 4
        %v3304 = vrot.slane %v3181, 5
        %v3305 = vsel %vm1438, %v3303, %v3304
        %v3306 = vrot.slane %v3182, 5
        %v3307 = vrot.slane %v3306, 4
        %v3308 = vrot.slane %v3183, 5
        %v3309 = vsel %vm1438, %v3307, %v3308
        %v3310 = vrot.slane %v3308, 4
        %v3311 = vrot.slane %v3184, 5
        %v3312 = vsel %vm1438, %v3310, %v3311
        %v3313 = vrot.slane %v3185, 5
        %v3314 = vrot.slane %v3313, 4
        %v3315 = vrot.slane %v3186, 5
        %v3316 = vsel %vm1438, %v3314, %v3315
        %v3317 = vrot.slane %v3315, 4
        %v3318 = vrot.slane %v3187, 5
        %v3319 = vsel %vm1438, %v3317, %v3318
        %v3320 = vrot.slane %v3188, 5
        %v3321 = vrot.slane %v3320, 4
        %v3322 = vrot.slane %v3189, 5
        %v3323 = vsel %vm1438, %v3321, %v3322
        %v3324 = vrot.slane %v3322, 4
        %v3325 = vrot.slane %v3190, 5
        %v3326 = vsel %vm1438, %v3324, %v3325
        %v3327 = vrot.slane %v3191, 5
        %v3328 = vrot.slane %v3327, 4
        %v3329 = vrot.slane %v3192, 5
        %v3330 = vsel %vm1438, %v3328, %v3329
        %v3331 = vrot.slane %v3329, 4
        %v3332 = vrot.slane %v3193, 5
        %v3333 = vsel %vm1438, %v3331, %v3332
        %v3334 = vrot.slane %v3194, 5
        %v3335 = vrot.slane %v3334, 4
        %v3336 = vrot.slane %v3195, 5
        %v3337 = vsel %vm1438, %v3335, %v3336
        %v3338 = vrot.slane %v3336, 4
        %v3339 = vrot.slane %v3196, 5
        %v3340 = vsel %vm1438, %v3338, %v3339
        %v3341 = vrot.slane %v3197, 5
        %v3342 = vrot.slane %v3341, 4
        %v3343 = vrot.slane %v3198, 5
        %v3344 = vsel %vm1438, %v3342, %v3343
        %v3345 = vrot.slane %v3343, 4
        %v3346 = vrot.slane %v3199, 5
        %v3347 = vsel %vm1438, %v3345, %v3346
        %v3348 = vrot.slane %v3200, 5
        %v3349 = vrot.slane %v3348, 4
        %v3350 = vrot.slane %v3201, 5
        %v3351 = vsel %vm1438, %v3349, %v3350
        %v3352 = vrot.slane %v3350, 4
        %v3353 = vrot.slane %v3202, 5
        %v3354 = vsel %vm1438, %v3352, %v3353
        %v3355 = vrot.slane %v3203, 5
        %v3356 = vrot.slane %v3355, 4
        %v3357 = vrot.slane %v3204, 5
        %v3358 = vsel %vm1438, %v3356, %v3357
        %v3359 = vrot.slane %v3357, 4
        %v3360 = vrot.slane %v3205, 5
        %v3361 = vsel %vm1438, %v3359, %v3360
        %v3362 = vrot.slane %v3206, 5
        %v3363 = vrot.slane %v3362, 4
        %v3364 = vrot.slane %v3207, 5
        %v3365 = vsel %vm1438, %v3363, %v3364
        %v3366 = vrot.slane %v3364, 4
        %v3367 = vrot.slane %v3208, 5
        %v3368 = vsel %vm1438, %v3366, %v3367
        %s3369 = scalar_lea.vmem %s2, 20
        %v3370 = vld [vmem:[%s3369] sm:$0xf]
        %v3371 = vunpack.c.l.b16 %v3260
        %v3372 = vunpack.c.l.b16 %v3263
        %v3373 = vunpack.c.l.b16 %v3267
        %v3374 = vunpack.c.l.b16 %v3270
        %v3375 = vunpack.c.l.b16 %v3274
        %v3376 = vunpack.c.l.b16 %v3277
        %v3377 = vunpack.c.l.b16 %v3281
        %v3378 = vunpack.c.l.b16 %v3284
        %v3379 = vunpack.c.l.b16 %v3288
        %v3380 = vunpack.c.l.b16 %v3291
        %v3381 = vunpack.c.l.b16 %v3295
        %v3382 = vunpack.c.l.b16 %v3298
        %v3383 = vunpack.c.l.b16 %v3302
        %v3384 = vunpack.c.l.b16 %v3305
        %v3385 = vunpack.c.l.b16 %v3309
        %v3386 = vunpack.c.l.b16 %v3312
        %v3387 = vunpack.c.l.b16 %v3316
        %v3388 = vunpack.c.l.b16 %v3319
        %v3389 = vunpack.c.l.b16 %v3323
        %v3390 = vunpack.c.l.b16 %v3326
        %v3391 = vunpack.c.l.b16 %v3330
        %v3392 = vunpack.c.l.b16 %v3333
        %v3393 = vunpack.c.l.b16 %v3337
        %v3394 = vunpack.c.l.b16 %v3340
        %v3395 = vunpack.c.l.b16 %v3344
        %v3396 = vunpack.c.l.b16 %v3347
        %v3397 = vunpack.c.l.b16 %v3351
        %v3398 = vunpack.c.l.b16 %v3354
        %v3399 = vunpack.c.l.b16 %v3358
        %v3400 = vunpack.c.l.b16 %v3361
        %v3401 = vunpack.c.l.b16 %v3365
        %v3402 = vunpack.c.l.b16 %v3368
        %v3403 = vpack.c.b16 %v3372, %v3371
        %v3404 = vpack.c.b16 %v3374, %v3373
        %v3405 = vpack.c.b16 %v3376, %v3375
        %v3406 = vpack.c.b16 %v3378, %v3377
        %v3407 = vpack.c.b16 %v3380, %v3379
        %v3408 = vpack.c.b16 %v3382, %v3381
        %v3409 = vpack.c.b16 %v3384, %v3383
        %v3410 = vpack.c.b16 %v3386, %v3385
        %v3411 = vpack.c.b16 %v3388, %v3387
        %v3412 = vpack.c.b16 %v3390, %v3389
        %v3413 = vpack.c.b16 %v3392, %v3391
        %v3414 = vpack.c.b16 %v3394, %v3393
        %v3415 = vpack.c.b16 %v3396, %v3395
        %v3416 = vpack.c.b16 %v3398, %v3397
        %v3417 = vpack.c.b16 %v3400, %v3399
        %v3418 = vpack.c.b16 %v3402, %v3401
        %v3421 = vunpack.c.l.s4 1983009808
        %v3422 = vunpack.c.0.s8 %v3421
        %v3423 = vlaneseq
        %v3424 = vshrl.u32 %v3423, 7
        %v3425 = vsub.s32 %v3422, %v3424
        %v3426 = vrot.slane %v3370, %v3425
        %v3427 = vcombine.high %v3426, %v3426
        %v3429 = vsel %vm755, %v3403, 0
        %v3432 = vsel %vm755, %v3404, 0
        %v3435 = vsel %vm755, %v3405, 0
        %v3438 = vsel %vm755, %v3406, 0
        %v3441 = vsel %vm755, %v3407, 0
        %v3444 = vsel %vm755, %v3408, 0
        %v3447 = vsel %vm755, %v3409, 0
        %v3450 = vsel %vm755, %v3410, 0
        %v3453 = vsel %vm755, %v3411, 0
        %v3456 = vsel %vm755, %v3412, 0
        %v3459 = vsel %vm755, %v3413, 0
        %v3462 = vsel %vm755, %v3414, 0
        %v3465 = vsel %vm755, %v3415, 0
        %v3468 = vsel %vm755, %v3416, 0
        %v3471 = vsel %vm755, %v3417, 0
        %v3474 = vsel %vm755, %v3418, 0
        %v3477 = vsel %vm804, %v3426, 0
        %v3480 = vsel %vm804, %v3427, 0
        %3482 = vmatprep.subr.bf16.mxu0 0
        %3483 = vmatpush1.bf16.msra.mxu0 0
        %3484 = vmatprep.subr.bf16.mxu0 0
        %3485 = vmatpush1.bf16.msra.mxu0 0
        %3486 = vmatprep.subr.bf16.mxu0 0
        %3487 = vmatpush1.bf16.msra.mxu0 0
        %3488 = vmatprep.subr.bf16.mxu0 0
        %3489 = vmatpush1.bf16.msra.mxu0 0
        %3490 = vmatprep.subr.bf16.mxu0 0
        %3491 = vmatpush1.bf16.msra.mxu0 0
        %3492 = vmatprep.subr.bf16.mxu0 0
        %3493 = vmatpush1.bf16.msra.mxu0 0
        %3494 = vmatprep.subr.bf16.mxu0 0
        %3495 = vmatpush1.bf16.msra.mxu0 0
        %3496 = vmatprep.subr.bf16.mxu0 %v3480
        %3497 = vmatpush1.bf16.msra.mxu0 %v3477
        %3498 = vmatprep.subr.bf16.mxu0 0
        %3499 = vmatpush2.bf16.msra.mxu0 0
        %3500 = vmatprep.subr.bf16.mxu0 0
        %3501 = vmatpush2.bf16.msra.mxu0 0
        %3502 = vmatprep.subr.bf16.mxu0 0
        %3503 = vmatpush2.bf16.msra.mxu0 0
        %3504 = vmatprep.subr.bf16.mxu0 0
        %3505 = vmatpush2.bf16.msra.mxu0 0
        %3506 = vmatprep.subr.bf16.mxu0 0
        %3507 = vmatpush2.bf16.msra.mxu0 0
        %3508 = vmatprep.subr.bf16.mxu0 0
        %3509 = vmatpush2.bf16.msra.mxu0 0
        %3510 = vmatprep.subr.bf16.mxu0 0
        %3511 = vmatpush2.bf16.msra.mxu0 0
        %3512 = vmatprep.subr.bf16.mxu0 0
        %3513 = vmatpush2.bf16.msra.mxu0 0
        %3514 = vmatprep.mubr.bf16.mxu0 0
        %3515 = vmatmul.mubr.bf16.gmra.mxu0 %v3429
        %v3516 = vpop.f32.mrf.mxu0
        %v3517 = vadd.f32 0.0, %v3516
        %v3518 = vpop.f32.mrf.mxu0
        %v3519 = vadd.f32 0.0, %v3518
        %v3520 = vpop.f32.mrf.mxu0
        %v3521 = vadd.f32 0.0, %v3520
        %v3522 = vpop.f32.mrf.mxu0
        %v3523 = vadd.f32 0.0, %v3522
        %3524 = vmatprep.mubr.bf16.mxu0 0
        %3525 = vmatmul.mubr.bf16.gmra.mxu0 %v3432
        %v3526 = vpop.f32.mrf.mxu0
        %v3527 = vadd.f32 0.0, %v3526
        %v3528 = vpop.f32.mrf.mxu0
        %v3529 = vadd.f32 0.0, %v3528
        %v3530 = vpop.f32.mrf.mxu0
        %v3531 = vadd.f32 0.0, %v3530
        %v3532 = vpop.f32.mrf.mxu0
        %v3533 = vadd.f32 0.0, %v3532
        %3534 = vmatprep.mubr.bf16.mxu0 0
        %3535 = vmatmul.mubr.bf16.gmra.mxu0 %v3435
        %v3536 = vpop.f32.mrf.mxu0
        %v3537 = vadd.f32 0.0, %v3536
        %v3538 = vpop.f32.mrf.mxu0
        %v3539 = vadd.f32 0.0, %v3538
        %v3540 = vpop.f32.mrf.mxu0
        %v3541 = vadd.f32 0.0, %v3540
        %v3542 = vpop.f32.mrf.mxu0
        %v3543 = vadd.f32 0.0, %v3542
        %3544 = vmatprep.mubr.bf16.mxu0 0
        %3545 = vmatmul.mubr.bf16.gmra.mxu0 %v3438
        %v3546 = vpop.f32.mrf.mxu0
        %v3547 = vadd.f32 0.0, %v3546
        %v3548 = vpop.f32.mrf.mxu0
        %v3549 = vadd.f32 0.0, %v3548
        %v3550 = vpop.f32.mrf.mxu0
        %v3551 = vadd.f32 0.0, %v3550
        %v3552 = vpop.f32.mrf.mxu0
        %v3553 = vadd.f32 0.0, %v3552
        %3554 = vmatprep.mubr.bf16.mxu0 0
        %3555 = vmatmul.mubr.bf16.gmra.mxu0 %v3441
        %v3556 = vpop.f32.mrf.mxu0
        %v3557 = vadd.f32 0.0, %v3556
        %v3558 = vpop.f32.mrf.mxu0
        %v3559 = vadd.f32 0.0, %v3558
        %v3560 = vpop.f32.mrf.mxu0
        %v3561 = vadd.f32 0.0, %v3560
        %v3562 = vpop.f32.mrf.mxu0
        %v3563 = vadd.f32 0.0, %v3562
        %3564 = vmatprep.mubr.bf16.mxu0 0
        %3565 = vmatmul.mubr.bf16.gmra.mxu0 %v3444
        %v3566 = vpop.f32.mrf.mxu0
        %v3567 = vadd.f32 0.0, %v3566
        %v3568 = vpop.f32.mrf.mxu0
        %v3569 = vadd.f32 0.0, %v3568
        %v3570 = vpop.f32.mrf.mxu0
        %v3571 = vadd.f32 0.0, %v3570
        %v3572 = vpop.f32.mrf.mxu0
        %v3573 = vadd.f32 0.0, %v3572
        %3574 = vmatprep.mubr.bf16.mxu0 0
        %3575 = vmatmul.mubr.bf16.gmra.mxu0 %v3447
        %v3576 = vpop.f32.mrf.mxu0
        %v3577 = vadd.f32 0.0, %v3576
        %v3578 = vpop.f32.mrf.mxu0
        %v3579 = vadd.f32 0.0, %v3578
        %v3580 = vpop.f32.mrf.mxu0
        %v3581 = vadd.f32 0.0, %v3580
        %v3582 = vpop.f32.mrf.mxu0
        %v3583 = vadd.f32 0.0, %v3582
        %3584 = vmatprep.mubr.bf16.mxu0 0
        %3585 = vmatmul.mubr.bf16.gmra.mxu0 %v3450
        %v3586 = vpop.f32.mrf.mxu0
        %v3587 = vadd.f32 0.0, %v3586
        %v3588 = vpop.f32.mrf.mxu0
        %v3589 = vadd.f32 0.0, %v3588
        %v3590 = vpop.f32.mrf.mxu0
        %v3591 = vadd.f32 0.0, %v3590
        %v3592 = vpop.f32.mrf.mxu0
        %v3593 = vadd.f32 0.0, %v3592
        %3594 = vmatprep.mubr.bf16.mxu0 0
        %3595 = vmatmul.mubr.bf16.gmra.mxu0 %v3453
        %v3596 = vpop.f32.mrf.mxu0
        %v3597 = vadd.f32 0.0, %v3596
        %v3598 = vpop.f32.mrf.mxu0
        %v3599 = vadd.f32 0.0, %v3598
        %v3600 = vpop.f32.mrf.mxu0
        %v3601 = vadd.f32 0.0, %v3600
        %v3602 = vpop.f32.mrf.mxu0
        %v3603 = vadd.f32 0.0, %v3602
        %3604 = vmatprep.mubr.bf16.mxu0 0
        %3605 = vmatmul.mubr.bf16.gmra.mxu0 %v3456
        %v3606 = vpop.f32.mrf.mxu0
        %v3607 = vadd.f32 0.0, %v3606
        %v3608 = vpop.f32.mrf.mxu0
        %v3609 = vadd.f32 0.0, %v3608
        %v3610 = vpop.f32.mrf.mxu0
        %v3611 = vadd.f32 0.0, %v3610
        %v3612 = vpop.f32.mrf.mxu0
        %v3613 = vadd.f32 0.0, %v3612
        %3614 = vmatprep.mubr.bf16.mxu0 0
        %3615 = vmatmul.mubr.bf16.gmra.mxu0 %v3459
        %v3616 = vpop.f32.mrf.mxu0
        %v3617 = vadd.f32 0.0, %v3616
        %v3618 = vpop.f32.mrf.mxu0
        %v3619 = vadd.f32 0.0, %v3618
        %v3620 = vpop.f32.mrf.mxu0
        %v3621 = vadd.f32 0.0, %v3620
        %v3622 = vpop.f32.mrf.mxu0
        %v3623 = vadd.f32 0.0, %v3622
        %3624 = vmatprep.mubr.bf16.mxu0 0
        %3625 = vmatmul.mubr.bf16.gmra.mxu0 %v3462
        %v3626 = vpop.f32.mrf.mxu0
        %v3627 = vadd.f32 0.0, %v3626
        %v3628 = vpop.f32.mrf.mxu0
        %v3629 = vadd.f32 0.0, %v3628
        %v3630 = vpop.f32.mrf.mxu0
        %v3631 = vadd.f32 0.0, %v3630
        %v3632 = vpop.f32.mrf.mxu0
        %v3633 = vadd.f32 0.0, %v3632
        %3634 = vmatprep.mubr.bf16.mxu0 0
        %3635 = vmatmul.mubr.bf16.gmra.mxu0 %v3465
        %v3636 = vpop.f32.mrf.mxu0
        %v3637 = vadd.f32 0.0, %v3636
        %v3638 = vpop.f32.mrf.mxu0
        %v3639 = vadd.f32 0.0, %v3638
        %v3640 = vpop.f32.mrf.mxu0
        %v3641 = vadd.f32 0.0, %v3640
        %v3642 = vpop.f32.mrf.mxu0
        %v3643 = vadd.f32 0.0, %v3642
        %3644 = vmatprep.mubr.bf16.mxu0 0
        %3645 = vmatmul.mubr.bf16.gmra.mxu0 %v3468
        %v3646 = vpop.f32.mrf.mxu0
        %v3647 = vadd.f32 0.0, %v3646
        %v3648 = vpop.f32.mrf.mxu0
        %v3649 = vadd.f32 0.0, %v3648
        %v3650 = vpop.f32.mrf.mxu0
        %v3651 = vadd.f32 0.0, %v3650
        %v3652 = vpop.f32.mrf.mxu0
        %v3653 = vadd.f32 0.0, %v3652
        %3654 = vmatprep.mubr.bf16.mxu0 0
        %3655 = vmatmul.mubr.bf16.gmra.mxu0 %v3471
        %v3656 = vpop.f32.mrf.mxu0
        %v3657 = vadd.f32 0.0, %v3656
        %v3658 = vpop.f32.mrf.mxu0
        %v3659 = vadd.f32 0.0, %v3658
        %v3660 = vpop.f32.mrf.mxu0
        %v3661 = vadd.f32 0.0, %v3660
        %v3662 = vpop.f32.mrf.mxu0
        %v3663 = vadd.f32 0.0, %v3662
        %3664 = vmatprep.mubr.bf16.mxu0 0
        %3665 = vmatmul.mubr.bf16.gmra.mxu0 %v3474
        %v3666 = vpop.f32.mrf.mxu0
        %v3667 = vadd.f32 0.0, %v3666
        %v3668 = vpop.f32.mrf.mxu0
        %v3669 = vadd.f32 0.0, %v3668
        %v3670 = vpop.f32.mrf.mxu0
        %v3671 = vadd.f32 0.0, %v3670
        %v3672 = vpop.f32.mrf.mxu0
        %v3673 = vadd.f32 0.0, %v3672
        %3674 = vdwg.mxu0
        %v3675 = vadd.f32 %v3097, %v3517
        %v3676 = vadd.f32 %v3098, %v3519
        %v3677 = vadd.f32 %v3099, %v3521
        %v3678 = vadd.f32 %v3100, %v3523
        %v3679 = vadd.f32 %v3101, %v3527
        %v3680 = vadd.f32 %v3102, %v3529
        %v3681 = vadd.f32 %v3103, %v3531
        %v3682 = vadd.f32 %v3104, %v3533
        %v3683 = vadd.f32 %v3105, %v3537
        %v3684 = vadd.f32 %v3106, %v3539
        %v3685 = vadd.f32 %v3107, %v3541
        %v3686 = vadd.f32 %v3108, %v3543
        %v3687 = vadd.f32 %v3109, %v3547
        %v3688 = vadd.f32 %v3110, %v3549
        %v3689 = vadd.f32 %v3111, %v3551
        %v3690 = vadd.f32 %v3112, %v3553
        %v3691 = vadd.f32 %v3113, %v3557
        %v3692 = vadd.f32 %v3114, %v3559
        %v3693 = vadd.f32 %v3115, %v3561
        %v3694 = vadd.f32 %v3116, %v3563
        %v3695 = vadd.f32 %v3117, %v3567
        %v3696 = vadd.f32 %v3118, %v3569
        %v3697 = vadd.f32 %v3119, %v3571
        %v3698 = vadd.f32 %v3120, %v3573
        %v3699 = vadd.f32 %v3121, %v3577
        %v3700 = vadd.f32 %v3122, %v3579
        %v3701 = vadd.f32 %v3123, %v3581
        %v3702 = vadd.f32 %v3124, %v3583
        %v3703 = vadd.f32 %v3125, %v3587
        %v3704 = vadd.f32 %v3126, %v3589
        %v3705 = vadd.f32 %v3127, %v3591
        %v3706 = vadd.f32 %v3128, %v3593
        %v3707 = vadd.f32 %v3129, %v3597
        %v3708 = vadd.f32 %v3130, %v3599
        %v3709 = vadd.f32 %v3131, %v3601
        %v3710 = vadd.f32 %v3132, %v3603
        %v3711 = vadd.f32 %v3133, %v3607
        %v3712 = vadd.f32 %v3134, %v3609
        %v3713 = vadd.f32 %v3135, %v3611
        %v3714 = vadd.f32 %v3136, %v3613
        %v3715 = vadd.f32 %v3137, %v3617
        %v3716 = vadd.f32 %v3138, %v3619
        %v3717 = vadd.f32 %v3139, %v3621
        %v3718 = vadd.f32 %v3140, %v3623
        %v3719 = vadd.f32 %v3141, %v3627
        %v3720 = vadd.f32 %v3142, %v3629
        %v3721 = vadd.f32 %v3143, %v3631
        %v3722 = vadd.f32 %v3144, %v3633
        %v3723 = vadd.f32 %v3145, %v3637
        %v3724 = vadd.f32 %v3146, %v3639
        %v3725 = vadd.f32 %v3147, %v3641
        %v3726 = vadd.f32 %v3148, %v3643
        %v3727 = vadd.f32 %v3149, %v3647
        %v3728 = vadd.f32 %v3150, %v3649
        %v3729 = vadd.f32 %v3151, %v3651
        %v3730 = vadd.f32 %v3152, %v3653
        %v3731 = vadd.f32 %v3153, %v3657
        %v3732 = vadd.f32 %v3154, %v3659
        %v3733 = vadd.f32 %v3155, %v3661
        %v3734 = vadd.f32 %v3156, %v3663
        %v3735 = vadd.f32 %v3157, %v3667
        %v3736 = vadd.f32 %v3158, %v3669
        %v3737 = vadd.f32 %v3159, %v3671
        %v3738 = vadd.f32 %v3160, %v3673
        %s3739 = sadd.s32 %s256, 2
        %s3740 = smul.u32 %s3739, 3
        %s3741 = smul.addr %s3740, 4
        %s3742 = scalar_lea.vmem %s250, %s3741
        %v3743 = vld [vmem:[%s3742] sm:$0xf]
        %v3744 = vld [vmem:[%s3742 + $0x4] sm:$0xf]
        %v3745 = vld [vmem:[%s3742 + $0xc] sm:$0xf]
        %v3746 = vld [vmem:[%s3742 + $0x10] sm:$0xf]
        %v3747 = vld [vmem:[%s3742 + $0x18] sm:$0xf]
        %v3748 = vld [vmem:[%s3742 + $0x1c] sm:$0xf]
        %v3749 = vld [vmem:[%s3742 + $0x24] sm:$0xf]
        %v3750 = vld [vmem:[%s3742 + $0x28] sm:$0xf]
        %v3751 = vld [vmem:[%s3742 + $0x30] sm:$0xf]
        %v3752 = vld [vmem:[%s3742 + $0x34] sm:$0xf]
        %v3753 = vld [vmem:[%s3742 + $0x3c] sm:$0xf]
        %v3754 = vld [vmem:[%s3742 + $0x40] sm:$0xf]
        %v3755 = vld [vmem:[%s3742 + $0x48] sm:$0xf]
        %v3756 = vld [vmem:[%s3742 + $0x4c] sm:$0xf]
        %v3757 = vld [vmem:[%s3742 + $0x54] sm:$0xf]
        %v3758 = vld [vmem:[%s3742 + $0x58] sm:$0xf]
        %v3759 = vld [vmem:[%s3742 + $0x60] sm:$0xf]
        %v3760 = vld [vmem:[%s3742 + $0x64] sm:$0xf]
        %v3761 = vld [vmem:[%s3742 + $0x6c] sm:$0xf]
        %v3762 = vld [vmem:[%s3742 + $0x70] sm:$0xf]
        %v3763 = vld [vmem:[%s3742 + $0x78] sm:$0xf]
        %v3764 = vld [vmem:[%s3742 + $0x7c] sm:$0xf]
        %v3765 = vld [vmem:[%s3742 + $0x84] sm:$0xf]
        %v3766 = vld [vmem:[%s3742 + $0x88] sm:$0xf]
        %v3767 = vld [vmem:[%s3742 + $0x90] sm:$0xf]
        %v3768 = vld [vmem:[%s3742 + $0x94] sm:$0xf]
        %v3769 = vld [vmem:[%s3742 + $0x9c] sm:$0xf]
        %v3770 = vld [vmem:[%s3742 + $0xa0] sm:$0xf]
        %v3771 = vld [vmem:[%s3742 + $0xa8] sm:$0xf]
        %v3772 = vld [vmem:[%s3742 + $0xac] sm:$0xf]
        %v3773 = vld [vmem:[%s3742 + $0xb4] sm:$0xf]
        %v3774 = vld [vmem:[%s3742 + $0xb8] sm:$0xf]
        %s3775 = scalar_lea.vmem %s2, 24
        %v3776 = vld [vmem:[%s3775] sm:$0xf]
        %v3809 = vunpack.c.l.b16 %v3743
        %v3810 = vunpack.c.l.b16 %v3744
        %v3811 = vunpack.c.l.b16 %v3745
        %v3812 = vunpack.c.l.b16 %v3746
        %v3813 = vunpack.c.l.b16 %v3747
        %v3814 = vunpack.c.l.b16 %v3748
        %v3815 = vunpack.c.l.b16 %v3749
        %v3816 = vunpack.c.l.b16 %v3750
        %v3817 = vunpack.c.l.b16 %v3751
        %v3818 = vunpack.c.l.b16 %v3752
        %v3819 = vunpack.c.l.b16 %v3753
        %v3820 = vunpack.c.l.b16 %v3754
        %v3821 = vunpack.c.l.b16 %v3755
        %v3822 = vunpack.c.l.b16 %v3756
        %v3823 = vunpack.c.l.b16 %v3757
        %v3824 = vunpack.c.l.b16 %v3758
        %v3825 = vunpack.c.l.b16 %v3759
        %v3826 = vunpack.c.l.b16 %v3760
        %v3827 = vunpack.c.l.b16 %v3761
        %v3828 = vunpack.c.l.b16 %v3762
        %v3829 = vunpack.c.l.b16 %v3763
        %v3830 = vunpack.c.l.b16 %v3764
        %v3831 = vunpack.c.l.b16 %v3765
        %v3832 = vunpack.c.l.b16 %v3766
        %v3833 = vunpack.c.l.b16 %v3767
        %v3834 = vunpack.c.l.b16 %v3768
        %v3835 = vunpack.c.l.b16 %v3769
        %v3836 = vunpack.c.l.b16 %v3770
        %v3837 = vunpack.c.l.b16 %v3771
        %v3838 = vunpack.c.l.b16 %v3772
        %v3839 = vunpack.c.l.b16 %v3773
        %v3840 = vunpack.c.l.b16 %v3774
        %v3841 = vpack.c.b16 %v3810, %v3809
        %v3842 = vpack.c.b16 %v3812, %v3811
        %v3843 = vpack.c.b16 %v3814, %v3813
        %v3844 = vpack.c.b16 %v3816, %v3815
        %v3845 = vpack.c.b16 %v3818, %v3817
        %v3846 = vpack.c.b16 %v3820, %v3819
        %v3847 = vpack.c.b16 %v3822, %v3821
        %v3848 = vpack.c.b16 %v3824, %v3823
        %v3849 = vpack.c.b16 %v3826, %v3825
        %v3850 = vpack.c.b16 %v3828, %v3827
        %v3851 = vpack.c.b16 %v3830, %v3829
        %v3852 = vpack.c.b16 %v3832, %v3831
        %v3853 = vpack.c.b16 %v3834, %v3833
        %v3854 = vpack.c.b16 %v3836, %v3835
        %v3855 = vpack.c.b16 %v3838, %v3837
        %v3856 = vpack.c.b16 %v3840, %v3839
        %v3859 = vunpack.c.l.s4 1983009808
        %v3860 = vunpack.c.0.s8 %v3859
        %v3861 = vlaneseq
        %v3862 = vshrl.u32 %v3861, 7
        %v3863 = vsub.s32 %v3860, %v3862
        %v3864 = vrot.slane %v3776, %v3863
        %v3865 = vcombine.high %v3864, %v3864
        %v3867 = vsel %vm755, %v3841, 0
        %v3870 = vsel %vm755, %v3842, 0
        %v3873 = vsel %vm755, %v3843, 0
        %v3876 = vsel %vm755, %v3844, 0
        %v3879 = vsel %vm755, %v3845, 0
        %v3882 = vsel %vm755, %v3846, 0
        %v3885 = vsel %vm755, %v3847, 0
        %v3888 = vsel %vm755, %v3848, 0
        %v3891 = vsel %vm755, %v3849, 0
        %v3894 = vsel %vm755, %v3850, 0
        %v3897 = vsel %vm755, %v3851, 0
        %v3900 = vsel %vm755, %v3852, 0
        %v3903 = vsel %vm755, %v3853, 0
        %v3906 = vsel %vm755, %v3854, 0
        %v3909 = vsel %vm755, %v3855, 0
        %v3912 = vsel %vm755, %v3856, 0
        %v3915 = vsel %vm804, %v3864, 0
        %v3918 = vsel %vm804, %v3865, 0
        %3920 = vmatprep.subr.bf16.mxu0 0
        %3921 = vmatpush1.bf16.msra.mxu0 0
        %3922 = vmatprep.subr.bf16.mxu0 0
        %3923 = vmatpush1.bf16.msra.mxu0 0
        %3924 = vmatprep.subr.bf16.mxu0 0
        %3925 = vmatpush1.bf16.msra.mxu0 0
        %3926 = vmatprep.subr.bf16.mxu0 0
        %3927 = vmatpush1.bf16.msra.mxu0 0
        %3928 = vmatprep.subr.bf16.mxu0 0
        %3929 = vmatpush1.bf16.msra.mxu0 0
        %3930 = vmatprep.subr.bf16.mxu0 0
        %3931 = vmatpush1.bf16.msra.mxu0 0
        %3932 = vmatprep.subr.bf16.mxu0 0
        %3933 = vmatpush1.bf16.msra.mxu0 0
        %3934 = vmatprep.subr.bf16.mxu0 %v3918
        %3935 = vmatpush1.bf16.msra.mxu0 %v3915
        %3936 = vmatprep.subr.bf16.mxu0 0
        %3937 = vmatpush2.bf16.msra.mxu0 0
        %3938 = vmatprep.subr.bf16.mxu0 0
        %3939 = vmatpush2.bf16.msra.mxu0 0
        %3940 = vmatprep.subr.bf16.mxu0 0
        %3941 = vmatpush2.bf16.msra.mxu0 0
        %3942 = vmatprep.subr.bf16.mxu0 0
        %3943 = vmatpush2.bf16.msra.mxu0 0
        %3944 = vmatprep.subr.bf16.mxu0 0
        %3945 = vmatpush2.bf16.msra.mxu0 0
        %3946 = vmatprep.subr.bf16.mxu0 0
        %3947 = vmatpush2.bf16.msra.mxu0 0
        %3948 = vmatprep.subr.bf16.mxu0 0
        %3949 = vmatpush2.bf16.msra.mxu0 0
        %3950 = vmatprep.subr.bf16.mxu0 0
        %3951 = vmatpush2.bf16.msra.mxu0 0
        %3952 = vmatprep.mubr.bf16.mxu0 0
        %3953 = vmatmul.mubr.bf16.gmra.mxu0 %v3867
        %v3954 = vpop.f32.mrf.mxu0
        %v3955 = vadd.f32 0.0, %v3954
        %v3956 = vpop.f32.mrf.mxu0
        %v3957 = vadd.f32 0.0, %v3956
        %v3958 = vpop.f32.mrf.mxu0
        %v3959 = vadd.f32 0.0, %v3958
        %v3960 = vpop.f32.mrf.mxu0
        %v3961 = vadd.f32 0.0, %v3960
        %3962 = vmatprep.mubr.bf16.mxu0 0
        %3963 = vmatmul.mubr.bf16.gmra.mxu0 %v3870
        %v3964 = vpop.f32.mrf.mxu0
        %v3965 = vadd.f32 0.0, %v3964
        %v3966 = vpop.f32.mrf.mxu0
        %v3967 = vadd.f32 0.0, %v3966
        %v3968 = vpop.f32.mrf.mxu0
        %v3969 = vadd.f32 0.0, %v3968
        %v3970 = vpop.f32.mrf.mxu0
        %v3971 = vadd.f32 0.0, %v3970
        %3972 = vmatprep.mubr.bf16.mxu0 0
        %3973 = vmatmul.mubr.bf16.gmra.mxu0 %v3873
        %v3974 = vpop.f32.mrf.mxu0
        %v3975 = vadd.f32 0.0, %v3974
        %v3976 = vpop.f32.mrf.mxu0
        %v3977 = vadd.f32 0.0, %v3976
        %v3978 = vpop.f32.mrf.mxu0
        %v3979 = vadd.f32 0.0, %v3978
        %v3980 = vpop.f32.mrf.mxu0
        %v3981 = vadd.f32 0.0, %v3980
        %3982 = vmatprep.mubr.bf16.mxu0 0
        %3983 = vmatmul.mubr.bf16.gmra.mxu0 %v3876
        %v3984 = vpop.f32.mrf.mxu0
        %v3985 = vadd.f32 0.0, %v3984
        %v3986 = vpop.f32.mrf.mxu0
        %v3987 = vadd.f32 0.0, %v3986
        %v3988 = vpop.f32.mrf.mxu0
        %v3989 = vadd.f32 0.0, %v3988
        %v3990 = vpop.f32.mrf.mxu0
        %v3991 = vadd.f32 0.0, %v3990
        %3992 = vmatprep.mubr.bf16.mxu0 0
        %3993 = vmatmul.mubr.bf16.gmra.mxu0 %v3879
        %v3994 = vpop.f32.mrf.mxu0
        %v3995 = vadd.f32 0.0, %v3994
        %v3996 = vpop.f32.mrf.mxu0
        %v3997 = vadd.f32 0.0, %v3996
        %v3998 = vpop.f32.mrf.mxu0
        %v3999 = vadd.f32 0.0, %v3998
        %v4000 = vpop.f32.mrf.mxu0
        %v4001 = vadd.f32 0.0, %v4000
        %4002 = vmatprep.mubr.bf16.mxu0 0
        %4003 = vmatmul.mubr.bf16.gmra.mxu0 %v3882
        %v4004 = vpop.f32.mrf.mxu0
        %v4005 = vadd.f32 0.0, %v4004
        %v4006 = vpop.f32.mrf.mxu0
        %v4007 = vadd.f32 0.0, %v4006
        %v4008 = vpop.f32.mrf.mxu0
        %v4009 = vadd.f32 0.0, %v4008
        %v4010 = vpop.f32.mrf.mxu0
        %v4011 = vadd.f32 0.0, %v4010
        %4012 = vmatprep.mubr.bf16.mxu0 0
        %4013 = vmatmul.mubr.bf16.gmra.mxu0 %v3885
        %v4014 = vpop.f32.mrf.mxu0
        %v4015 = vadd.f32 0.0, %v4014
        %v4016 = vpop.f32.mrf.mxu0
        %v4017 = vadd.f32 0.0, %v4016
        %v4018 = vpop.f32.mrf.mxu0
        %v4019 = vadd.f32 0.0, %v4018
        %v4020 = vpop.f32.mrf.mxu0
        %v4021 = vadd.f32 0.0, %v4020
        %4022 = vmatprep.mubr.bf16.mxu0 0
        %4023 = vmatmul.mubr.bf16.gmra.mxu0 %v3888
        %v4024 = vpop.f32.mrf.mxu0
        %v4025 = vadd.f32 0.0, %v4024
        %v4026 = vpop.f32.mrf.mxu0
        %v4027 = vadd.f32 0.0, %v4026
        %v4028 = vpop.f32.mrf.mxu0
        %v4029 = vadd.f32 0.0, %v4028
        %v4030 = vpop.f32.mrf.mxu0
        %v4031 = vadd.f32 0.0, %v4030
        %4032 = vmatprep.mubr.bf16.mxu0 0
        %4033 = vmatmul.mubr.bf16.gmra.mxu0 %v3891
        %v4034 = vpop.f32.mrf.mxu0
        %v4035 = vadd.f32 0.0, %v4034
        %v4036 = vpop.f32.mrf.mxu0
        %v4037 = vadd.f32 0.0, %v4036
        %v4038 = vpop.f32.mrf.mxu0
        %v4039 = vadd.f32 0.0, %v4038
        %v4040 = vpop.f32.mrf.mxu0
        %v4041 = vadd.f32 0.0, %v4040
        %4042 = vmatprep.mubr.bf16.mxu0 0
        %4043 = vmatmul.mubr.bf16.gmra.mxu0 %v3894
        %v4044 = vpop.f32.mrf.mxu0
        %v4045 = vadd.f32 0.0, %v4044
        %v4046 = vpop.f32.mrf.mxu0
        %v4047 = vadd.f32 0.0, %v4046
        %v4048 = vpop.f32.mrf.mxu0
        %v4049 = vadd.f32 0.0, %v4048
        %v4050 = vpop.f32.mrf.mxu0
        %v4051 = vadd.f32 0.0, %v4050
        %4052 = vmatprep.mubr.bf16.mxu0 0
        %4053 = vmatmul.mubr.bf16.gmra.mxu0 %v3897
        %v4054 = vpop.f32.mrf.mxu0
        %v4055 = vadd.f32 0.0, %v4054
        %v4056 = vpop.f32.mrf.mxu0
        %v4057 = vadd.f32 0.0, %v4056
        %v4058 = vpop.f32.mrf.mxu0
        %v4059 = vadd.f32 0.0, %v4058
        %v4060 = vpop.f32.mrf.mxu0
        %v4061 = vadd.f32 0.0, %v4060
        %4062 = vmatprep.mubr.bf16.mxu0 0
        %4063 = vmatmul.mubr.bf16.gmra.mxu0 %v3900
        %v4064 = vpop.f32.mrf.mxu0
        %v4065 = vadd.f32 0.0, %v4064
        %v4066 = vpop.f32.mrf.mxu0
        %v4067 = vadd.f32 0.0, %v4066
        %v4068 = vpop.f32.mrf.mxu0
        %v4069 = vadd.f32 0.0, %v4068
        %v4070 = vpop.f32.mrf.mxu0
        %v4071 = vadd.f32 0.0, %v4070
        %4072 = vmatprep.mubr.bf16.mxu0 0
        %4073 = vmatmul.mubr.bf16.gmra.mxu0 %v3903
        %v4074 = vpop.f32.mrf.mxu0
        %v4075 = vadd.f32 0.0, %v4074
        %v4076 = vpop.f32.mrf.mxu0
        %v4077 = vadd.f32 0.0, %v4076
        %v4078 = vpop.f32.mrf.mxu0
        %v4079 = vadd.f32 0.0, %v4078
        %v4080 = vpop.f32.mrf.mxu0
        %v4081 = vadd.f32 0.0, %v4080
        %4082 = vmatprep.mubr.bf16.mxu0 0
        %4083 = vmatmul.mubr.bf16.gmra.mxu0 %v3906
        %v4084 = vpop.f32.mrf.mxu0
        %v4085 = vadd.f32 0.0, %v4084
        %v4086 = vpop.f32.mrf.mxu0
        %v4087 = vadd.f32 0.0, %v4086
        %v4088 = vpop.f32.mrf.mxu0
        %v4089 = vadd.f32 0.0, %v4088
        %v4090 = vpop.f32.mrf.mxu0
        %v4091 = vadd.f32 0.0, %v4090
        %4092 = vmatprep.mubr.bf16.mxu0 0
        %4093 = vmatmul.mubr.bf16.gmra.mxu0 %v3909
        %v4094 = vpop.f32.mrf.mxu0
        %v4095 = vadd.f32 0.0, %v4094
        %v4096 = vpop.f32.mrf.mxu0
        %v4097 = vadd.f32 0.0, %v4096
        %v4098 = vpop.f32.mrf.mxu0
        %v4099 = vadd.f32 0.0, %v4098
        %v4100 = vpop.f32.mrf.mxu0
        %v4101 = vadd.f32 0.0, %v4100
        %4102 = vmatprep.mubr.bf16.mxu0 0
        %4103 = vmatmul.mubr.bf16.gmra.mxu0 %v3912
        %v4104 = vpop.f32.mrf.mxu0
        %v4105 = vadd.f32 0.0, %v4104
        %v4106 = vpop.f32.mrf.mxu0
        %v4107 = vadd.f32 0.0, %v4106
        %v4108 = vpop.f32.mrf.mxu0
        %v4109 = vadd.f32 0.0, %v4108
        %v4110 = vpop.f32.mrf.mxu0
        %v4111 = vadd.f32 0.0, %v4110
        %4112 = vdwg.mxu0
        %v4113 = vadd.f32 %v3675, %v3955
        %v4114 = vadd.f32 %v3676, %v3957
        %v4115 = vadd.f32 %v3677, %v3959
        %v4116 = vadd.f32 %v3678, %v3961
        %v4117 = vadd.f32 %v3679, %v3965
        %v4118 = vadd.f32 %v3680, %v3967
        %v4119 = vadd.f32 %v3681, %v3969
        %v4120 = vadd.f32 %v3682, %v3971
        %v4121 = vadd.f32 %v3683, %v3975
        %v4122 = vadd.f32 %v3684, %v3977
        %v4123 = vadd.f32 %v3685, %v3979
        %v4124 = vadd.f32 %v3686, %v3981
        %v4125 = vadd.f32 %v3687, %v3985
        %v4126 = vadd.f32 %v3688, %v3987
        %v4127 = vadd.f32 %v3689, %v3989
        %v4128 = vadd.f32 %v3690, %v3991
        %v4129 = vadd.f32 %v3691, %v3995
        %v4130 = vadd.f32 %v3692, %v3997
        %v4131 = vadd.f32 %v3693, %v3999
        %v4132 = vadd.f32 %v3694, %v4001
        %v4133 = vadd.f32 %v3695, %v4005
        %v4134 = vadd.f32 %v3696, %v4007
        %v4135 = vadd.f32 %v3697, %v4009
        %v4136 = vadd.f32 %v3698, %v4011
        %v4137 = vadd.f32 %v3699, %v4015
        %v4138 = vadd.f32 %v3700, %v4017
        %v4139 = vadd.f32 %v3701, %v4019
        %v4140 = vadd.f32 %v3702, %v4021
        %v4141 = vadd.f32 %v3703, %v4025
        %v4142 = vadd.f32 %v3704, %v4027
        %v4143 = vadd.f32 %v3705, %v4029
        %v4144 = vadd.f32 %v3706, %v4031
        %v4145 = vadd.f32 %v3707, %v4035
        %v4146 = vadd.f32 %v3708, %v4037
        %v4147 = vadd.f32 %v3709, %v4039
        %v4148 = vadd.f32 %v3710, %v4041
        %v4149 = vadd.f32 %v3711, %v4045
        %v4150 = vadd.f32 %v3712, %v4047
        %v4151 = vadd.f32 %v3713, %v4049
        %v4152 = vadd.f32 %v3714, %v4051
        %v4153 = vadd.f32 %v3715, %v4055
        %v4154 = vadd.f32 %v3716, %v4057
        %v4155 = vadd.f32 %v3717, %v4059
        %v4156 = vadd.f32 %v3718, %v4061
        %v4157 = vadd.f32 %v3719, %v4065
        %v4158 = vadd.f32 %v3720, %v4067
        %v4159 = vadd.f32 %v3721, %v4069
        %v4160 = vadd.f32 %v3722, %v4071
        %v4161 = vadd.f32 %v3723, %v4075
        %v4162 = vadd.f32 %v3724, %v4077
        %v4163 = vadd.f32 %v3725, %v4079
        %v4164 = vadd.f32 %v3726, %v4081
        %v4165 = vadd.f32 %v3727, %v4085
        %v4166 = vadd.f32 %v3728, %v4087
        %v4167 = vadd.f32 %v3729, %v4089
        %v4168 = vadd.f32 %v3730, %v4091
        %v4169 = vadd.f32 %v3731, %v4095
        %v4170 = vadd.f32 %v3732, %v4097
        %v4171 = vadd.f32 %v3733, %v4099
        %v4172 = vadd.f32 %v3734, %v4101
        %v4173 = vadd.f32 %v3735, %v4105
        %v4174 = vadd.f32 %v3736, %v4107
        %v4175 = vadd.f32 %v3737, %v4109
        %v4176 = vadd.f32 %v3738, %v4111
        %v4177 = vld [vmem:[%s3742] sm:$0xf]
        %v4178 = vld [vmem:[%s3742 + $0x4] sm:$0xf]
        %v4179 = vld [vmem:[%s3742 + $0x8] sm:$0x1]
        %v4180 = vld [vmem:[%s3742 + $0xc] sm:$0xf]
        %v4181 = vld [vmem:[%s3742 + $0x10] sm:$0xf]
        %v4182 = vld [vmem:[%s3742 + $0x14] sm:$0x1]
        %v4183 = vld [vmem:[%s3742 + $0x18] sm:$0xf]
        %v4184 = vld [vmem:[%s3742 + $0x1c] sm:$0xf]
        %v4185 = vld [vmem:[%s3742 + $0x20] sm:$0x1]
        %v4186 = vld [vmem:[%s3742 + $0x24] sm:$0xf]
        %v4187 = vld [vmem:[%s3742 + $0x28] sm:$0xf]
        %v4188 = vld [vmem:[%s3742 + $0x2c] sm:$0x1]
        %v4189 = vld [vmem:[%s3742 + $0x30] sm:$0xf]
        %v4190 = vld [vmem:[%s3742 + $0x34] sm:$0xf]
        %v4191 = vld [vmem:[%s3742 + $0x38] sm:$0x1]
        %v4192 = vld [vmem:[%s3742 + $0x3c] sm:$0xf]
        %v4193 = vld [vmem:[%s3742 + $0x40] sm:$0xf]
        %v4194 = vld [vmem:[%s3742 + $0x44] sm:$0x1]
        %v4195 = vld [vmem:[%s3742 + $0x48] sm:$0xf]
        %v4196 = vld [vmem:[%s3742 + $0x4c] sm:$0xf]
        %v4197 = vld [vmem:[%s3742 + $0x50] sm:$0x1]
        %v4198 = vld [vmem:[%s3742 + $0x54] sm:$0xf]
        %v4199 = vld [vmem:[%s3742 + $0x58] sm:$0xf]
        %v4200 = vld [vmem:[%s3742 + $0x5c] sm:$0x1]
        %v4201 = vld [vmem:[%s3742 + $0x60] sm:$0xf]
        %v4202 = vld [vmem:[%s3742 + $0x64] sm:$0xf]
        %v4203 = vld [vmem:[%s3742 + $0x68] sm:$0x1]
        %v4204 = vld [vmem:[%s3742 + $0x6c] sm:$0xf]
        %v4205 = vld [vmem:[%s3742 + $0x70] sm:$0xf]
        %v4206 = vld [vmem:[%s3742 + $0x74] sm:$0x1]
        %v4207 = vld [vmem:[%s3742 + $0x78] sm:$0xf]
        %v4208 = vld [vmem:[%s3742 + $0x7c] sm:$0xf]
        %v4209 = vld [vmem:[%s3742 + $0x80] sm:$0x1]
        %v4210 = vld [vmem:[%s3742 + $0x84] sm:$0xf]
        %v4211 = vld [vmem:[%s3742 + $0x88] sm:$0xf]
        %v4212 = vld [vmem:[%s3742 + $0x8c] sm:$0x1]
        %v4213 = vld [vmem:[%s3742 + $0x90] sm:$0xf]
        %v4214 = vld [vmem:[%s3742 + $0x94] sm:$0xf]
        %v4215 = vld [vmem:[%s3742 + $0x98] sm:$0x1]
        %v4216 = vld [vmem:[%s3742 + $0x9c] sm:$0xf]
        %v4217 = vld [vmem:[%s3742 + $0xa0] sm:$0xf]
        %v4218 = vld [vmem:[%s3742 + $0xa4] sm:$0x1]
        %v4219 = vld [vmem:[%s3742 + $0xa8] sm:$0xf]
        %v4220 = vld [vmem:[%s3742 + $0xac] sm:$0xf]
        %v4221 = vld [vmem:[%s3742 + $0xb0] sm:$0x1]
        %v4222 = vld [vmem:[%s3742 + $0xb4] sm:$0xf]
        %v4223 = vld [vmem:[%s3742 + $0xb8] sm:$0xf]
        %v4224 = vld [vmem:[%s3742 + $0xbc] sm:$0x1]
        %v4226 = vshrl.u32 %v4177, 16
        %v4228 = vrot.slane %v4226, 4
        %v4229 = vshll.u32 %v4177, 16
        %v4231 = vrot.slane %v4229, 5
        %v4232 = vor.u32 %v4228, %v4231
        %v4233 = vrot.slane %v4232, 4
        %v4235 = vshll.u32 %v4178, 16
        %v4237 = vrot.slane %v4235, 5
        %v4238 = vsel %vm311, %v4233, %v4237
        %v4239 = vshrl.u32 %v4178, 16
        %v4241 = vrot.slane %v4239, 4
        %v4242 = vor.u32 %v4241, %v4237
        %v4243 = vrot.slane %v4242, 4
        %v4245 = vshll.u32 %v4179, 16
        %v4247 = vrot.slane %v4245, 5
        %v4248 = vsel %vm311, %v4243, %v4247
        %v4250 = vshrl.u32 %v4180, 16
        %v4252 = vrot.slane %v4250, 4
        %v4253 = vshll.u32 %v4180, 16
        %v4255 = vrot.slane %v4253, 5
        %v4256 = vor.u32 %v4252, %v4255
        %v4257 = vrot.slane %v4256, 4
        %v4259 = vshll.u32 %v4181, 16
        %v4261 = vrot.slane %v4259, 5
        %v4262 = vsel %vm311, %v4257, %v4261
        %v4263 = vshrl.u32 %v4181, 16
        %v4265 = vrot.slane %v4263, 4
        %v4266 = vor.u32 %v4265, %v4261
        %v4267 = vrot.slane %v4266, 4
        %v4269 = vshll.u32 %v4182, 16
        %v4271 = vrot.slane %v4269, 5
        %v4272 = vsel %vm311, %v4267, %v4271
        %v4274 = vshrl.u32 %v4183, 16
        %v4276 = vrot.slane %v4274, 4
        %v4277 = vshll.u32 %v4183, 16
        %v4279 = vrot.slane %v4277, 5
        %v4280 = vor.u32 %v4276, %v4279
        %v4281 = vrot.slane %v4280, 4
        %v4283 = vshll.u32 %v4184, 16
        %v4285 = vrot.slane %v4283, 5
        %v4286 = vsel %vm311, %v4281, %v4285
        %v4287 = vshrl.u32 %v4184, 16
        %v4289 = vrot.slane %v4287, 4
        %v4290 = vor.u32 %v4289, %v4285
        %v4291 = vrot.slane %v4290, 4
        %v4293 = vshll.u32 %v4185, 16
        %v4295 = vrot.slane %v4293, 5
        %v4296 = vsel %vm311, %v4291, %v4295
        %v4298 = vshrl.u32 %v4186, 16
        %v4300 = vrot.slane %v4298, 4
        %v4301 = vshll.u32 %v4186, 16
        %v4303 = vrot.slane %v4301, 5
        %v4304 = vor.u32 %v4300, %v4303
        %v4305 = vrot.slane %v4304, 4
        %v4307 = vshll.u32 %v4187, 16
        %v4309 = vrot.slane %v4307, 5
        %v4310 = vsel %vm311, %v4305, %v4309
        %v4311 = vshrl.u32 %v4187, 16
        %v4313 = vrot.slane %v4311, 4
        %v4314 = vor.u32 %v4313, %v4309
        %v4315 = vrot.slane %v4314, 4
        %v4317 = vshll.u32 %v4188, 16
        %v4319 = vrot.slane %v4317, 5
        %v4320 = vsel %vm311, %v4315, %v4319
        %v4322 = vshrl.u32 %v4189, 16
        %v4324 = vrot.slane %v4322, 4
        %v4325 = vshll.u32 %v4189, 16
        %v4327 = vrot.slane %v4325, 5
        %v4328 = vor.u32 %v4324, %v4327
        %v4329 = vrot.slane %v4328, 4
        %v4331 = vshll.u32 %v4190, 16
        %v4333 = vrot.slane %v4331, 5
        %v4334 = vsel %vm311, %v4329, %v4333
        %v4335 = vshrl.u32 %v4190, 16
        %v4337 = vrot.slane %v4335, 4
        %v4338 = vor.u32 %v4337, %v4333
        %v4339 = vrot.slane %v4338, 4
        %v4341 = vshll.u32 %v4191, 16
        %v4343 = vrot.slane %v4341, 5
        %v4344 = vsel %vm311, %v4339, %v4343
        %v4346 = vshrl.u32 %v4192, 16
        %v4348 = vrot.slane %v4346, 4
        %v4349 = vshll.u32 %v4192, 16
        %v4351 = vrot.slane %v4349, 5
        %v4352 = vor.u32 %v4348, %v4351
        %v4353 = vrot.slane %v4352, 4
        %v4355 = vshll.u32 %v4193, 16
        %v4357 = vrot.slane %v4355, 5
        %v4358 = vsel %vm311, %v4353, %v4357
        %v4359 = vshrl.u32 %v4193, 16
        %v4361 = vrot.slane %v4359, 4
        %v4362 = vor.u32 %v4361, %v4357
        %v4363 = vrot.slane %v4362, 4
        %v4365 = vshll.u32 %v4194, 16
        %v4367 = vrot.slane %v4365, 5
        %v4368 = vsel %vm311, %v4363, %v4367
        %v4370 = vshrl.u32 %v4195, 16
        %v4372 = vrot.slane %v4370, 4
        %v4373 = vshll.u32 %v4195, 16
        %v4375 = vrot.slane %v4373, 5
        %v4376 = vor.u32 %v4372, %v4375
        %v4377 = vrot.slane %v4376, 4
        %v4379 = vshll.u32 %v4196, 16
        %v4381 = vrot.slane %v4379, 5
        %v4382 = vsel %vm311, %v4377, %v4381
        %v4383 = vshrl.u32 %v4196, 16
        %v4385 = vrot.slane %v4383, 4
        %v4386 = vor.u32 %v4385, %v4381
        %v4387 = vrot.slane %v4386, 4
        %v4389 = vshll.u32 %v4197, 16
        %v4391 = vrot.slane %v4389, 5
        %v4392 = vsel %vm311, %v4387, %v4391
        %v4394 = vshrl.u32 %v4198, 16
        %v4396 = vrot.slane %v4394, 4
        %v4397 = vshll.u32 %v4198, 16
        %v4399 = vrot.slane %v4397, 5
        %v4400 = vor.u32 %v4396, %v4399
        %v4401 = vrot.slane %v4400, 4
        %v4403 = vshll.u32 %v4199, 16
        %v4405 = vrot.slane %v4403, 5
        %v4406 = vsel %vm311, %v4401, %v4405
        %v4407 = vshrl.u32 %v4199, 16
        %v4409 = vrot.slane %v4407, 4
        %v4410 = vor.u32 %v4409, %v4405
        %v4411 = vrot.slane %v4410, 4
        %v4413 = vshll.u32 %v4200, 16
        %v4415 = vrot.slane %v4413, 5
        %v4416 = vsel %vm311, %v4411, %v4415
        %v4418 = vshrl.u32 %v4201, 16
        %v4420 = vrot.slane %v4418, 4
        %v4421 = vshll.u32 %v4201, 16
        %v4423 = vrot.slane %v4421, 5
        %v4424 = vor.u32 %v4420, %v4423
        %v4425 = vrot.slane %v4424, 4
        %v4427 = vshll.u32 %v4202, 16
        %v4429 = vrot.slane %v4427, 5
        %v4430 = vsel %vm311, %v4425, %v4429
        %v4431 = vshrl.u32 %v4202, 16
        %v4433 = vrot.slane %v4431, 4
        %v4434 = vor.u32 %v4433, %v4429
        %v4435 = vrot.slane %v4434, 4
        %v4437 = vshll.u32 %v4203, 16
        %v4439 = vrot.slane %v4437, 5
        %v4440 = vsel %vm311, %v4435, %v4439
        %v4442 = vshrl.u32 %v4204, 16
        %v4444 = vrot.slane %v4442, 4
        %v4445 = vshll.u32 %v4204, 16
        %v4447 = vrot.slane %v4445, 5
        %v4448 = vor.u32 %v4444, %v4447
        %v4449 = vrot.slane %v4448, 4
        %v4451 = vshll.u32 %v4205, 16
        %v4453 = vrot.slane %v4451, 5
        %v4454 = vsel %vm311, %v4449, %v4453
        %v4455 = vshrl.u32 %v4205, 16
        %v4457 = vrot.slane %v4455, 4
        %v4458 = vor.u32 %v4457, %v4453
        %v4459 = vrot.slane %v4458, 4
        %v4461 = vshll.u32 %v4206, 16
        %v4463 = vrot.slane %v4461, 5
        %v4464 = vsel %vm311, %v4459, %v4463
        %v4466 = vshrl.u32 %v4207, 16
        %v4468 = vrot.slane %v4466, 4
        %v4469 = vshll.u32 %v4207, 16
        %v4471 = vrot.slane %v4469, 5
        %v4472 = vor.u32 %v4468, %v4471
        %v4473 = vrot.slane %v4472, 4
        %v4475 = vshll.u32 %v4208, 16
        %v4477 = vrot.slane %v4475, 5
        %v4478 = vsel %vm311, %v4473, %v4477
        %v4479 = vshrl.u32 %v4208, 16
        %v4481 = vrot.slane %v4479, 4
        %v4482 = vor.u32 %v4481, %v4477
        %v4483 = vrot.slane %v4482, 4
        %v4485 = vshll.u32 %v4209, 16
        %v4487 = vrot.slane %v4485, 5
        %v4488 = vsel %vm311, %v4483, %v4487
        %v4490 = vshrl.u32 %v4210, 16
        %v4492 = vrot.slane %v4490, 4
        %v4493 = vshll.u32 %v4210, 16
        %v4495 = vrot.slane %v4493, 5
        %v4496 = vor.u32 %v4492, %v4495
        %v4497 = vrot.slane %v4496, 4
        %v4499 = vshll.u32 %v4211, 16
        %v4501 = vrot.slane %v4499, 5
        %v4502 = vsel %vm311, %v4497, %v4501
        %v4503 = vshrl.u32 %v4211, 16
        %v4505 = vrot.slane %v4503, 4
        %v4506 = vor.u32 %v4505, %v4501
        %v4507 = vrot.slane %v4506, 4
        %v4509 = vshll.u32 %v4212, 16
        %v4511 = vrot.slane %v4509, 5
        %v4512 = vsel %vm311, %v4507, %v4511
        %v4514 = vshrl.u32 %v4213, 16
        %v4516 = vrot.slane %v4514, 4
        %v4517 = vshll.u32 %v4213, 16
        %v4519 = vrot.slane %v4517, 5
        %v4520 = vor.u32 %v4516, %v4519
        %v4521 = vrot.slane %v4520, 4
        %v4523 = vshll.u32 %v4214, 16
        %v4525 = vrot.slane %v4523, 5
        %v4526 = vsel %vm311, %v4521, %v4525
        %v4527 = vshrl.u32 %v4214, 16
        %v4529 = vrot.slane %v4527, 4
        %v4530 = vor.u32 %v4529, %v4525
        %v4531 = vrot.slane %v4530, 4
        %v4533 = vshll.u32 %v4215, 16
        %v4535 = vrot.slane %v4533, 5
        %v4536 = vsel %vm311, %v4531, %v4535
        %v4538 = vshrl.u32 %v4216, 16
        %v4540 = vrot.slane %v4538, 4
        %v4541 = vshll.u32 %v4216, 16
        %v4543 = vrot.slane %v4541, 5
        %v4544 = vor.u32 %v4540, %v4543
        %v4545 = vrot.slane %v4544, 4
        %v4547 = vshll.u32 %v4217, 16
        %v4549 = vrot.slane %v4547, 5
        %v4550 = vsel %vm311, %v4545, %v4549
        %v4551 = vshrl.u32 %v4217, 16
        %v4553 = vrot.slane %v4551, 4
        %v4554 = vor.u32 %v4553, %v4549
        %v4555 = vrot.slane %v4554, 4
        %v4557 = vshll.u32 %v4218, 16
        %v4559 = vrot.slane %v4557, 5
        %v4560 = vsel %vm311, %v4555, %v4559
        %v4562 = vshrl.u32 %v4219, 16
        %v4564 = vrot.slane %v4562, 4
        %v4565 = vshll.u32 %v4219, 16
        %v4567 = vrot.slane %v4565, 5
        %v4568 = vor.u32 %v4564, %v4567
        %v4569 = vrot.slane %v4568, 4
        %v4571 = vshll.u32 %v4220, 16
        %v4573 = vrot.slane %v4571, 5
        %v4574 = vsel %vm311, %v4569, %v4573
        %v4575 = vshrl.u32 %v4220, 16
        %v4577 = vrot.slane %v4575, 4
        %v4578 = vor.u32 %v4577, %v4573
        %v4579 = vrot.slane %v4578, 4
        %v4581 = vshll.u32 %v4221, 16
        %v4583 = vrot.slane %v4581, 5
        %v4584 = vsel %vm311, %v4579, %v4583
        %v4586 = vshrl.u32 %v4222, 16
        %v4588 = vrot.slane %v4586, 4
        %v4589 = vshll.u32 %v4222, 16
        %v4591 = vrot.slane %v4589, 5
        %v4592 = vor.u32 %v4588, %v4591
        %v4593 = vrot.slane %v4592, 4
        %v4595 = vshll.u32 %v4223, 16
        %v4597 = vrot.slane %v4595, 5
        %v4598 = vsel %vm311, %v4593, %v4597
        %v4599 = vshrl.u32 %v4223, 16
        %v4601 = vrot.slane %v4599, 4
        %v4602 = vor.u32 %v4601, %v4597
        %v4603 = vrot.slane %v4602, 4
        %v4605 = vshll.u32 %v4224, 16
        %v4607 = vrot.slane %v4605, 5
        %v4608 = vsel %vm311, %v4603, %v4607
        %s4609 = scalar_lea.vmem %s2, 28
        %v4610 = vld [vmem:[%s4609] sm:$0xf]
        %v4611 = vunpack.c.l.b16 %v4238
        %v4612 = vunpack.c.l.b16 %v4248
        %v4613 = vunpack.c.l.b16 %v4262
        %v4614 = vunpack.c.l.b16 %v4272
        %v4615 = vunpack.c.l.b16 %v4286
        %v4616 = vunpack.c.l.b16 %v4296
        %v4617 = vunpack.c.l.b16 %v4310
        %v4618 = vunpack.c.l.b16 %v4320
        %v4619 = vunpack.c.l.b16 %v4334
        %v4620 = vunpack.c.l.b16 %v4344
        %v4621 = vunpack.c.l.b16 %v4358
        %v4622 = vunpack.c.l.b16 %v4368
        %v4623 = vunpack.c.l.b16 %v4382
        %v4624 = vunpack.c.l.b16 %v4392
        %v4625 = vunpack.c.l.b16 %v4406
        %v4626 = vunpack.c.l.b16 %v4416
        %v4627 = vunpack.c.l.b16 %v4430
        %v4628 = vunpack.c.l.b16 %v4440
        %v4629 = vunpack.c.l.b16 %v4454
        %v4630 = vunpack.c.l.b16 %v4464
        %v4631 = vunpack.c.l.b16 %v4478
        %v4632 = vunpack.c.l.b16 %v4488
        %v4633 = vunpack.c.l.b16 %v4502
        %v4634 = vunpack.c.l.b16 %v4512
        %v4635 = vunpack.c.l.b16 %v4526
        %v4636 = vunpack.c.l.b16 %v4536
        %v4637 = vunpack.c.l.b16 %v4550
        %v4638 = vunpack.c.l.b16 %v4560
        %v4639 = vunpack.c.l.b16 %v4574
        %v4640 = vunpack.c.l.b16 %v4584
        %v4641 = vunpack.c.l.b16 %v4598
        %v4642 = vunpack.c.l.b16 %v4608
        %v4643 = vpack.c.b16 %v4612, %v4611
        %v4644 = vpack.c.b16 %v4614, %v4613
        %v4645 = vpack.c.b16 %v4616, %v4615
        %v4646 = vpack.c.b16 %v4618, %v4617
        %v4647 = vpack.c.b16 %v4620, %v4619
        %v4648 = vpack.c.b16 %v4622, %v4621
        %v4649 = vpack.c.b16 %v4624, %v4623
        %v4650 = vpack.c.b16 %v4626, %v4625
        %v4651 = vpack.c.b16 %v4628, %v4627
        %v4652 = vpack.c.b16 %v4630, %v4629
        %v4653 = vpack.c.b16 %v4632, %v4631
        %v4654 = vpack.c.b16 %v4634, %v4633
        %v4655 = vpack.c.b16 %v4636, %v4635
        %v4656 = vpack.c.b16 %v4638, %v4637
        %v4657 = vpack.c.b16 %v4640, %v4639
        %v4658 = vpack.c.b16 %v4642, %v4641
        %v4661 = vunpack.c.l.s4 1983009808
        %v4662 = vunpack.c.0.s8 %v4661
        %v4663 = vlaneseq
        %v4664 = vshrl.u32 %v4663, 7
        %v4665 = vsub.s32 %v4662, %v4664
        %v4666 = vrot.slane %v4610, %v4665
        %v4667 = vcombine.high %v4666, %v4666
        %v4669 = vsel %vm755, %v4643, 0
        %v4672 = vsel %vm755, %v4644, 0
        %v4675 = vsel %vm755, %v4645, 0
        %v4678 = vsel %vm755, %v4646, 0
        %v4681 = vsel %vm755, %v4647, 0
        %v4684 = vsel %vm755, %v4648, 0
        %v4687 = vsel %vm755, %v4649, 0
        %v4690 = vsel %vm755, %v4650, 0
        %v4693 = vsel %vm755, %v4651, 0
        %v4696 = vsel %vm755, %v4652, 0
        %v4699 = vsel %vm755, %v4653, 0
        %v4702 = vsel %vm755, %v4654, 0
        %v4705 = vsel %vm755, %v4655, 0
        %v4708 = vsel %vm755, %v4656, 0
        %v4711 = vsel %vm755, %v4657, 0
        %v4714 = vsel %vm755, %v4658, 0
        %v4717 = vsel %vm804, %v4666, 0
        %v4720 = vsel %vm804, %v4667, 0
        %4722 = vmatprep.subr.bf16.mxu0 0
        %4723 = vmatpush1.bf16.msra.mxu0 0
        %4724 = vmatprep.subr.bf16.mxu0 0
        %4725 = vmatpush1.bf16.msra.mxu0 0
        %4726 = vmatprep.subr.bf16.mxu0 0
        %4727 = vmatpush1.bf16.msra.mxu0 0
        %4728 = vmatprep.subr.bf16.mxu0 0
        %4729 = vmatpush1.bf16.msra.mxu0 0
        %4730 = vmatprep.subr.bf16.mxu0 0
        %4731 = vmatpush1.bf16.msra.mxu0 0
        %4732 = vmatprep.subr.bf16.mxu0 0
        %4733 = vmatpush1.bf16.msra.mxu0 0
        %4734 = vmatprep.subr.bf16.mxu0 0
        %4735 = vmatpush1.bf16.msra.mxu0 0
        %4736 = vmatprep.subr.bf16.mxu0 %v4720
        %4737 = vmatpush1.bf16.msra.mxu0 %v4717
        %4738 = vmatprep.subr.bf16.mxu0 0
        %4739 = vmatpush2.bf16.msra.mxu0 0
        %4740 = vmatprep.subr.bf16.mxu0 0
        %4741 = vmatpush2.bf16.msra.mxu0 0
        %4742 = vmatprep.subr.bf16.mxu0 0
        %4743 = vmatpush2.bf16.msra.mxu0 0
        %4744 = vmatprep.subr.bf16.mxu0 0
        %4745 = vmatpush2.bf16.msra.mxu0 0
        %4746 = vmatprep.subr.bf16.mxu0 0
        %4747 = vmatpush2.bf16.msra.mxu0 0
        %4748 = vmatprep.subr.bf16.mxu0 0
        %4749 = vmatpush2.bf16.msra.mxu0 0
        %4750 = vmatprep.subr.bf16.mxu0 0
        %4751 = vmatpush2.bf16.msra.mxu0 0
        %4752 = vmatprep.subr.bf16.mxu0 0
        %4753 = vmatpush2.bf16.msra.mxu0 0
        %4754 = vmatprep.mubr.bf16.mxu0 0
        %4755 = vmatmul.mubr.bf16.gmra.mxu0 %v4669
        %v4756 = vpop.f32.mrf.mxu0
        %v4757 = vadd.f32 0.0, %v4756
        %v4758 = vpop.f32.mrf.mxu0
        %v4759 = vadd.f32 0.0, %v4758
        %v4760 = vpop.f32.mrf.mxu0
        %v4761 = vadd.f32 0.0, %v4760
        %v4762 = vpop.f32.mrf.mxu0
        %v4763 = vadd.f32 0.0, %v4762
        %4764 = vmatprep.mubr.bf16.mxu0 0
        %4765 = vmatmul.mubr.bf16.gmra.mxu0 %v4672
        %v4766 = vpop.f32.mrf.mxu0
        %v4767 = vadd.f32 0.0, %v4766
        %v4768 = vpop.f32.mrf.mxu0
        %v4769 = vadd.f32 0.0, %v4768
        %v4770 = vpop.f32.mrf.mxu0
        %v4771 = vadd.f32 0.0, %v4770
        %v4772 = vpop.f32.mrf.mxu0
        %v4773 = vadd.f32 0.0, %v4772
        %4774 = vmatprep.mubr.bf16.mxu0 0
        %4775 = vmatmul.mubr.bf16.gmra.mxu0 %v4675
        %v4776 = vpop.f32.mrf.mxu0
        %v4777 = vadd.f32 0.0, %v4776
        %v4778 = vpop.f32.mrf.mxu0
        %v4779 = vadd.f32 0.0, %v4778
        %v4780 = vpop.f32.mrf.mxu0
        %v4781 = vadd.f32 0.0, %v4780
        %v4782 = vpop.f32.mrf.mxu0
        %v4783 = vadd.f32 0.0, %v4782
        %4784 = vmatprep.mubr.bf16.mxu0 0
        %4785 = vmatmul.mubr.bf16.gmra.mxu0 %v4678
        %v4786 = vpop.f32.mrf.mxu0
        %v4787 = vadd.f32 0.0, %v4786
        %v4788 = vpop.f32.mrf.mxu0
        %v4789 = vadd.f32 0.0, %v4788
        %v4790 = vpop.f32.mrf.mxu0
        %v4791 = vadd.f32 0.0, %v4790
        %v4792 = vpop.f32.mrf.mxu0
        %v4793 = vadd.f32 0.0, %v4792
        %4794 = vmatprep.mubr.bf16.mxu0 0
        %4795 = vmatmul.mubr.bf16.gmra.mxu0 %v4681
        %v4796 = vpop.f32.mrf.mxu0
        %v4797 = vadd.f32 0.0, %v4796
        %v4798 = vpop.f32.mrf.mxu0
        %v4799 = vadd.f32 0.0, %v4798
        %v4800 = vpop.f32.mrf.mxu0
        %v4801 = vadd.f32 0.0, %v4800
        %v4802 = vpop.f32.mrf.mxu0
        %v4803 = vadd.f32 0.0, %v4802
        %4804 = vmatprep.mubr.bf16.mxu0 0
        %4805 = vmatmul.mubr.bf16.gmra.mxu0 %v4684
        %v4806 = vpop.f32.mrf.mxu0
        %v4807 = vadd.f32 0.0, %v4806
        %v4808 = vpop.f32.mrf.mxu0
        %v4809 = vadd.f32 0.0, %v4808
        %v4810 = vpop.f32.mrf.mxu0
        %v4811 = vadd.f32 0.0, %v4810
        %v4812 = vpop.f32.mrf.mxu0
        %v4813 = vadd.f32 0.0, %v4812
        %4814 = vmatprep.mubr.bf16.mxu0 0
        %4815 = vmatmul.mubr.bf16.gmra.mxu0 %v4687
        %v4816 = vpop.f32.mrf.mxu0
        %v4817 = vadd.f32 0.0, %v4816
        %v4818 = vpop.f32.mrf.mxu0
        %v4819 = vadd.f32 0.0, %v4818
        %v4820 = vpop.f32.mrf.mxu0
        %v4821 = vadd.f32 0.0, %v4820
        %v4822 = vpop.f32.mrf.mxu0
        %v4823 = vadd.f32 0.0, %v4822
        %4824 = vmatprep.mubr.bf16.mxu0 0
        %4825 = vmatmul.mubr.bf16.gmra.mxu0 %v4690
        %v4826 = vpop.f32.mrf.mxu0
        %v4827 = vadd.f32 0.0, %v4826
        %v4828 = vpop.f32.mrf.mxu0
        %v4829 = vadd.f32 0.0, %v4828
        %v4830 = vpop.f32.mrf.mxu0
        %v4831 = vadd.f32 0.0, %v4830
        %v4832 = vpop.f32.mrf.mxu0
        %v4833 = vadd.f32 0.0, %v4832
        %4834 = vmatprep.mubr.bf16.mxu0 0
        %4835 = vmatmul.mubr.bf16.gmra.mxu0 %v4693
        %v4836 = vpop.f32.mrf.mxu0
        %v4837 = vadd.f32 0.0, %v4836
        %v4838 = vpop.f32.mrf.mxu0
        %v4839 = vadd.f32 0.0, %v4838
        %v4840 = vpop.f32.mrf.mxu0
        %v4841 = vadd.f32 0.0, %v4840
        %v4842 = vpop.f32.mrf.mxu0
        %v4843 = vadd.f32 0.0, %v4842
        %4844 = vmatprep.mubr.bf16.mxu0 0
        %4845 = vmatmul.mubr.bf16.gmra.mxu0 %v4696
        %v4846 = vpop.f32.mrf.mxu0
        %v4847 = vadd.f32 0.0, %v4846
        %v4848 = vpop.f32.mrf.mxu0
        %v4849 = vadd.f32 0.0, %v4848
        %v4850 = vpop.f32.mrf.mxu0
        %v4851 = vadd.f32 0.0, %v4850
        %v4852 = vpop.f32.mrf.mxu0
        %v4853 = vadd.f32 0.0, %v4852
        %4854 = vmatprep.mubr.bf16.mxu0 0
        %4855 = vmatmul.mubr.bf16.gmra.mxu0 %v4699
        %v4856 = vpop.f32.mrf.mxu0
        %v4857 = vadd.f32 0.0, %v4856
        %v4858 = vpop.f32.mrf.mxu0
        %v4859 = vadd.f32 0.0, %v4858
        %v4860 = vpop.f32.mrf.mxu0
        %v4861 = vadd.f32 0.0, %v4860
        %v4862 = vpop.f32.mrf.mxu0
        %v4863 = vadd.f32 0.0, %v4862
        %4864 = vmatprep.mubr.bf16.mxu0 0
        %4865 = vmatmul.mubr.bf16.gmra.mxu0 %v4702
        %v4866 = vpop.f32.mrf.mxu0
        %v4867 = vadd.f32 0.0, %v4866
        %v4868 = vpop.f32.mrf.mxu0
        %v4869 = vadd.f32 0.0, %v4868
        %v4870 = vpop.f32.mrf.mxu0
        %v4871 = vadd.f32 0.0, %v4870
        %v4872 = vpop.f32.mrf.mxu0
        %v4873 = vadd.f32 0.0, %v4872
        %4874 = vmatprep.mubr.bf16.mxu0 0
        %4875 = vmatmul.mubr.bf16.gmra.mxu0 %v4705
        %v4876 = vpop.f32.mrf.mxu0
        %v4877 = vadd.f32 0.0, %v4876
        %v4878 = vpop.f32.mrf.mxu0
        %v4879 = vadd.f32 0.0, %v4878
        %v4880 = vpop.f32.mrf.mxu0
        %v4881 = vadd.f32 0.0, %v4880
        %v4882 = vpop.f32.mrf.mxu0
        %v4883 = vadd.f32 0.0, %v4882
        %4884 = vmatprep.mubr.bf16.mxu0 0
        %4885 = vmatmul.mubr.bf16.gmra.mxu0 %v4708
        %v4886 = vpop.f32.mrf.mxu0
        %v4887 = vadd.f32 0.0, %v4886
        %v4888 = vpop.f32.mrf.mxu0
        %v4889 = vadd.f32 0.0, %v4888
        %v4890 = vpop.f32.mrf.mxu0
        %v4891 = vadd.f32 0.0, %v4890
        %v4892 = vpop.f32.mrf.mxu0
        %v4893 = vadd.f32 0.0, %v4892
        %4894 = vmatprep.mubr.bf16.mxu0 0
        %4895 = vmatmul.mubr.bf16.gmra.mxu0 %v4711
        %v4896 = vpop.f32.mrf.mxu0
        %v4897 = vadd.f32 0.0, %v4896
        %v4898 = vpop.f32.mrf.mxu0
        %v4899 = vadd.f32 0.0, %v4898
        %v4900 = vpop.f32.mrf.mxu0
        %v4901 = vadd.f32 0.0, %v4900
        %v4902 = vpop.f32.mrf.mxu0
        %v4903 = vadd.f32 0.0, %v4902
        %4904 = vmatprep.mubr.bf16.mxu0 0
        %4905 = vmatmul.mubr.bf16.gmra.mxu0 %v4714
        %v4906 = vpop.f32.mrf.mxu0
        %v4907 = vadd.f32 0.0, %v4906
        %v4908 = vpop.f32.mrf.mxu0
        %v4909 = vadd.f32 0.0, %v4908
        %v4910 = vpop.f32.mrf.mxu0
        %v4911 = vadd.f32 0.0, %v4910
        %v4912 = vpop.f32.mrf.mxu0
        %v4913 = vadd.f32 0.0, %v4912
        %4914 = vdwg.mxu0
        %v4915 = vadd.f32 %v4113, %v4757
        %v4916 = vadd.f32 %v4114, %v4759
        %v4917 = vadd.f32 %v4115, %v4761
        %v4918 = vadd.f32 %v4116, %v4763
        %v4919 = vadd.f32 %v4117, %v4767
        %v4920 = vadd.f32 %v4118, %v4769
        %v4921 = vadd.f32 %v4119, %v4771
        %v4922 = vadd.f32 %v4120, %v4773
        %v4923 = vadd.f32 %v4121, %v4777
        %v4924 = vadd.f32 %v4122, %v4779
        %v4925 = vadd.f32 %v4123, %v4781
        %v4926 = vadd.f32 %v4124, %v4783
        %v4927 = vadd.f32 %v4125, %v4787
        %v4928 = vadd.f32 %v4126, %v4789
        %v4929 = vadd.f32 %v4127, %v4791
        %v4930 = vadd.f32 %v4128, %v4793
        %v4931 = vadd.f32 %v4129, %v4797
        %v4932 = vadd.f32 %v4130, %v4799
        %v4933 = vadd.f32 %v4131, %v4801
        %v4934 = vadd.f32 %v4132, %v4803
        %v4935 = vadd.f32 %v4133, %v4807
        %v4936 = vadd.f32 %v4134, %v4809
        %v4937 = vadd.f32 %v4135, %v4811
        %v4938 = vadd.f32 %v4136, %v4813
        %v4939 = vadd.f32 %v4137, %v4817
        %v4940 = vadd.f32 %v4138, %v4819
        %v4941 = vadd.f32 %v4139, %v4821
        %v4942 = vadd.f32 %v4140, %v4823
        %v4943 = vadd.f32 %v4141, %v4827
        %v4944 = vadd.f32 %v4142, %v4829
        %v4945 = vadd.f32 %v4143, %v4831
        %v4946 = vadd.f32 %v4144, %v4833
        %v4947 = vadd.f32 %v4145, %v4837
        %v4948 = vadd.f32 %v4146, %v4839
        %v4949 = vadd.f32 %v4147, %v4841
        %v4950 = vadd.f32 %v4148, %v4843
        %v4951 = vadd.f32 %v4149, %v4847
        %v4952 = vadd.f32 %v4150, %v4849
        %v4953 = vadd.f32 %v4151, %v4851
        %v4954 = vadd.f32 %v4152, %v4853
        %v4955 = vadd.f32 %v4153, %v4857
        %v4956 = vadd.f32 %v4154, %v4859
        %v4957 = vadd.f32 %v4155, %v4861
        %v4958 = vadd.f32 %v4156, %v4863
        %v4959 = vadd.f32 %v4157, %v4867
        %v4960 = vadd.f32 %v4158, %v4869
        %v4961 = vadd.f32 %v4159, %v4871
        %v4962 = vadd.f32 %v4160, %v4873
        %v4963 = vadd.f32 %v4161, %v4877
        %v4964 = vadd.f32 %v4162, %v4879
        %v4965 = vadd.f32 %v4163, %v4881
        %v4966 = vadd.f32 %v4164, %v4883
        %v4967 = vadd.f32 %v4165, %v4887
        %v4968 = vadd.f32 %v4166, %v4889
        %v4969 = vadd.f32 %v4167, %v4891
        %v4970 = vadd.f32 %v4168, %v4893
        %v4971 = vadd.f32 %v4169, %v4897
        %v4972 = vadd.f32 %v4170, %v4899
        %v4973 = vadd.f32 %v4171, %v4901
        %v4974 = vadd.f32 %v4172, %v4903
        %v4975 = vadd.f32 %v4173, %v4907
        %v4976 = vadd.f32 %v4174, %v4909
        %v4977 = vadd.f32 %v4175, %v4911
        %v4978 = vadd.f32 %v4176, %v4913
        %v4979 = vld [vmem:[%s3742] sm:$0xe]
        %v4980 = vld [vmem:[%s3742 + $0x4] sm:$0xf]
        %v4981 = vld [vmem:[%s3742 + $0x8] sm:$0x1]
        %v4982 = vld [vmem:[%s3742 + $0xc] sm:$0xe]
        %v4983 = vld [vmem:[%s3742 + $0x10] sm:$0xf]
        %v4984 = vld [vmem:[%s3742 + $0x14] sm:$0x1]
        %v4985 = vld [vmem:[%s3742 + $0x18] sm:$0xe]
        %v4986 = vld [vmem:[%s3742 + $0x1c] sm:$0xf]
        %v4987 = vld [vmem:[%s3742 + $0x20] sm:$0x1]
        %v4988 = vld [vmem:[%s3742 + $0x24] sm:$0xe]
        %v4989 = vld [vmem:[%s3742 + $0x28] sm:$0xf]
        %v4990 = vld [vmem:[%s3742 + $0x2c] sm:$0x1]
        %v4991 = vld [vmem:[%s3742 + $0x30] sm:$0xe]
        %v4992 = vld [vmem:[%s3742 + $0x34] sm:$0xf]
        %v4993 = vld [vmem:[%s3742 + $0x38] sm:$0x1]
        %v4994 = vld [vmem:[%s3742 + $0x3c] sm:$0xe]
        %v4995 = vld [vmem:[%s3742 + $0x40] sm:$0xf]
        %v4996 = vld [vmem:[%s3742 + $0x44] sm:$0x1]
        %v4997 = vld [vmem:[%s3742 + $0x48] sm:$0xe]
        %v4998 = vld [vmem:[%s3742 + $0x4c] sm:$0xf]
        %v4999 = vld [vmem:[%s3742 + $0x50] sm:$0x1]
        %v5000 = vld [vmem:[%s3742 + $0x54] sm:$0xe]
        %v5001 = vld [vmem:[%s3742 + $0x58] sm:$0xf]
        %v5002 = vld [vmem:[%s3742 + $0x5c] sm:$0x1]
        %v5003 = vld [vmem:[%s3742 + $0x60] sm:$0xe]
        %v5004 = vld [vmem:[%s3742 + $0x64] sm:$0xf]
        %v5005 = vld [vmem:[%s3742 + $0x68] sm:$0x1]
        %v5006 = vld [vmem:[%s3742 + $0x6c] sm:$0xe]
        %v5007 = vld [vmem:[%s3742 + $0x70] sm:$0xf]
        %v5008 = vld [vmem:[%s3742 + $0x74] sm:$0x1]
        %v5009 = vld [vmem:[%s3742 + $0x78] sm:$0xe]
        %v5010 = vld [vmem:[%s3742 + $0x7c] sm:$0xf]
        %v5011 = vld [vmem:[%s3742 + $0x80] sm:$0x1]
        %v5012 = vld [vmem:[%s3742 + $0x84] sm:$0xe]
        %v5013 = vld [vmem:[%s3742 + $0x88] sm:$0xf]
        %v5014 = vld [vmem:[%s3742 + $0x8c] sm:$0x1]
        %v5015 = vld [vmem:[%s3742 + $0x90] sm:$0xe]
        %v5016 = vld [vmem:[%s3742 + $0x94] sm:$0xf]
        %v5017 = vld [vmem:[%s3742 + $0x98] sm:$0x1]
        %v5018 = vld [vmem:[%s3742 + $0x9c] sm:$0xe]
        %v5019 = vld [vmem:[%s3742 + $0xa0] sm:$0xf]
        %v5020 = vld [vmem:[%s3742 + $0xa4] sm:$0x1]
        %v5021 = vld [vmem:[%s3742 + $0xa8] sm:$0xe]
        %v5022 = vld [vmem:[%s3742 + $0xac] sm:$0xf]
        %v5023 = vld [vmem:[%s3742 + $0xb0] sm:$0x1]
        %v5024 = vld [vmem:[%s3742 + $0xb4] sm:$0xe]
        %v5025 = vld [vmem:[%s3742 + $0xb8] sm:$0xf]
        %v5026 = vld [vmem:[%s3742 + $0xbc] sm:$0x1]
        %v5075 = vrot.slane %v4979, 5
        %v5076 = vrot.slane %v5075, 4
        %v5077 = vrot.slane %v4980, 5
        %v5078 = vsel %vm1438, %v5076, %v5077
        %v5079 = vrot.slane %v5077, 4
        %v5080 = vrot.slane %v4981, 5
        %v5081 = vsel %vm1438, %v5079, %v5080
        %v5082 = vrot.slane %v4982, 5
        %v5083 = vrot.slane %v5082, 4
        %v5084 = vrot.slane %v4983, 5
        %v5085 = vsel %vm1438, %v5083, %v5084
        %v5086 = vrot.slane %v5084, 4
        %v5087 = vrot.slane %v4984, 5
        %v5088 = vsel %vm1438, %v5086, %v5087
        %v5089 = vrot.slane %v4985, 5
        %v5090 = vrot.slane %v5089, 4
        %v5091 = vrot.slane %v4986, 5
        %v5092 = vsel %vm1438, %v5090, %v5091
        %v5093 = vrot.slane %v5091, 4
        %v5094 = vrot.slane %v4987, 5
        %v5095 = vsel %vm1438, %v5093, %v5094
        %v5096 = vrot.slane %v4988, 5
        %v5097 = vrot.slane %v5096, 4
        %v5098 = vrot.slane %v4989, 5
        %v5099 = vsel %vm1438, %v5097, %v5098
        %v5100 = vrot.slane %v5098, 4
        %v5101 = vrot.slane %v4990, 5
        %v5102 = vsel %vm1438, %v5100, %v5101
        %v5103 = vrot.slane %v4991, 5
        %v5104 = vrot.slane %v5103, 4
        %v5105 = vrot.slane %v4992, 5
        %v5106 = vsel %vm1438, %v5104, %v5105
        %v5107 = vrot.slane %v5105, 4
        %v5108 = vrot.slane %v4993, 5
        %v5109 = vsel %vm1438, %v5107, %v5108
        %v5110 = vrot.slane %v4994, 5
        %v5111 = vrot.slane %v5110, 4
        %v5112 = vrot.slane %v4995, 5
        %v5113 = vsel %vm1438, %v5111, %v5112
        %v5114 = vrot.slane %v5112, 4
        %v5115 = vrot.slane %v4996, 5
        %v5116 = vsel %vm1438, %v5114, %v5115
        %v5117 = vrot.slane %v4997, 5
        %v5118 = vrot.slane %v5117, 4
        %v5119 = vrot.slane %v4998, 5
        %v5120 = vsel %vm1438, %v5118, %v5119
        %v5121 = vrot.slane %v5119, 4
        %v5122 = vrot.slane %v4999, 5
        %v5123 = vsel %vm1438, %v5121, %v5122
        %v5124 = vrot.slane %v5000, 5
        %v5125 = vrot.slane %v5124, 4
        %v5126 = vrot.slane %v5001, 5
        %v5127 = vsel %vm1438, %v5125, %v5126
        %v5128 = vrot.slane %v5126, 4
        %v5129 = vrot.slane %v5002, 5
        %v5130 = vsel %vm1438, %v5128, %v5129
        %v5131 = vrot.slane %v5003, 5
        %v5132 = vrot.slane %v5131, 4
        %v5133 = vrot.slane %v5004, 5
        %v5134 = vsel %vm1438, %v5132, %v5133
        %v5135 = vrot.slane %v5133, 4
        %v5136 = vrot.slane %v5005, 5
        %v5137 = vsel %vm1438, %v5135, %v5136
        %v5138 = vrot.slane %v5006, 5
        %v5139 = vrot.slane %v5138, 4
        %v5140 = vrot.slane %v5007, 5
        %v5141 = vsel %vm1438, %v5139, %v5140
        %v5142 = vrot.slane %v5140, 4
        %v5143 = vrot.slane %v5008, 5
        %v5144 = vsel %vm1438, %v5142, %v5143
        %v5145 = vrot.slane %v5009, 5
        %v5146 = vrot.slane %v5145, 4
        %v5147 = vrot.slane %v5010, 5
        %v5148 = vsel %vm1438, %v5146, %v5147
        %v5149 = vrot.slane %v5147, 4
        %v5150 = vrot.slane %v5011, 5
        %v5151 = vsel %vm1438, %v5149, %v5150
        %v5152 = vrot.slane %v5012, 5
        %v5153 = vrot.slane %v5152, 4
        %v5154 = vrot.slane %v5013, 5
        %v5155 = vsel %vm1438, %v5153, %v5154
        %v5156 = vrot.slane %v5154, 4
        %v5157 = vrot.slane %v5014, 5
        %v5158 = vsel %vm1438, %v5156, %v5157
        %v5159 = vrot.slane %v5015, 5
        %v5160 = vrot.slane %v5159, 4
        %v5161 = vrot.slane %v5016, 5
        %v5162 = vsel %vm1438, %v5160, %v5161
        %v5163 = vrot.slane %v5161, 4
        %v5164 = vrot.slane %v5017, 5
        %v5165 = vsel %vm1438, %v5163, %v5164
        %v5166 = vrot.slane %v5018, 5
        %v5167 = vrot.slane %v5166, 4
        %v5168 = vrot.slane %v5019, 5
        %v5169 = vsel %vm1438, %v5167, %v5168
        %v5170 = vrot.slane %v5168, 4
        %v5171 = vrot.slane %v5020, 5
        %v5172 = vsel %vm1438, %v5170, %v5171
        %v5173 = vrot.slane %v5021, 5
        %v5174 = vrot.slane %v5173, 4
        %v5175 = vrot.slane %v5022, 5
        %v5176 = vsel %vm1438, %v5174, %v5175
        %v5177 = vrot.slane %v5175, 4
        %v5178 = vrot.slane %v5023, 5
        %v5179 = vsel %vm1438, %v5177, %v5178
        %v5180 = vrot.slane %v5024, 5
        %v5181 = vrot.slane %v5180, 4
        %v5182 = vrot.slane %v5025, 5
        %v5183 = vsel %vm1438, %v5181, %v5182
        %v5184 = vrot.slane %v5182, 4
        %v5185 = vrot.slane %v5026, 5
        %v5186 = vsel %vm1438, %v5184, %v5185
        %s5187 = scalar_lea.vmem %s2, 32
        %v5188 = vld [vmem:[%s5187] sm:$0xf]
        %v5189 = vunpack.c.l.b16 %v5078
        %v5190 = vunpack.c.l.b16 %v5081
        %v5191 = vunpack.c.l.b16 %v5085
        %v5192 = vunpack.c.l.b16 %v5088
        %v5193 = vunpack.c.l.b16 %v5092
        %v5194 = vunpack.c.l.b16 %v5095
        %v5195 = vunpack.c.l.b16 %v5099
        %v5196 = vunpack.c.l.b16 %v5102
        %v5197 = vunpack.c.l.b16 %v5106
        %v5198 = vunpack.c.l.b16 %v5109
        %v5199 = vunpack.c.l.b16 %v5113
        %v5200 = vunpack.c.l.b16 %v5116
        %v5201 = vunpack.c.l.b16 %v5120
        %v5202 = vunpack.c.l.b16 %v5123
        %v5203 = vunpack.c.l.b16 %v5127
        %v5204 = vunpack.c.l.b16 %v5130
        %v5205 = vunpack.c.l.b16 %v5134
        %v5206 = vunpack.c.l.b16 %v5137
        %v5207 = vunpack.c.l.b16 %v5141
        %v5208 = vunpack.c.l.b16 %v5144
        %v5209 = vunpack.c.l.b16 %v5148
        %v5210 = vunpack.c.l.b16 %v5151
        %v5211 = vunpack.c.l.b16 %v5155
        %v5212 = vunpack.c.l.b16 %v5158
        %v5213 = vunpack.c.l.b16 %v5162
        %v5214 = vunpack.c.l.b16 %v5165
        %v5215 = vunpack.c.l.b16 %v5169
        %v5216 = vunpack.c.l.b16 %v5172
        %v5217 = vunpack.c.l.b16 %v5176
        %v5218 = vunpack.c.l.b16 %v5179
        %v5219 = vunpack.c.l.b16 %v5183
        %v5220 = vunpack.c.l.b16 %v5186
        %v5221 = vpack.c.b16 %v5190, %v5189
        %v5222 = vpack.c.b16 %v5192, %v5191
        %v5223 = vpack.c.b16 %v5194, %v5193
        %v5224 = vpack.c.b16 %v5196, %v5195
        %v5225 = vpack.c.b16 %v5198, %v5197
        %v5226 = vpack.c.b16 %v5200, %v5199
        %v5227 = vpack.c.b16 %v5202, %v5201
        %v5228 = vpack.c.b16 %v5204, %v5203
        %v5229 = vpack.c.b16 %v5206, %v5205
        %v5230 = vpack.c.b16 %v5208, %v5207
        %v5231 = vpack.c.b16 %v5210, %v5209
        %v5232 = vpack.c.b16 %v5212, %v5211
        %v5233 = vpack.c.b16 %v5214, %v5213
        %v5234 = vpack.c.b16 %v5216, %v5215
        %v5235 = vpack.c.b16 %v5218, %v5217
        %v5236 = vpack.c.b16 %v5220, %v5219
        %v5239 = vunpack.c.l.s4 1983009808
        %v5240 = vunpack.c.0.s8 %v5239
        %v5241 = vlaneseq
        %v5242 = vshrl.u32 %v5241, 7
        %v5243 = vsub.s32 %v5240, %v5242
        %v5244 = vrot.slane %v5188, %v5243
        %v5245 = vcombine.high %v5244, %v5244
        %v5247 = vsel %vm755, %v5221, 0
        %v5250 = vsel %vm755, %v5222, 0
        %v5253 = vsel %vm755, %v5223, 0
        %v5256 = vsel %vm755, %v5224, 0
        %v5259 = vsel %vm755, %v5225, 0
        %v5262 = vsel %vm755, %v5226, 0
        %v5265 = vsel %vm755, %v5227, 0
        %v5268 = vsel %vm755, %v5228, 0
        %v5271 = vsel %vm755, %v5229, 0
        %v5274 = vsel %vm755, %v5230, 0
        %v5277 = vsel %vm755, %v5231, 0
        %v5280 = vsel %vm755, %v5232, 0
        %v5283 = vsel %vm755, %v5233, 0
        %v5286 = vsel %vm755, %v5234, 0
        %v5289 = vsel %vm755, %v5235, 0
        %v5292 = vsel %vm755, %v5236, 0
        %v5295 = vsel %vm804, %v5244, 0
        %v5298 = vsel %vm804, %v5245, 0
        %5300 = vmatprep.subr.bf16.mxu0 0
        %5301 = vmatpush1.bf16.msra.mxu0 0
        %5302 = vmatprep.subr.bf16.mxu0 0
        %5303 = vmatpush1.bf16.msra.mxu0 0
        %5304 = vmatprep.subr.bf16.mxu0 0
        %5305 = vmatpush1.bf16.msra.mxu0 0
        %5306 = vmatprep.subr.bf16.mxu0 0
        %5307 = vmatpush1.bf16.msra.mxu0 0
        %5308 = vmatprep.subr.bf16.mxu0 0
        %5309 = vmatpush1.bf16.msra.mxu0 0
        %5310 = vmatprep.subr.bf16.mxu0 0
        %5311 = vmatpush1.bf16.msra.mxu0 0
        %5312 = vmatprep.subr.bf16.mxu0 0
        %5313 = vmatpush1.bf16.msra.mxu0 0
        %5314 = vmatprep.subr.bf16.mxu0 %v5298
        %5315 = vmatpush1.bf16.msra.mxu0 %v5295
        %5316 = vmatprep.subr.bf16.mxu0 0
        %5317 = vmatpush2.bf16.msra.mxu0 0
        %5318 = vmatprep.subr.bf16.mxu0 0
        %5319 = vmatpush2.bf16.msra.mxu0 0
        %5320 = vmatprep.subr.bf16.mxu0 0
        %5321 = vmatpush2.bf16.msra.mxu0 0
        %5322 = vmatprep.subr.bf16.mxu0 0
        %5323 = vmatpush2.bf16.msra.mxu0 0
        %5324 = vmatprep.subr.bf16.mxu0 0
        %5325 = vmatpush2.bf16.msra.mxu0 0
        %5326 = vmatprep.subr.bf16.mxu0 0
        %5327 = vmatpush2.bf16.msra.mxu0 0
        %5328 = vmatprep.subr.bf16.mxu0 0
        %5329 = vmatpush2.bf16.msra.mxu0 0
        %5330 = vmatprep.subr.bf16.mxu0 0
        %5331 = vmatpush2.bf16.msra.mxu0 0
        %5332 = vmatprep.mubr.bf16.mxu0 0
        %5333 = vmatmul.mubr.bf16.gmra.mxu0 %v5247
        %v5334 = vpop.f32.mrf.mxu0
        %v5335 = vadd.f32 0.0, %v5334
        %v5336 = vpop.f32.mrf.mxu0
        %v5337 = vadd.f32 0.0, %v5336
        %v5338 = vpop.f32.mrf.mxu0
        %v5339 = vadd.f32 0.0, %v5338
        %v5340 = vpop.f32.mrf.mxu0
        %v5341 = vadd.f32 0.0, %v5340
        %5342 = vmatprep.mubr.bf16.mxu0 0
        %5343 = vmatmul.mubr.bf16.gmra.mxu0 %v5250
        %v5344 = vpop.f32.mrf.mxu0
        %v5345 = vadd.f32 0.0, %v5344
        %v5346 = vpop.f32.mrf.mxu0
        %v5347 = vadd.f32 0.0, %v5346
        %v5348 = vpop.f32.mrf.mxu0
        %v5349 = vadd.f32 0.0, %v5348
        %v5350 = vpop.f32.mrf.mxu0
        %v5351 = vadd.f32 0.0, %v5350
        %5352 = vmatprep.mubr.bf16.mxu0 0
        %5353 = vmatmul.mubr.bf16.gmra.mxu0 %v5253
        %v5354 = vpop.f32.mrf.mxu0
        %v5355 = vadd.f32 0.0, %v5354
        %v5356 = vpop.f32.mrf.mxu0
        %v5357 = vadd.f32 0.0, %v5356
        %v5358 = vpop.f32.mrf.mxu0
        %v5359 = vadd.f32 0.0, %v5358
        %v5360 = vpop.f32.mrf.mxu0
        %v5361 = vadd.f32 0.0, %v5360
        %5362 = vmatprep.mubr.bf16.mxu0 0
        %5363 = vmatmul.mubr.bf16.gmra.mxu0 %v5256
        %v5364 = vpop.f32.mrf.mxu0
        %v5365 = vadd.f32 0.0, %v5364
        %v5366 = vpop.f32.mrf.mxu0
        %v5367 = vadd.f32 0.0, %v5366
        %v5368 = vpop.f32.mrf.mxu0
        %v5369 = vadd.f32 0.0, %v5368
        %v5370 = vpop.f32.mrf.mxu0
        %v5371 = vadd.f32 0.0, %v5370
        %5372 = vmatprep.mubr.bf16.mxu0 0
        %5373 = vmatmul.mubr.bf16.gmra.mxu0 %v5259
        %v5374 = vpop.f32.mrf.mxu0
        %v5375 = vadd.f32 0.0, %v5374
        %v5376 = vpop.f32.mrf.mxu0
        %v5377 = vadd.f32 0.0, %v5376
        %v5378 = vpop.f32.mrf.mxu0
        %v5379 = vadd.f32 0.0, %v5378
        %v5380 = vpop.f32.mrf.mxu0
        %v5381 = vadd.f32 0.0, %v5380
        %5382 = vmatprep.mubr.bf16.mxu0 0
        %5383 = vmatmul.mubr.bf16.gmra.mxu0 %v5262
        %v5384 = vpop.f32.mrf.mxu0
        %v5385 = vadd.f32 0.0, %v5384
        %v5386 = vpop.f32.mrf.mxu0
        %v5387 = vadd.f32 0.0, %v5386
        %v5388 = vpop.f32.mrf.mxu0
        %v5389 = vadd.f32 0.0, %v5388
        %v5390 = vpop.f32.mrf.mxu0
        %v5391 = vadd.f32 0.0, %v5390
        %5392 = vmatprep.mubr.bf16.mxu0 0
        %5393 = vmatmul.mubr.bf16.gmra.mxu0 %v5265
        %v5394 = vpop.f32.mrf.mxu0
        %v5395 = vadd.f32 0.0, %v5394
        %v5396 = vpop.f32.mrf.mxu0
        %v5397 = vadd.f32 0.0, %v5396
        %v5398 = vpop.f32.mrf.mxu0
        %v5399 = vadd.f32 0.0, %v5398
        %v5400 = vpop.f32.mrf.mxu0
        %v5401 = vadd.f32 0.0, %v5400
        %5402 = vmatprep.mubr.bf16.mxu0 0
        %5403 = vmatmul.mubr.bf16.gmra.mxu0 %v5268
        %v5404 = vpop.f32.mrf.mxu0
        %v5405 = vadd.f32 0.0, %v5404
        %v5406 = vpop.f32.mrf.mxu0
        %v5407 = vadd.f32 0.0, %v5406
        %v5408 = vpop.f32.mrf.mxu0
        %v5409 = vadd.f32 0.0, %v5408
        %v5410 = vpop.f32.mrf.mxu0
        %v5411 = vadd.f32 0.0, %v5410
        %5412 = vmatprep.mubr.bf16.mxu0 0
        %5413 = vmatmul.mubr.bf16.gmra.mxu0 %v5271
        %v5414 = vpop.f32.mrf.mxu0
        %v5415 = vadd.f32 0.0, %v5414
        %v5416 = vpop.f32.mrf.mxu0
        %v5417 = vadd.f32 0.0, %v5416
        %v5418 = vpop.f32.mrf.mxu0
        %v5419 = vadd.f32 0.0, %v5418
        %v5420 = vpop.f32.mrf.mxu0
        %v5421 = vadd.f32 0.0, %v5420
        %5422 = vmatprep.mubr.bf16.mxu0 0
        %5423 = vmatmul.mubr.bf16.gmra.mxu0 %v5274
        %v5424 = vpop.f32.mrf.mxu0
        %v5425 = vadd.f32 0.0, %v5424
        %v5426 = vpop.f32.mrf.mxu0
        %v5427 = vadd.f32 0.0, %v5426
        %v5428 = vpop.f32.mrf.mxu0
        %v5429 = vadd.f32 0.0, %v5428
        %v5430 = vpop.f32.mrf.mxu0
        %v5431 = vadd.f32 0.0, %v5430
        %5432 = vmatprep.mubr.bf16.mxu0 0
        %5433 = vmatmul.mubr.bf16.gmra.mxu0 %v5277
        %v5434 = vpop.f32.mrf.mxu0
        %v5435 = vadd.f32 0.0, %v5434
        %v5436 = vpop.f32.mrf.mxu0
        %v5437 = vadd.f32 0.0, %v5436
        %v5438 = vpop.f32.mrf.mxu0
        %v5439 = vadd.f32 0.0, %v5438
        %v5440 = vpop.f32.mrf.mxu0
        %v5441 = vadd.f32 0.0, %v5440
        %5442 = vmatprep.mubr.bf16.mxu0 0
        %5443 = vmatmul.mubr.bf16.gmra.mxu0 %v5280
        %v5444 = vpop.f32.mrf.mxu0
        %v5445 = vadd.f32 0.0, %v5444
        %v5446 = vpop.f32.mrf.mxu0
        %v5447 = vadd.f32 0.0, %v5446
        %v5448 = vpop.f32.mrf.mxu0
        %v5449 = vadd.f32 0.0, %v5448
        %v5450 = vpop.f32.mrf.mxu0
        %v5451 = vadd.f32 0.0, %v5450
        %5452 = vmatprep.mubr.bf16.mxu0 0
        %5453 = vmatmul.mubr.bf16.gmra.mxu0 %v5283
        %v5454 = vpop.f32.mrf.mxu0
        %v5455 = vadd.f32 0.0, %v5454
        %v5456 = vpop.f32.mrf.mxu0
        %v5457 = vadd.f32 0.0, %v5456
        %v5458 = vpop.f32.mrf.mxu0
        %v5459 = vadd.f32 0.0, %v5458
        %v5460 = vpop.f32.mrf.mxu0
        %v5461 = vadd.f32 0.0, %v5460
        %5462 = vmatprep.mubr.bf16.mxu0 0
        %5463 = vmatmul.mubr.bf16.gmra.mxu0 %v5286
        %v5464 = vpop.f32.mrf.mxu0
        %v5465 = vadd.f32 0.0, %v5464
        %v5466 = vpop.f32.mrf.mxu0
        %v5467 = vadd.f32 0.0, %v5466
        %v5468 = vpop.f32.mrf.mxu0
        %v5469 = vadd.f32 0.0, %v5468
        %v5470 = vpop.f32.mrf.mxu0
        %v5471 = vadd.f32 0.0, %v5470
        %5472 = vmatprep.mubr.bf16.mxu0 0
        %5473 = vmatmul.mubr.bf16.gmra.mxu0 %v5289
        %v5474 = vpop.f32.mrf.mxu0
        %v5475 = vadd.f32 0.0, %v5474
        %v5476 = vpop.f32.mrf.mxu0
        %v5477 = vadd.f32 0.0, %v5476
        %v5478 = vpop.f32.mrf.mxu0
        %v5479 = vadd.f32 0.0, %v5478
        %v5480 = vpop.f32.mrf.mxu0
        %v5481 = vadd.f32 0.0, %v5480
        %5482 = vmatprep.mubr.bf16.mxu0 0
        %5483 = vmatmul.mubr.bf16.gmra.mxu0 %v5292
        %v5484 = vpop.f32.mrf.mxu0
        %v5485 = vadd.f32 0.0, %v5484
        %v5486 = vpop.f32.mrf.mxu0
        %v5487 = vadd.f32 0.0, %v5486
        %v5488 = vpop.f32.mrf.mxu0
        %v5489 = vadd.f32 0.0, %v5488
        %v5490 = vpop.f32.mrf.mxu0
        %v5491 = vadd.f32 0.0, %v5490
        %5492 = vdwg.mxu0
        %v5493 = vadd.f32 %v4915, %v5335
        %v5494 = vadd.f32 %v4916, %v5337
        %v5495 = vadd.f32 %v4917, %v5339
        %v5496 = vadd.f32 %v4918, %v5341
        %v5497 = vadd.f32 %v4919, %v5345
        %v5498 = vadd.f32 %v4920, %v5347
        %v5499 = vadd.f32 %v4921, %v5349
        %v5500 = vadd.f32 %v4922, %v5351
        %v5501 = vadd.f32 %v4923, %v5355
        %v5502 = vadd.f32 %v4924, %v5357
        %v5503 = vadd.f32 %v4925, %v5359
        %v5504 = vadd.f32 %v4926, %v5361
        %v5505 = vadd.f32 %v4927, %v5365
        %v5506 = vadd.f32 %v4928, %v5367
        %v5507 = vadd.f32 %v4929, %v5369
        %v5508 = vadd.f32 %v4930, %v5371
        %v5509 = vadd.f32 %v4931, %v5375
        %v5510 = vadd.f32 %v4932, %v5377
        %v5511 = vadd.f32 %v4933, %v5379
        %v5512 = vadd.f32 %v4934, %v5381
        %v5513 = vadd.f32 %v4935, %v5385
        %v5514 = vadd.f32 %v4936, %v5387
        %v5515 = vadd.f32 %v4937, %v5389
        %v5516 = vadd.f32 %v4938, %v5391
        %v5517 = vadd.f32 %v4939, %v5395
        %v5518 = vadd.f32 %v4940, %v5397
        %v5519 = vadd.f32 %v4941, %v5399
        %v5520 = vadd.f32 %v4942, %v5401
        %v5521 = vadd.f32 %v4943, %v5405
        %v5522 = vadd.f32 %v4944, %v5407
        %v5523 = vadd.f32 %v4945, %v5409
        %v5524 = vadd.f32 %v4946, %v5411
        %v5525 = vadd.f32 %v4947, %v5415
        %v5526 = vadd.f32 %v4948, %v5417
        %v5527 = vadd.f32 %v4949, %v5419
        %v5528 = vadd.f32 %v4950, %v5421
        %v5529 = vadd.f32 %v4951, %v5425
        %v5530 = vadd.f32 %v4952, %v5427
        %v5531 = vadd.f32 %v4953, %v5429
        %v5532 = vadd.f32 %v4954, %v5431
        %v5533 = vadd.f32 %v4955, %v5435
        %v5534 = vadd.f32 %v4956, %v5437
        %v5535 = vadd.f32 %v4957, %v5439
        %v5536 = vadd.f32 %v4958, %v5441
        %v5537 = vadd.f32 %v4959, %v5445
        %v5538 = vadd.f32 %v4960, %v5447
        %v5539 = vadd.f32 %v4961, %v5449
        %v5540 = vadd.f32 %v4962, %v5451
        %v5541 = vadd.f32 %v4963, %v5455
        %v5542 = vadd.f32 %v4964, %v5457
        %v5543 = vadd.f32 %v4965, %v5459
        %v5544 = vadd.f32 %v4966, %v5461
        %v5545 = vadd.f32 %v4967, %v5465
        %v5546 = vadd.f32 %v4968, %v5467
        %v5547 = vadd.f32 %v4969, %v5469
        %v5548 = vadd.f32 %v4970, %v5471
        %v5549 = vadd.f32 %v4971, %v5475
        %v5550 = vadd.f32 %v4972, %v5477
        %v5551 = vadd.f32 %v4973, %v5479
        %v5552 = vadd.f32 %v4974, %v5481
        %v5553 = vadd.f32 %v4975, %v5485
        %v5554 = vadd.f32 %v4976, %v5487
        %v5555 = vadd.f32 %v4977, %v5489
        %v5556 = vadd.f32 %v4978, %v5491
        %v5557 = vld [vmem:[%s3] sm:$0x3]
        %v5559 = vlaneseq
        %v5560 = vshrl.u32 %v5559, 7
        %v5561 = vsub.s32 0, %v5560
        %v5562 = vrot.slane %v5557, %v5561
        %v5563 = vlaneseq
        %v5564 = vshrl.u32 %v5563, 7
        %v5565 = vsub.s32 1, %v5564
        %v5566 = vrot.slane %v5557, %v5565
        %v5569 = vadd.f32 %v5493, %v5562
        %v5570 = vadd.f32 %v5494, %v5566
        %v5571 = vadd.f32 %v5495, %v5562
        %v5572 = vadd.f32 %v5496, %v5566
        %v5573 = vadd.f32 %v5497, %v5562
        %v5574 = vadd.f32 %v5498, %v5566
        %v5575 = vadd.f32 %v5499, %v5562
        %v5576 = vadd.f32 %v5500, %v5566
        %v5577 = vadd.f32 %v5501, %v5562
        %v5578 = vadd.f32 %v5502, %v5566
        %v5579 = vadd.f32 %v5503, %v5562
        %v5580 = vadd.f32 %v5504, %v5566
        %v5581 = vadd.f32 %v5505, %v5562
        %v5582 = vadd.f32 %v5506, %v5566
        %v5583 = vadd.f32 %v5507, %v5562
        %v5584 = vadd.f32 %v5508, %v5566
        %v5585 = vadd.f32 %v5509, %v5562
        %v5586 = vadd.f32 %v5510, %v5566
        %v5587 = vadd.f32 %v5511, %v5562
        %v5588 = vadd.f32 %v5512, %v5566
        %v5589 = vadd.f32 %v5513, %v5562
        %v5590 = vadd.f32 %v5514, %v5566
        %v5591 = vadd.f32 %v5515, %v5562
        %v5592 = vadd.f32 %v5516, %v5566
        %v5593 = vadd.f32 %v5517, %v5562
        %v5594 = vadd.f32 %v5518, %v5566
        %v5595 = vadd.f32 %v5519, %v5562
        %v5596 = vadd.f32 %v5520, %v5566
        %v5597 = vadd.f32 %v5521, %v5562
        %v5598 = vadd.f32 %v5522, %v5566
        %v5599 = vadd.f32 %v5523, %v5562
        %v5600 = vadd.f32 %v5524, %v5566
        %v5601 = vadd.f32 %v5525, %v5562
        %v5602 = vadd.f32 %v5526, %v5566
        %v5603 = vadd.f32 %v5527, %v5562
        %v5604 = vadd.f32 %v5528, %v5566
        %v5605 = vadd.f32 %v5529, %v5562
        %v5606 = vadd.f32 %v5530, %v5566
        %v5607 = vadd.f32 %v5531, %v5562
        %v5608 = vadd.f32 %v5532, %v5566
        %v5609 = vadd.f32 %v5533, %v5562
        %v5610 = vadd.f32 %v5534, %v5566
        %v5611 = vadd.f32 %v5535, %v5562
        %v5612 = vadd.f32 %v5536, %v5566
        %v5613 = vadd.f32 %v5537, %v5562
        %v5614 = vadd.f32 %v5538, %v5566
        %v5615 = vadd.f32 %v5539, %v5562
        %v5616 = vadd.f32 %v5540, %v5566
        %v5617 = vadd.f32 %v5541, %v5562
        %v5618 = vadd.f32 %v5542, %v5566
        %v5619 = vadd.f32 %v5543, %v5562
        %v5620 = vadd.f32 %v5544, %v5566
        %v5621 = vadd.f32 %v5545, %v5562
        %v5622 = vadd.f32 %v5546, %v5566
        %v5623 = vadd.f32 %v5547, %v5562
        %v5624 = vadd.f32 %v5548, %v5566
        %v5625 = vadd.f32 %v5549, %v5562
        %v5626 = vadd.f32 %v5550, %v5566
        %v5627 = vadd.f32 %v5551, %v5562
        %v5628 = vadd.f32 %v5552, %v5566
        %v5629 = vadd.f32 %v5553, %v5562
        %v5630 = vadd.f32 %v5554, %v5566
        %v5631 = vadd.f32 %v5555, %v5562
        %v5632 = vadd.f32 %v5556, %v5566
        %s5633 = sld [smem:[#allocation2]]
        %vm5634 = vcmp.ge.f32.partialorder %v5569, 0.0
        %vm5635 = vcmp.ge.f32.partialorder %v5571, 0.0
        %vm5636 = vcmp.ge.f32.partialorder %v5573, 0.0
        %vm5637 = vcmp.ge.f32.partialorder %v5575, 0.0
        %vm5638 = vcmp.ge.f32.partialorder %v5577, 0.0
        %vm5639 = vcmp.ge.f32.partialorder %v5579, 0.0
        %vm5640 = vcmp.ge.f32.partialorder %v5581, 0.0
        %vm5641 = vcmp.ge.f32.partialorder %v5583, 0.0
        %vm5642 = vcmp.ge.f32.partialorder %v5585, 0.0
        %vm5643 = vcmp.ge.f32.partialorder %v5587, 0.0
        %vm5644 = vcmp.ge.f32.partialorder %v5589, 0.0
        %vm5645 = vcmp.ge.f32.partialorder %v5591, 0.0
        %vm5646 = vcmp.ge.f32.partialorder %v5593, 0.0
        %vm5647 = vcmp.ge.f32.partialorder %v5595, 0.0
        %vm5648 = vcmp.ge.f32.partialorder %v5597, 0.0
        %vm5649 = vcmp.ge.f32.partialorder %v5599, 0.0
        %vm5650 = vcmp.ge.f32.partialorder %v5601, 0.0
        %vm5651 = vcmp.ge.f32.partialorder %v5603, 0.0
        %vm5652 = vcmp.ge.f32.partialorder %v5605, 0.0
        %vm5653 = vcmp.ge.f32.partialorder %v5607, 0.0
        %vm5654 = vcmp.ge.f32.partialorder %v5609, 0.0
        %vm5655 = vcmp.ge.f32.partialorder %v5611, 0.0
        %vm5656 = vcmp.ge.f32.partialorder %v5613, 0.0
        %vm5657 = vcmp.ge.f32.partialorder %v5615, 0.0
        %vm5658 = vcmp.ge.f32.partialorder %v5617, 0.0
        %vm5659 = vcmp.ge.f32.partialorder %v5619, 0.0
        %vm5660 = vcmp.ge.f32.partialorder %v5621, 0.0
        %vm5661 = vcmp.ge.f32.partialorder %v5623, 0.0
        %vm5662 = vcmp.ge.f32.partialorder %v5625, 0.0
        %vm5663 = vcmp.ge.f32.partialorder %v5627, 0.0
        %vm5664 = vcmp.ge.f32.partialorder %v5629, 0.0
        %vm5665 = vcmp.ge.f32.partialorder %v5631, 0.0
        %v5666 = vstv %s5633
        %v5667 = vmul.f32 %v5666, %v5569
        %v5668 = vmul.f32 %v5666, %v5571
        %v5669 = vmul.f32 %v5666, %v5573
        %v5670 = vmul.f32 %v5666, %v5575
        %v5671 = vmul.f32 %v5666, %v5577
        %v5672 = vmul.f32 %v5666, %v5579
        %v5673 = vmul.f32 %v5666, %v5581
        %v5674 = vmul.f32 %v5666, %v5583
        %v5675 = vmul.f32 %v5666, %v5585
        %v5676 = vmul.f32 %v5666, %v5587
        %v5677 = vmul.f32 %v5666, %v5589
        %v5678 = vmul.f32 %v5666, %v5591
        %v5679 = vmul.f32 %v5666, %v5593
        %v5680 = vmul.f32 %v5666, %v5595
        %v5681 = vmul.f32 %v5666, %v5597
        %v5682 = vmul.f32 %v5666, %v5599
        %v5683 = vmul.f32 %v5666, %v5601
        %v5684 = vmul.f32 %v5666, %v5603
        %v5685 = vmul.f32 %v5666, %v5605
        %v5686 = vmul.f32 %v5666, %v5607
        %v5687 = vmul.f32 %v5666, %v5609
        %v5688 = vmul.f32 %v5666, %v5611
        %v5689 = vmul.f32 %v5666, %v5613
        %v5690 = vmul.f32 %v5666, %v5615
        %v5691 = vmul.f32 %v5666, %v5617
        %v5692 = vmul.f32 %v5666, %v5619
        %v5693 = vmul.f32 %v5666, %v5621
        %v5694 = vmul.f32 %v5666, %v5623
        %v5695 = vmul.f32 %v5666, %v5625
        %v5696 = vmul.f32 %v5666, %v5627
        %v5697 = vmul.f32 %v5666, %v5629
        %v5698 = vmul.f32 %v5666, %v5631
        %v5699 = vsel %vm5634, %v5569, %v5667
        %v5700 = vsel %vm5635, %v5571, %v5668
        %v5701 = vsel %vm5636, %v5573, %v5669
        %v5702 = vsel %vm5637, %v5575, %v5670
        %v5703 = vsel %vm5638, %v5577, %v5671
        %v5704 = vsel %vm5639, %v5579, %v5672
        %v5705 = vsel %vm5640, %v5581, %v5673
        %v5706 = vsel %vm5641, %v5583, %v5674
        %v5707 = vsel %vm5642, %v5585, %v5675
        %v5708 = vsel %vm5643, %v5587, %v5676
        %v5709 = vsel %vm5644, %v5589, %v5677
        %v5710 = vsel %vm5645, %v5591, %v5678
        %v5711 = vsel %vm5646, %v5593, %v5679
        %v5712 = vsel %vm5647, %v5595, %v5680
        %v5713 = vsel %vm5648, %v5597, %v5681
        %v5714 = vsel %vm5649, %v5599, %v5682
        %v5715 = vsel %vm5650, %v5601, %v5683
        %v5716 = vsel %vm5651, %v5603, %v5684
        %v5717 = vsel %vm5652, %v5605, %v5685
        %v5718 = vsel %vm5653, %v5607, %v5686
        %v5719 = vsel %vm5654, %v5609, %v5687
        %v5720 = vsel %vm5655, %v5611, %v5688
        %v5721 = vsel %vm5656, %v5613, %v5689
        %v5722 = vsel %vm5657, %v5615, %v5690
        %v5723 = vsel %vm5658, %v5617, %v5691
        %v5724 = vsel %vm5659, %v5619, %v5692
        %v5725 = vsel %vm5660, %v5621, %v5693
        %v5726 = vsel %vm5661, %v5623, %v5694
        %v5727 = vsel %vm5662, %v5625, %v5695
        %v5728 = vsel %vm5663, %v5627, %v5696
        %v5729 = vsel %vm5664, %v5629, %v5697
        %v5730 = vsel %vm5665, %v5631, %v5698
        %v5731 = vpack.c.bf16 %v5700, %v5699
        %v5732 = vpack.c.bf16 %v5702, %v5701
        %v5733 = vpack.c.bf16 %v5704, %v5703
        %v5734 = vpack.c.bf16 %v5706, %v5705
        %v5735 = vpack.c.bf16 %v5708, %v5707
        %v5736 = vpack.c.bf16 %v5710, %v5709
        %v5737 = vpack.c.bf16 %v5712, %v5711
        %v5738 = vpack.c.bf16 %v5714, %v5713
        %v5739 = vpack.c.bf16 %v5716, %v5715
        %v5740 = vpack.c.bf16 %v5718, %v5717
        %v5741 = vpack.c.bf16 %v5720, %v5719
        %v5742 = vpack.c.bf16 %v5722, %v5721
        %v5743 = vpack.c.bf16 %v5724, %v5723
        %v5744 = vpack.c.bf16 %v5726, %v5725
        %v5745 = vpack.c.bf16 %v5728, %v5727
        %v5746 = vpack.c.bf16 %v5730, %v5729
        %v5747 = vpack.c.bf16 %v5572, %v5570
        %v5748 = vpack.c.bf16 %v5576, %v5574
        %v5749 = vpack.c.bf16 %v5580, %v5578
        %v5750 = vpack.c.bf16 %v5584, %v5582
        %v5751 = vpack.c.bf16 %v5588, %v5586
        %v5752 = vpack.c.bf16 %v5592, %v5590
        %v5753 = vpack.c.bf16 %v5596, %v5594
        %v5754 = vpack.c.bf16 %v5600, %v5598
        %v5755 = vpack.c.bf16 %v5604, %v5602
        %v5756 = vpack.c.bf16 %v5608, %v5606
        %v5757 = vpack.c.bf16 %v5612, %v5610
        %v5758 = vpack.c.bf16 %v5616, %v5614
        %v5759 = vpack.c.bf16 %v5620, %v5618
        %v5760 = vpack.c.bf16 %v5624, %v5622
        %v5761 = vpack.c.bf16 %v5628, %v5626
        %v5762 = vpack.c.bf16 %v5632, %v5630
        %v5763 = vxor.u32 %v5747, 2147516416
        %v5764 = vxor.u32 %v5748, 2147516416
        %v5765 = vxor.u32 %v5749, 2147516416
        %v5766 = vxor.u32 %v5750, 2147516416
        %v5767 = vxor.u32 %v5751, 2147516416
        %v5768 = vxor.u32 %v5752, 2147516416
        %v5769 = vxor.u32 %v5753, 2147516416
        %v5770 = vxor.u32 %v5754, 2147516416
        %v5771 = vxor.u32 %v5755, 2147516416
        %v5772 = vxor.u32 %v5756, 2147516416
        %v5773 = vxor.u32 %v5757, 2147516416
        %v5774 = vxor.u32 %v5758, 2147516416
        %v5775 = vxor.u32 %v5759, 2147516416
        %v5776 = vxor.u32 %v5760, 2147516416
        %v5777 = vxor.u32 %v5761, 2147516416
        %v5778 = vxor.u32 %v5762, 2147516416
        %v5780 = vmul.bf16 %v5763, 1069105081
        %v5781 = vpow.bf16.pop %v5780
        %v5783 = vmul.bf16 %v5764, 1069105081
        %v5784 = vpow.bf16.pop %v5783
        %v5786 = vmul.bf16 %v5765, 1069105081
        %v5787 = vpow.bf16.pop %v5786
        %v5789 = vmul.bf16 %v5766, 1069105081
        %v5790 = vpow.bf16.pop %v5789
        %v5792 = vmul.bf16 %v5767, 1069105081
        %v5793 = vpow.bf16.pop %v5792
        %v5795 = vmul.bf16 %v5768, 1069105081
        %v5796 = vpow.bf16.pop %v5795
        %v5798 = vmul.bf16 %v5769, 1069105081
        %v5799 = vpow.bf16.pop %v5798
        %v5801 = vmul.bf16 %v5770, 1069105081
        %v5802 = vpow.bf16.pop %v5801
        %v5804 = vmul.bf16 %v5771, 1069105081
        %v5805 = vpow.bf16.pop %v5804
        %v5807 = vmul.bf16 %v5772, 1069105081
        %v5808 = vpow.bf16.pop %v5807
        %v5810 = vmul.bf16 %v5773, 1069105081
        %v5811 = vpow.bf16.pop %v5810
        %v5813 = vmul.bf16 %v5774, 1069105081
        %v5814 = vpow.bf16.pop %v5813
        %v5816 = vmul.bf16 %v5775, 1069105081
        %v5817 = vpow.bf16.pop %v5816
        %v5819 = vmul.bf16 %v5776, 1069105081
        %v5820 = vpow.bf16.pop %v5819
        %v5822 = vmul.bf16 %v5777, 1069105081
        %v5823 = vpow.bf16.pop %v5822
        %v5825 = vmul.bf16 %v5778, 1069105081
        %v5826 = vpow.bf16.pop %v5825
        %v5827 = vadd.bf16 %v5781, 1065369472
        %v5828 = vadd.bf16 %v5784, 1065369472
        %v5829 = vadd.bf16 %v5787, 1065369472
        %v5830 = vadd.bf16 %v5790, 1065369472
        %v5831 = vadd.bf16 %v5793, 1065369472
        %v5832 = vadd.bf16 %v5796, 1065369472
        %v5833 = vadd.bf16 %v5799, 1065369472
        %v5834 = vadd.bf16 %v5802, 1065369472
        %v5835 = vadd.bf16 %v5805, 1065369472
        %v5836 = vadd.bf16 %v5808, 1065369472
        %v5837 = vadd.bf16 %v5811, 1065369472
        %v5838 = vadd.bf16 %v5814, 1065369472
        %v5839 = vadd.bf16 %v5817, 1065369472
        %v5840 = vadd.bf16 %v5820, 1065369472
        %v5841 = vadd.bf16 %v5823, 1065369472
        %v5842 = vadd.bf16 %v5826, 1065369472
        %v5843 = vrcp.bf16.pop %v5827
        %v5844 = vmul.bf16 1065369472, %v5843
        %v5845 = vrcp.bf16.pop %v5828
        %v5846 = vmul.bf16 1065369472, %v5845
        %v5847 = vrcp.bf16.pop %v5829
        %v5848 = vmul.bf16 1065369472, %v5847
        %v5849 = vrcp.bf16.pop %v5830
        %v5850 = vmul.bf16 1065369472, %v5849
        %v5851 = vrcp.bf16.pop %v5831
        %v5852 = vmul.bf16 1065369472, %v5851
        %v5853 = vrcp.bf16.pop %v5832
        %v5854 = vmul.bf16 1065369472, %v5853
        %v5855 = vrcp.bf16.pop %v5833
        %v5856 = vmul.bf16 1065369472, %v5855
        %v5857 = vrcp.bf16.pop %v5834
        %v5858 = vmul.bf16 1065369472, %v5857
        %v5859 = vrcp.bf16.pop %v5835
        %v5860 = vmul.bf16 1065369472, %v5859
        %v5861 = vrcp.bf16.pop %v5836
        %v5862 = vmul.bf16 1065369472, %v5861
        %v5863 = vrcp.bf16.pop %v5837
        %v5864 = vmul.bf16 1065369472, %v5863
        %v5865 = vrcp.bf16.pop %v5838
        %v5866 = vmul.bf16 1065369472, %v5865
        %v5867 = vrcp.bf16.pop %v5839
        %v5868 = vmul.bf16 1065369472, %v5867
        %v5869 = vrcp.bf16.pop %v5840
        %v5870 = vmul.bf16 1065369472, %v5869
        %v5871 = vrcp.bf16.pop %v5841
        %v5872 = vmul.bf16 1065369472, %v5871
        %v5873 = vrcp.bf16.pop %v5842
        %v5874 = vmul.bf16 1065369472, %v5873
        %v5875 = vmul.bf16 %v5731, %v5844
        %v5876 = vmul.bf16 %v5732, %v5846
        %v5877 = vmul.bf16 %v5733, %v5848
        %v5878 = vmul.bf16 %v5734, %v5850
        %v5879 = vmul.bf16 %v5735, %v5852
        %v5880 = vmul.bf16 %v5736, %v5854
        %v5881 = vmul.bf16 %v5737, %v5856
        %v5882 = vmul.bf16 %v5738, %v5858
        %v5883 = vmul.bf16 %v5739, %v5860
        %v5884 = vmul.bf16 %v5740, %v5862
        %v5885 = vmul.bf16 %v5741, %v5864
        %v5886 = vmul.bf16 %v5742, %v5866
        %v5887 = vmul.bf16 %v5743, %v5868
        %v5888 = vmul.bf16 %v5744, %v5870
        %v5889 = vmul.bf16 %v5745, %v5872
        %v5890 = vmul.bf16 %v5746, %v5874
        %v5891 = vunpack.c.l.bf16 %v5875
        %v5892 = vunpack.c.h.bf16 %v5875
        %v5893 = vunpack.c.l.bf16 %v5876
        %v5894 = vunpack.c.h.bf16 %v5876
        %v5895 = vunpack.c.l.bf16 %v5877
        %v5896 = vunpack.c.h.bf16 %v5877
        %v5897 = vunpack.c.l.bf16 %v5878
        %v5898 = vunpack.c.h.bf16 %v5878
        %v5899 = vunpack.c.l.bf16 %v5879
        %v5900 = vunpack.c.h.bf16 %v5879
        %v5901 = vunpack.c.l.bf16 %v5880
        %v5902 = vunpack.c.h.bf16 %v5880
        %v5903 = vunpack.c.l.bf16 %v5881
        %v5904 = vunpack.c.h.bf16 %v5881
        %v5905 = vunpack.c.l.bf16 %v5882
        %v5906 = vunpack.c.h.bf16 %v5882
        %v5907 = vunpack.c.l.bf16 %v5883
        %v5908 = vunpack.c.h.bf16 %v5883
        %v5909 = vunpack.c.l.bf16 %v5884
        %v5910 = vunpack.c.h.bf16 %v5884
        %v5911 = vunpack.c.l.bf16 %v5885
        %v5912 = vunpack.c.h.bf16 %v5885
        %v5913 = vunpack.c.l.bf16 %v5886
        %v5914 = vunpack.c.h.bf16 %v5886
        %v5915 = vunpack.c.l.bf16 %v5887
        %v5916 = vunpack.c.h.bf16 %v5887
        %v5917 = vunpack.c.l.bf16 %v5888
        %v5918 = vunpack.c.h.bf16 %v5888
        %v5919 = vunpack.c.l.bf16 %v5889
        %v5920 = vunpack.c.h.bf16 %v5889
        %v5921 = vunpack.c.l.bf16 %v5890
        %v5922 = vunpack.c.h.bf16 %v5890
        %v5939 = vunpack.c.l.b16 %v5875
        %v5940 = vunpack.c.h.b16 %v5875
        %v5941 = vunpack.c.l.b16 %v5876
        %v5942 = vunpack.c.h.b16 %v5876
        %v5943 = vunpack.c.l.b16 %v5877
        %v5944 = vunpack.c.h.b16 %v5877
        %v5945 = vunpack.c.l.b16 %v5878
        %v5946 = vunpack.c.h.b16 %v5878
        %v5947 = vunpack.c.l.b16 %v5879
        %v5948 = vunpack.c.h.b16 %v5879
        %v5949 = vunpack.c.l.b16 %v5880
        %v5950 = vunpack.c.h.b16 %v5880
        %v5951 = vunpack.c.l.b16 %v5881
        %v5952 = vunpack.c.h.b16 %v5881
        %v5953 = vunpack.c.l.b16 %v5882
        %v5954 = vunpack.c.h.b16 %v5882
        %v5955 = vunpack.c.l.b16 %v5883
        %v5956 = vunpack.c.h.b16 %v5883
        %v5957 = vunpack.c.l.b16 %v5884
        %v5958 = vunpack.c.h.b16 %v5884
        %v5959 = vunpack.c.l.b16 %v5885
        %v5960 = vunpack.c.h.b16 %v5885
        %v5961 = vunpack.c.l.b16 %v5886
        %v5962 = vunpack.c.h.b16 %v5886
        %v5963 = vunpack.c.l.b16 %v5887
        %v5964 = vunpack.c.h.b16 %v5887
        %v5965 = vunpack.c.l.b16 %v5888
        %v5966 = vunpack.c.h.b16 %v5888
        %v5967 = vunpack.c.l.b16 %v5889
        %v5968 = vunpack.c.h.b16 %v5889
        %v5969 = vunpack.c.l.b16 %v5890
        %v5970 = vunpack.c.h.b16 %v5890
        %v5971 = vpack.c.b16 %v5939, %v5939
        %v5972 = vpack.c.b16 %v5940, %v5940
        %v5973 = vpack.c.b16 %v5941, %v5941
        %v5974 = vpack.c.b16 %v5942, %v5942
        %v5975 = vpack.c.b16 %v5943, %v5943
        %v5976 = vpack.c.b16 %v5944, %v5944
        %v5977 = vpack.c.b16 %v5945, %v5945
        %v5978 = vpack.c.b16 %v5946, %v5946
        %v5979 = vpack.c.b16 %v5947, %v5947
        %v5980 = vpack.c.b16 %v5948, %v5948
        %v5981 = vpack.c.b16 %v5949, %v5949
        %v5982 = vpack.c.b16 %v5950, %v5950
        %v5983 = vpack.c.b16 %v5951, %v5951
        %v5984 = vpack.c.b16 %v5952, %v5952
        %v5985 = vpack.c.b16 %v5953, %v5953
        %v5986 = vpack.c.b16 %v5954, %v5954
        %v5987 = vpack.c.b16 %v5955, %v5955
        %v5988 = vpack.c.b16 %v5956, %v5956
        %v5989 = vpack.c.b16 %v5957, %v5957
        %v5990 = vpack.c.b16 %v5958, %v5958
        %v5991 = vpack.c.b16 %v5959, %v5959
        %v5992 = vpack.c.b16 %v5960, %v5960
        %v5993 = vpack.c.b16 %v5961, %v5961
        %v5994 = vpack.c.b16 %v5962, %v5962
        %v5995 = vpack.c.b16 %v5963, %v5963
        %v5996 = vpack.c.b16 %v5964, %v5964
        %v5997 = vpack.c.b16 %v5965, %v5965
        %v5998 = vpack.c.b16 %v5966, %v5966
        %v5999 = vpack.c.b16 %v5967, %v5967
        %v6000 = vpack.c.b16 %v5968, %v5968
        %v6001 = vpack.c.b16 %v5969, %v5969
        %v6002 = vpack.c.b16 %v5970, %v5970
        %6035 = vst [vmem:[%s238] sm:$0xf] %v5971
        %6036 = vst [vmem:[%s238 + $0x4] sm:$0xf] %v5972
        %6037 = vst [vmem:[%s238 + $0x8] sm:$0xf] %v5973
        %6038 = vst [vmem:[%s238 + $0xc] sm:$0xf] %v5974
        %6039 = vst [vmem:[%s238 + $0x10] sm:$0xf] %v5975
        %6040 = vst [vmem:[%s238 + $0x14] sm:$0xf] %v5976
        %6041 = vst [vmem:[%s238 + $0x18] sm:$0xf] %v5977
        %6042 = vst [vmem:[%s238 + $0x1c] sm:$0xf] %v5978
        %6043 = vst [vmem:[%s238 + $0x20] sm:$0xf] %v5979
        %6044 = vst [vmem:[%s238 + $0x24] sm:$0xf] %v5980
        %6045 = vst [vmem:[%s238 + $0x28] sm:$0xf] %v5981
        %6046 = vst [vmem:[%s238 + $0x2c] sm:$0xf] %v5982
        %6047 = vst [vmem:[%s238 + $0x30] sm:$0xf] %v5983
        %6048 = vst [vmem:[%s238 + $0x34] sm:$0xf] %v5984
        %6049 = vst [vmem:[%s238 + $0x38] sm:$0xf] %v5985
        %6050 = vst [vmem:[%s238 + $0x3c] sm:$0xf] %v5986
        %6051 = vst [vmem:[%s238 + $0x40] sm:$0xf] %v5987
        %6052 = vst [vmem:[%s238 + $0x44] sm:$0xf] %v5988
        %6053 = vst [vmem:[%s238 + $0x48] sm:$0xf] %v5989
        %6054 = vst [vmem:[%s238 + $0x4c] sm:$0xf] %v5990
        %6055 = vst [vmem:[%s238 + $0x50] sm:$0xf] %v5991
        %6056 = vst [vmem:[%s238 + $0x54] sm:$0xf] %v5992
        %6057 = vst [vmem:[%s238 + $0x58] sm:$0xf] %v5993
        %6058 = vst [vmem:[%s238 + $0x5c] sm:$0xf] %v5994
        %6059 = vst [vmem:[%s238 + $0x60] sm:$0xf] %v5995
        %6060 = vst [vmem:[%s238 + $0x64] sm:$0xf] %v5996
        %6061 = vst [vmem:[%s238 + $0x68] sm:$0xf] %v5997
        %6062 = vst [vmem:[%s238 + $0x6c] sm:$0xf] %v5998
        %6063 = vst [vmem:[%s238 + $0x70] sm:$0xf] %v5999
        %6064 = vst [vmem:[%s238 + $0x74] sm:$0xf] %v6000
        %6065 = vst [vmem:[%s238 + $0x78] sm:$0xf] %v6001
        %6066 = vst [vmem:[%s238 + $0x7c] sm:$0xf] %v6002
        %v6067 = vadd.f32 %v5891, %v5892
        %v6068 = vadd.f32 %v6067, %v5893
        %v6069 = vadd.f32 %v6068, %v5894
        %v6070 = vadd.f32 %v6069, %v5895
        %v6071 = vadd.f32 %v6070, %v5896
        %v6072 = vadd.f32 %v6071, %v5897
        %v6073 = vadd.f32 %v6072, %v5898
        %v6074 = vadd.f32 %v6073, %v5899
        %v6075 = vadd.f32 %v6074, %v5900
        %v6076 = vadd.f32 %v6075, %v5901
        %v6077 = vadd.f32 %v6076, %v5902
        %v6078 = vadd.f32 %v6077, %v5903
        %v6079 = vadd.f32 %v6078, %v5904
        %v6080 = vadd.f32 %v6079, %v5905
        %v6081 = vadd.f32 %v6080, %v5906
        %v6082 = vadd.f32 %v6081, %v5907
        %v6083 = vadd.f32 %v6082, %v5908
        %v6084 = vadd.f32 %v6083, %v5909
        %v6085 = vadd.f32 %v6084, %v5910
        %v6086 = vadd.f32 %v6085, %v5911
        %v6087 = vadd.f32 %v6086, %v5912
        %v6088 = vadd.f32 %v6087, %v5913
        %v6089 = vadd.f32 %v6088, %v5914
        %v6090 = vadd.f32 %v6089, %v5915
        %v6091 = vadd.f32 %v6090, %v5916
        %v6092 = vadd.f32 %v6091, %v5917
        %v6093 = vadd.f32 %v6092, %v5918
        %v6094 = vadd.f32 %v6093, %v5919
        %v6095 = vadd.f32 %v6094, %v5920
        %v6096 = vadd.f32 %v6095, %v5921
        %v6097 = vadd.f32 %v6096, %v5922
        %v6098 = vrot.slane %v6097, 4
        %v6099 = vadd.f32 %v6097, %v6098
        %v6100 = vrot.slane %v6099, 2
        %v6101 = vadd.f32 %v6099, %v6100
        %v6102 = vrot.slane %v6101, 1
        %v6103 = vadd.f32 %v6101, %v6102
        %6104 = vst [vmem:[%s245] sm:$0x1] %v6103
        %v6105 = vmul.f32 %v5891, %v5891
        %v6106 = vmul.f32 %v5892, %v5892
        %v6107 = vmul.f32 %v5893, %v5893
        %v6108 = vmul.f32 %v5894, %v5894
        %v6109 = vmul.f32 %v5895, %v5895
        %v6110 = vmul.f32 %v5896, %v5896
        %v6111 = vmul.f32 %v5897, %v5897
        %v6112 = vmul.f32 %v5898, %v5898
        %v6113 = vmul.f32 %v5899, %v5899
        %v6114 = vmul.f32 %v5900, %v5900
        %v6115 = vmul.f32 %v5901, %v5901
        %v6116 = vmul.f32 %v5902, %v5902
        %v6117 = vmul.f32 %v5903, %v5903
        %v6118 = vmul.f32 %v5904, %v5904
        %v6119 = vmul.f32 %v5905, %v5905
        %v6120 = vmul.f32 %v5906, %v5906
        %v6121 = vmul.f32 %v5907, %v5907
        %v6122 = vmul.f32 %v5908, %v5908
        %v6123 = vmul.f32 %v5909, %v5909
        %v6124 = vmul.f32 %v5910, %v5910
        %v6125 = vmul.f32 %v5911, %v5911
        %v6126 = vmul.f32 %v5912, %v5912
        %v6127 = vmul.f32 %v5913, %v5913
        %v6128 = vmul.f32 %v5914, %v5914
        %v6129 = vmul.f32 %v5915, %v5915
        %v6130 = vmul.f32 %v5916, %v5916
        %v6131 = vmul.f32 %v5917, %v5917
        %v6132 = vmul.f32 %v5918, %v5918
        %v6133 = vmul.f32 %v5919, %v5919
        %v6134 = vmul.f32 %v5920, %v5920
        %v6135 = vmul.f32 %v5921, %v5921
        %v6136 = vmul.f32 %v5922, %v5922
        %v6137 = vadd.f32 %v6105, %v6106
        %v6138 = vadd.f32 %v6137, %v6107
        %v6139 = vadd.f32 %v6138, %v6108
        %v6140 = vadd.f32 %v6139, %v6109
        %v6141 = vadd.f32 %v6140, %v6110
        %v6142 = vadd.f32 %v6141, %v6111
        %v6143 = vadd.f32 %v6142, %v6112
        %v6144 = vadd.f32 %v6143, %v6113
        %v6145 = vadd.f32 %v6144, %v6114
        %v6146 = vadd.f32 %v6145, %v6115
        %v6147 = vadd.f32 %v6146, %v6116
        %v6148 = vadd.f32 %v6147, %v6117
        %v6149 = vadd.f32 %v6148, %v6118
        %v6150 = vadd.f32 %v6149, %v6119
        %v6151 = vadd.f32 %v6150, %v6120
        %v6152 = vadd.f32 %v6151, %v6121
        %v6153 = vadd.f32 %v6152, %v6122
        %v6154 = vadd.f32 %v6153, %v6123
        %v6155 = vadd.f32 %v6154, %v6124
        %v6156 = vadd.f32 %v6155, %v6125
        %v6157 = vadd.f32 %v6156, %v6126
        %v6158 = vadd.f32 %v6157, %v6127
        %v6159 = vadd.f32 %v6158, %v6128
        %v6160 = vadd.f32 %v6159, %v6129
        %v6161 = vadd.f32 %v6160, %v6130
        %v6162 = vadd.f32 %v6161, %v6131
        %v6163 = vadd.f32 %v6162, %v6132
        %v6164 = vadd.f32 %v6163, %v6133
        %v6165 = vadd.f32 %v6164, %v6134
        %v6166 = vadd.f32 %v6165, %v6135
        %v6167 = vadd.f32 %v6166, %v6136
        %v6168 = vrot.slane %v6167, 4
        %v6169 = vadd.f32 %v6167, %v6168
        %v6170 = vrot.slane %v6169, 2
        %v6171 = vadd.f32 %v6169, %v6170
        %v6172 = vrot.slane %v6171, 1
        %v6173 = vadd.f32 %v6171, %v6172
        %6174 = vst [vmem:[%s245 + $0x1] sm:$0x1] %v6173
        %s6175 = sand.u32 %s135, 1
        %s6176 = scalar_lea.sflag [#allocation4], %s6175
        %s6177 = sand.u32 %s135, 1
        %s6178 = smul.addr %s6177, 128
        %s6179 = scalar_lea.vmem [#allocation3], %s6178
        %s6180 = sand.u32 %s163, 1
        %s6181 = scalar_lea.sflag [#allocation6], %s6180
        %s6182 = sand.u32 %s163, 1
        %s6183 = smul.addr %s6182, 2
        %s6184 = scalar_lea.vmem [#allocation5], %s6183
        // Predicated region
        $region37: #{tpu_custom_call.1} parent=35 // pred_check
          %p6185 = pneg %p145
        $region38: #{tpu_custom_call.1} parent=35 // pred_check_branch
          %6187 = sbr.rel (%p6185) target = $region40
        $region39: #{tpu_custom_call.1} parent=35 // pred_region
          %s6188 = sadd.s32 %s28, %s29
          %s6189 = smul.u32 32, %s6188
          %s6191 = ssub.s32 2048, 2048
          %6192 = vsyncadd %s6176, %s6191
          %s6193 = smul.addr %s6189, 64
          %s6194 = scalar_lea.hbm %s4, %s6193
          %s6195 = sshll.u32 %s6179, 4
          %s6196 = int_to_ptr.vmem [resolvable:$true] %s6195
          %6201 = dma.vmem_to_hbm [thread:$0]  %s6196, 2048, %s6194, %s6176, 64, 64, 4
        $region40: #{tpu_custom_call.1} parent=35 // pred_fallthru
          _
        // Predicated region
        $region41: #{tpu_custom_call.1} parent=35 // pred_check
          %p6202 = pneg %p173
        $region42: #{tpu_custom_call.1} parent=35 // pred_check_branch
          %6204 = sbr.rel (%p6202) target = $region44
        $region43: #{tpu_custom_call.1} parent=35 // pred_region
          %s6205 = sadd.s32 %s28, %s29
          %s6207 = ssub.s32 32, 32
          %6208 = vsyncadd %s6181, %s6207
          %s6209 = smul.addr %s6205, 32
          %s6210 = scalar_lea.hbm %s5, %s6209
          %s6212 = sshll.u32 %s6184, 4
          %s6213 = int_to_ptr.vmem [resolvable:$true] %s6212
          %6215 = dma.vmem_to_hbm [thread:$0]  %s6213, 32, %s6210, %s6181
        $region44: #{tpu_custom_call.1} parent=35 // pred_fallthru
          _
      $region36: #{tpu_custom_call.1} parent=5 // pred_fallthru
        _
      %p6216 = scmp.le.s32.totalorder 2, %s19
      // Predicated region
      $region45: #{tpu_custom_call.1} parent=5 // pred_check
        %p6217 = pneg %p6216
      $region46: #{tpu_custom_call.1} parent=5 // pred_check_branch
        %6219 = sbr.rel (%p6217) target = $region48
      $region47: #{tpu_custom_call.1} parent=5 // pred_region
        %s6220 = ssub.s32 %s19, 2
        // Predicated region
        $region49: #{tpu_custom_call.1} parent=47 // pred_check
          %p6221 = pneg %p151
        $region50: #{tpu_custom_call.1} parent=47 // pred_check_branch
          %6223 = sbr.rel (%p6221) target = $region52
        $region51: #{tpu_custom_call.1} parent=47 // pred_region
          %s6224 = sand.u32 %s136, 1
          %s6225 = scalar_lea.sflag [#allocation4], %s6224
          %s6226 = sand.u32 %s136, 1
          %s6227 = smul.addr %s6226, 128
          %s6228 = scalar_lea.vmem [#allocation3], %s6227
          %6229 = dma.done %s6225, 2048
        $region52: #{tpu_custom_call.1} parent=47 // pred_fallthru
          _
        // Predicated region
        $region53: #{tpu_custom_call.1} parent=47 // pred_check
          %p6230 = pneg %p179
        $region54: #{tpu_custom_call.1} parent=47 // pred_check_branch
          %6232 = sbr.rel (%p6230) target = $region56
        $region55: #{tpu_custom_call.1} parent=47 // pred_region
          %s6233 = sand.u32 %s164, 1
          %s6234 = scalar_lea.sflag [#allocation6], %s6233
          %s6235 = sand.u32 %s164, 1
          %s6236 = smul.addr %s6235, 2
          %s6237 = scalar_lea.vmem [#allocation5], %s6236
          %6238 = dma.done %s6234, 32
        $region56: #{tpu_custom_call.1} parent=47 // pred_fallthru
          _
      $region48: #{tpu_custom_call.1} parent=5 // pred_fallthru
        _
    $region6: #{tpu_custom_call.1} parent=1 // loop_footer
      %s23 = sadd.s32 1, %s19
    $region7: #{tpu_custom_call.1} parent=1 // loop_footer_branch
      %18 = sbr.rel target = $region3
    $region8: #{tpu_custom_call.1} parent=1 // loop_exit
      _
    %6239 = vsyncpa [#allocation4], 1
    %s6240 = scalar_lea.sflag [#allocation4], 1
    %6241 = vsyncpa %s6240, 1
    %6242 = vsyncpa [#allocation6], 1
    %s6243 = scalar_lea.sflag [#allocation6], 1
    %6244 = vsyncpa %s6243, 1

</llo_original>
